<compile_context>
chip_gen: v7x
topology: tpu7x:2x2x1
jax: 0.10.0
libtpu: 0.0.40
codegen_flags: <defaults>
</compile_context>

<pallas_src>
import functools
import math

import jax
import jax.numpy as jnp
from jax.experimental import pallas as pl
from jax.experimental.pallas import tpu as pltpu

EPS = 1e-5  # torch nn.LayerNorm default eps


# ---------------------------------------------------------------------------
# in-kernel helpers
# ---------------------------------------------------------------------------
def _layernorm(x, gamma, beta):
    mu = jnp.mean(x, axis=-1, keepdims=True)
    var = jnp.mean((x - mu) ** 2, axis=-1, keepdims=True)
    return (x - mu) * jax.lax.rsqrt(var + EPS) * gamma + beta


def _silu(x):
    return x * jax.nn.sigmoid(x)


# ---------------------------------------------------------------------------
# fused Pallas kernel: input mix + L residual blocks + final norm/projection
# grid = (B, L); the [T, C] activation lives in a VMEM scratch across L.
# ---------------------------------------------------------------------------
def fused_lynxnet2_kernel(xc_ref, bmix_ref, wmix_ref,
                          g_ref, bta_ref, cw_ref, cb_ref,
                          w1o_ref, b1o_ref, w1g_ref, b1g_ref,
                          w2o_ref, b2o_ref, w2g_ref, b2g_ref,
                          w3_ref, b3_ref,
                          gf_ref, bf_ref, wo_ref, bo_ref,
                          o_ref, x_res):
    l = pl.program_id(1)
    L = pl.num_programs(1)

    # ---- input mix (runs once per batch element, at layer 0) ----
    @pl.when(l == 0)
    def _():
        xc = xc_ref[0].astype(jnp.bfloat16)                    # (T, Dm_pad)
        x_res[...] = (jnp.dot(xc, wmix_ref[...],
                              preferred_element_type=jnp.float32)
                      + bmix_ref[0])                           # bias+cond bias+diff emb

    x = x_res[...]                                             # (T, C) f32
    T = x.shape[0]

    # ---- LayerNorm over channels ----
    h = _layernorm(x, g_ref[0], bta_ref[0])

    # ---- depthwise Conv1d along T ('same' zero padding): XLU roll + masks ----
    K = cw_ref.shape[1]
    pad = K // 2
    row = jax.lax.broadcasted_iota(jnp.int32, (T, 1), 0)       # time index (T, 1)
    acc = h * cw_ref[0, pad:pad + 1, :]                        # center tap
    # TODO(synk): for large T tiles chunk this statically unrolled tap loop.
    for k in range(K):                                         # static taps
        d = k - pad                                            # offset in [-pad, pad]
        if d == 0:
            continue
        shifted = pltpu.roll(h, shift=(-d) % T, axis=0)        # shifted[t] = h[t + d]
        valid = jnp.logical_and(row + d >= 0, row + d < T)
        mask = jnp.where(valid, 1.0, 0.0)                      # (T, 1) f32
        acc = acc + (shifted * mask) * cw_ref[0, k:k + 1, :]
    h = acc + cb_ref[0]

    # ---- Linear -> SwiGLU (out/gate split weights; bf16 MXU, f32 acc) ----
    # TODO(synk): SwiGLU assumed as chunk(2,-1) -> out * silu(gate) (DiffSinger def.)
    hb = h.astype(jnp.bfloat16)
    out1 = jnp.dot(hb, w1o_ref[0], preferred_element_type=jnp.float32) + b1o_ref[0]
    gate1 = jnp.dot(hb, w1g_ref[0], preferred_element_type=jnp.float32) + b1g_ref[0]
    h = out1 * _silu(gate1)

    hb = h.astype(jnp.bfloat16)
    out2 = jnp.dot(hb, w2o_ref[0], preferred_element_type=jnp.float32) + b2o_ref[0]
    gate2 = jnp.dot(hb, w2g_ref[0], preferred_element_type=jnp.float32) + b2g_ref[0]
    h = out2 * _silu(gate2)

    # ---- Linear back to C, residual add (stays resident in VMEM) ----
    hb = h.astype(jnp.bfloat16)
    h = jnp.dot(hb, w3_ref[0], preferred_element_type=jnp.float32) + b3_ref[0]
    x_res[...] = x + h

    # ---- final LayerNorm + (lane-dense, zero-padded) output projection ----
    @pl.when(l == L - 1)
    def _():
        xf = _layernorm(x_res[...], gf_ref[...], bf_ref[...])
        o_ref[0] = (jnp.dot(xf.astype(jnp.bfloat16), wo_ref[...],
                            preferred_element_type=jnp.float32)
                    + bo_ref[...])


# ---------------------------------------------------------------------------
# pallas_call wrapper
# ---------------------------------------------------------------------------
def _const_spec(shape):
    nd = len(shape)
    return pl.BlockSpec(shape, lambda b, l, _nd=nd: (0,) * _nd)


def _batch_spec(trailing):
    nd = len(trailing)
    return pl.BlockSpec((1,) + trailing, lambda b, l, _nd=nd: (b,) + (0,) * _nd)


def _layer_spec(trailing):
    nd = len(trailing)
    return pl.BlockSpec((1,) + trailing, lambda b, l, _nd=nd: (l,) + (0,) * _nd)


def run_fused(xc, bias_mix, w_mix, layer_stack, gamma_f, beta_f, wo, bo):
    B, T, Dm = xc.shape
    C = w_mix.shape[-1]
    Dout = wo.shape[-1]
    L = layer_stack[0].shape[0]

    in_specs = [_batch_spec((T, Dm)),            # [x | cond] per batch (lane-padded)
                _batch_spec((1, C)),             # fused bias (+diffusion emb)
                _const_spec(w_mix.shape)]        # stacked input/cond projection
    in_specs += [_layer_spec(p.shape[1:]) for p in layer_stack]
    in_specs += [_const_spec(gamma_f.shape), _const_spec(beta_f.shape),
                 _const_spec(wo.shape), _const_spec(bo.shape)]

    grid_spec = pltpu.PrefetchScalarGridSpec(
        num_scalar_prefetch=0,
        grid=(B, L),
        in_specs=in_specs,
        out_specs=pl.BlockSpec((1, T, Dout), lambda b, l: (b, 0, 0)),
        scratch_shapes=[pltpu.VMEM((T, C), jnp.float32)],   # resident activation
    )
    return pl.pallas_call(
        fused_lynxnet2_kernel,
        out_shape=jax.ShapeDtypeStruct((B, T, Dout), jnp.float32),
        grid_spec=grid_spec,
        compiler_params=pltpu.CompilerParams(
            dimension_semantics=("parallel", "arbitrary")),
    )(xc, bias_mix, w_mix, *layer_stack, gamma_f, beta_f, wo, bo)


# ---------------------------------------------------------------------------
# parameters (deterministic synthetic init mirroring nn.Module shapes)
# ---------------------------------------------------------------------------
def init_params(key, in_dims, n_feats, hidden_size, num_channels, num_layers,
                expansion_factor, kernel_size):
    C = num_channels
    Din = in_dims * n_feats
    H = hidden_size
    inner = int(C * expansion_factor)
    K = kernel_size
    keys = jax.random.split(key, 8 + num_layers)

    def kaiming(k, shape):                       # fan_in mode, like kaiming_normal_
        return jax.random.normal(k, shape, jnp.float32) * math.sqrt(2.0 / shape[0])

    def lin(k, fan_in, fan_out):                 # torch default Linear init
        kw, kb = jax.random.split(k)
        bound = 1.0 / math.sqrt(fan_in)
        w = jax.random.uniform(kw, (fan_in, fan_out), jnp.float32, -bound, bound)
        b = jax.random.uniform(kb, (1, fan_out), jnp.float32, -bound, bound)
        return w, b

    p = {}
    wi = kaiming(keys[0], (Din, C))              # input_projection weight
    _, bi = lin(keys[1], Din, C)
    wc = kaiming(keys[2], (H, C))                # conditioner_projection weight
    _, bc = lin(keys[3], H, C)
    p['w_mix'] = jnp.concatenate([wi, wc], axis=0).astype(jnp.bfloat16)  # [Din+H, C]
    p['b_mix'] = bi + bc                                                 # [1, C]

    p['dw1'], p['db1'] = lin(keys[4], C, 4 * C)  # diffusion embedding MLP (plain JAX)
    p['dw2'], p['db2'] = lin(keys[5], 4 * C, C)

    p['wo'] = jnp.zeros((C, Din), jnp.bfloat16)  # module zero-inits this weight
    _, p['bo'] = lin(keys[6], C, Din)
    p['gamma'] = jnp.ones((1, C), jnp.float32)   # final LayerNorm
    p['beta'] = jnp.zeros((1, C), jnp.float32)

    per_layer = [[] for _ in range(14)]
    for i in range(num_layers):
        ks = jax.random.split(keys[8 + i], 5)
        g = jnp.ones((1, C), jnp.float32)
        bta = jnp.zeros((1, C), jnp.float32)
        cbound = 1.0 / math.sqrt(K)              # depthwise conv fan_in = K
        cw = jax.random.uniform(ks[0], (K, C), jnp.float32, -cbound, cbound)
        cb = jax.random.uniform(ks[1], (1, C), jnp.float32, -cbound, cbound)
        w1, b1 = lin(ks[2], C, inner * 2)
        w2, b2 = lin(ks[3], inner, inner * 2)
        w3, b3 = lin(ks[4], inner, C)
        # split 2*inner projections into out|gate halves (lane-dense matmuls)
        vals = [g, bta, cw, cb,
                w1[:, :inner].astype(jnp.bfloat16), b1[:, :inner],
                w1[:, inner:].astype(jnp.bfloat16), b1[:, inner:],
                w2[:, :inner].astype(jnp.bfloat16), b2[:, :inner],
                w2[:, inner:].astype(jnp.bfloat16), b2[:, inner:],
                w3.astype(jnp.bfloat16), b3]
        for lst, v in zip(per_layer, vals):
            lst.append(v)
    p['layer_stack'] = tuple(jnp.stack(v, axis=0) for v in per_layer)  # leading L axis
    return p


# ---------------------------------------------------------------------------
# diffusion-step embedding (tiny [B, C] problem -> plain JAX)
# ---------------------------------------------------------------------------
def _diffusion_embedding(params, diffusion_step, C):
    step = diffusion_step.reshape(-1).astype(jnp.float32)
    half = C // 2
    freq = jnp.exp(jnp.arange(half, dtype=jnp.float32)
                   * (-math.log(10000.0) / (half - 1)))
    e = step[:, None] * freq[None, :]
    t_emb = jnp.concatenate([jnp.sin(e), jnp.cos(e)], axis=-1)        # [B, C]
    h = t_emb @ params['dw1'] + params['db1']
    h = 0.5 * h * (1.0 + jax.lax.erf(h * (1.0 / math.sqrt(2.0))))     # exact GELU
    return h @ params['dw2'] + params['db2']                          # [B, C]


def _pad_to_128(n):
    return -(-n // 128) * 128


# ---------------------------------------------------------------------------
# full forward pass
# ---------------------------------------------------------------------------
def lynxnet2_forward(params, spec, diffusion_step, cond, *, n_feats, in_dims,
                     num_channels):
    """spec: [B, F, M, T], diffusion_step: [B] or [B,1], cond: [B, H, T]."""
    B = spec.shape[0]
    T = spec.shape[-1]
    C = num_channels

    if n_feats == 1:
        x = spec[:, 0]                                   # [B, M, T]
    else:
        x = spec.reshape(B, n_feats * in_dims, T)        # [B, F*M, T]
    x_t = jnp.transpose(x, (0, 2, 1))                    # [B, T, Din]
    cond_t = jnp.transpose(cond, (0, 2, 1))              # [B, T, H]

    diff_emb = _diffusion_embedding(params, diffusion_step, C)        # [B, C]

    # fold input + conditioner projections into one matmul; pre-sum biases
    xc = jnp.concatenate([x_t, cond_t], axis=-1).astype(jnp.bfloat16)  # [B, T, Dm]
    bias_mix = (params['b_mix'] + diff_emb)[:, None, :]                # [B, 1, C]

    # zero-pad fused feature dim and output dim to lane multiples (identity math)
    Dm = xc.shape[-1]
    Dm_pad = _pad_to_128(Dm)
    xc_p = jnp.pad(xc, ((0, 0), (0, 0), (0, Dm_pad - Dm)))
    w_mix_p = jnp.pad(params['w_mix'], ((0, Dm_pad - Dm), (0, 0)))
    Dout = params['wo'].shape[-1]
    Dout_pad = _pad_to_128(Dout)
    wo_p = jnp.pad(params['wo'], ((0, 0), (0, Dout_pad - Dout)))
    bo_p = jnp.pad(params['bo'], ((0, 0), (0, Dout_pad - Dout)))

    y = run_fused(xc_p, bias_mix, w_mix_p, params['layer_stack'],
                  params['gamma'], params['beta'], wo_p, bo_p)         # [B, T, Dout_pad]
    y = y[..., :Dout]

    y = jnp.transpose(y, (0, 2, 1))                                    # [B, Din, T]
    if n_feats == 1:
        y = y[:, None, :, :]
    else:
        y = y.reshape(B, n_feats, in_dims, T)
    return y


# ---------------------------------------------------------------------------
# pure-JAX reference (same bf16 matmul casts as the kernel)
# ---------------------------------------------------------------------------
def lynxnet2_reference(params, spec, diffusion_step, cond, *, n_feats, in_dims,
                       num_channels):
    B = spec.shape[0]
    T = spec.shape[-1]
    C = num_channels

    def dot(a, w):
        return jnp.dot(a.astype(jnp.bfloat16), w.astype(jnp.bfloat16),
                       preferred_element_type=jnp.float32)

    def ln(x, g, b):
        mu = jnp.mean(x, axis=-1, keepdims=True)
        var = jnp.mean((x - mu) ** 2, axis=-1, keepdims=True)
        return (x - mu) * jax.lax.rsqrt(var + EPS) * g + b

    if n_feats == 1:
        x = spec[:, 0]
    else:
        x = spec.reshape(B, n_feats * in_dims, T)
    x_t = jnp.transpose(x, (0, 2, 1))
    cond_t = jnp.transpose(cond, (0, 2, 1))
    diff_emb = _diffusion_embedding(params, diffusion_step, C)

    xc = jnp.concatenate([x_t, cond_t], axis=-1)
    h = dot(xc, params['w_mix']) + params['b_mix'] + diff_emb[:, None, :]

    (g, bta, cw, cb, w1o, b1o, w1g, b1g,
     w2o, b2o, w2g, b2g, w3, b3) = params['layer_stack']
    L, K = g.shape[0], cw.shape[1]
    pad = K // 2
    for l in range(L):
        x0 = h
        t = ln(x0, g[l], bta[l])
        tp = jnp.pad(t, ((0, 0), (pad, pad), (0, 0)))
        conv = jnp.zeros_like(t) + cb[l]
        for k in range(K):
            conv = conv + tp[:, k:k + T, :] * cw[l, k]
        t = conv
        o1 = dot(t, w1o[l]) + b1o[l]
        g1 = dot(t, w1g[l]) + b1g[l]
        t = o1 * (g1 * jax.nn.sigmoid(g1))
        o2 = dot(t, w2o[l]) + b2o[l]
        g2 = dot(t, w2g[l]) + b2g[l]
        t = o2 * (g2 * jax.nn.sigmoid(g2))
        t = dot(t, w3[l]) + b3[l]
        h = x0 + t

    h = ln(h, params['gamma'], params['beta'])
    y = dot(h, params['wo']) + params['bo']
    y = jnp.transpose(y, (0, 2, 1))
    if n_feats == 1:
        y = y[:, None, :, :]
    else:
        y = y.reshape(B, n_feats, in_dims, T)
    return y


# ---------------------------------------------------------------------------
if __name__ == "__main__":
    # small, lane-friendly demo shapes (C = inner = 128, T multiple of 8)
    B, n_feats, in_dims, T = 2, 1, 8, 64
    hidden_size, num_channels, num_layers = 64, 128, 3
    expansion_factor, kernel_size = 1, 31

    key = jax.random.PRNGKey(0)
    kp, ks, kd, kc, ko = jax.random.split(key, 5)
    params = init_params(kp, in_dims, n_feats, hidden_size, num_channels,
                         num_layers, expansion_factor, kernel_size)
    # The module zero-inits output_projection.weight; use small random values
    # here instead so the numerical self-check exercises the whole network.
    params['wo'] = (0.02 * jax.random.normal(ko, params['wo'].shape, jnp.float32)
                    ).astype(jnp.bfloat16)

    spec = jax.random.normal(ks, (B, n_feats, in_dims, T), jnp.float32)
    diffusion_step = jax.random.randint(kd, (B, 1), 0, 1000).astype(jnp.float32)
    cond = jax.random.normal(kc, (B, hidden_size, T), jnp.float32)

    fwd = jax.jit(functools.partial(lynxnet2_forward, n_feats=n_feats,
                                    in_dims=in_dims, num_channels=num_channels))
    out = jax.block_until_ready(fwd(params, spec, diffusion_step, cond))
    assert out.shape == (B, n_feats, in_dims, T), out.shape
    assert bool(jnp.all(jnp.isfinite(out)))

    ref = lynxnet2_reference(params, spec, diffusion_step, cond,
                             n_feats=n_feats, in_dims=in_dims,
                             num_channels=num_channels)
    err = float(jnp.max(jnp.abs(out - ref)))
    assert err < 2e-2, f"max |pallas - reference| = {err}"
    print("KERNEL_OK")
</pallas_src>

<mosaic_0001>
module attributes {stable_mosaic.version = 11 : i64} {
  func.func @fused_lynxnet2_kernel(%arg0: i32, %arg1: i32, %arg2: memref<1x64x128xbf16, #tpu.memory_space<vmem>>, %arg3: memref<1x1x128xf32, #tpu.memory_space<vmem>>, %arg4: memref<128x128xbf16, #tpu.memory_space<vmem>>, %arg5: memref<1x1x128xf32, #tpu.memory_space<vmem>>, %arg6: memref<1x1x128xf32, #tpu.memory_space<vmem>>, %arg7: memref<1x31x128xf32, #tpu.memory_space<vmem>>, %arg8: memref<1x1x128xf32, #tpu.memory_space<vmem>>, %arg9: memref<1x128x128xbf16, #tpu.memory_space<vmem>>, %arg10: memref<1x1x128xf32, #tpu.memory_space<vmem>>, %arg11: memref<1x128x128xbf16, #tpu.memory_space<vmem>>, %arg12: memref<1x1x128xf32, #tpu.memory_space<vmem>>, %arg13: memref<1x128x128xbf16, #tpu.memory_space<vmem>>, %arg14: memref<1x1x128xf32, #tpu.memory_space<vmem>>, %arg15: memref<1x128x128xbf16, #tpu.memory_space<vmem>>, %arg16: memref<1x1x128xf32, #tpu.memory_space<vmem>>, %arg17: memref<1x128x128xbf16, #tpu.memory_space<vmem>>, %arg18: memref<1x1x128xf32, #tpu.memory_space<vmem>>, %arg19: memref<1x128xf32, #tpu.memory_space<vmem>>, %arg20: memref<1x128xf32, #tpu.memory_space<vmem>>, %arg21: memref<128x128xbf16, #tpu.memory_space<vmem>>, %arg22: memref<1x128xf32, #tpu.memory_space<vmem>>, %arg23: memref<1x64x128xf32, #tpu.memory_space<vmem>>, %arg24: memref<64x128xf32, #tpu.memory_space<vmem>>) attributes {dimension_semantics = [#tpu.dimension_semantics<parallel>, #tpu.dimension_semantics<arbitrary>], iteration_bounds = array<i64: 2, 3>, scalar_prefetch = 0 : i64, scratch_operands = 1 : i64, tpu.core_type = #tpu.core_type<tc>, window_params = [{transform_indices = @transform_0, window_bounds = array<i64: 1, 64, 128>}, {transform_indices = @transform_1, window_bounds = array<i64: 1, 1, 128>}, {pipeline_mode = #tpu.pipeline_mode<synchronous>, transform_indices = @transform_2, window_bounds = array<i64: 128, 128>}, {transform_indices = @transform_3, window_bounds = array<i64: 1, 1, 128>}, {transform_indices = @transform_4, window_bounds = array<i64: 1, 1, 128>}, {transform_indices = @transform_5, window_bounds = array<i64: 1, 31, 128>}, {transform_indices = @transform_6, window_bounds = array<i64: 1, 1, 128>}, {transform_indices = @transform_7, window_bounds = array<i64: 1, 128, 128>}, {transform_indices = @transform_8, window_bounds = array<i64: 1, 1, 128>}, {transform_indices = @transform_9, window_bounds = array<i64: 1, 128, 128>}, {transform_indices = @transform_10, window_bounds = array<i64: 1, 1, 128>}, {transform_indices = @transform_11, window_bounds = array<i64: 1, 128, 128>}, {transform_indices = @transform_12, window_bounds = array<i64: 1, 1, 128>}, {transform_indices = @transform_13, window_bounds = array<i64: 1, 128, 128>}, {transform_indices = @transform_14, window_bounds = array<i64: 1, 1, 128>}, {transform_indices = @transform_15, window_bounds = array<i64: 1, 128, 128>}, {transform_indices = @transform_16, window_bounds = array<i64: 1, 1, 128>}, {pipeline_mode = #tpu.pipeline_mode<synchronous>, transform_indices = @transform_17, window_bounds = array<i64: 1, 128>}, {pipeline_mode = #tpu.pipeline_mode<synchronous>, transform_indices = @transform_18, window_bounds = array<i64: 1, 128>}, {pipeline_mode = #tpu.pipeline_mode<synchronous>, transform_indices = @transform_19, window_bounds = array<i64: 128, 128>}, {pipeline_mode = #tpu.pipeline_mode<synchronous>, transform_indices = @transform_20, window_bounds = array<i64: 1, 128>}, {transform_indices = @transform_21, window_bounds = array<i64: 1, 64, 128>}]} {
    %c0_i32 = arith.constant 0 : i32
    %0 = arith.cmpi eq, %arg1, %c0_i32 : i32
    %1 = arith.extui %0 : i1 to i32
    %c0_i32_0 = arith.constant 0 : i32
    %2 = arith.cmpi ne, %1, %c0_i32_0 : i32
    scf.if %2 {
      %c0_283 = arith.constant 0 : index
      %c0_284 = arith.constant 0 : index
      %c0_285 = arith.constant 0 : index
      %696 = vector.load %arg2[%c0_283, %c0_284, %c0_285] : memref<1x64x128xbf16, #tpu.memory_space<vmem>>, vector<1x64x128xbf16>
      %697 = vector.shape_cast %696 : vector<1x64x128xbf16> to vector<64x128xbf16>
      %c0_286 = arith.constant 0 : index
      %c0_287 = arith.constant 0 : index
      %698 = vector.load %arg4[%c0_286, %c0_287] : memref<128x128xbf16, #tpu.memory_space<vmem>>, vector<128x128xbf16>
      %cst_288 = arith.constant dense<0.000000e+00> : vector<64x128xf32>
      %699 = tpu.matmul %697, %698, %cst_288 {dimension_numbers = #tpu.dot_dimension_numbers<[1], [0], [0], [1], [0, 0, 1, 1], [], []>} : vector<64x128xbf16>, vector<128x128xbf16>, vector<64x128xf32> -> vector<64x128xf32>
      %c0_289 = arith.constant 0 : index
      %c0_290 = arith.constant 0 : index
      %c0_291 = arith.constant 0 : index
      %700 = vector.load %arg3[%c0_289, %c0_290, %c0_291] : memref<1x1x128xf32, #tpu.memory_space<vmem>>, vector<1x1x128xf32>
      %701 = vector.shape_cast %700 : vector<1x1x128xf32> to vector<1x128xf32>
      %702 = vector.broadcast %701 : vector<1x128xf32> to vector<64x128xf32>
      %703 = arith.addf %699, %702 : vector<64x128xf32>
      %c0_292 = arith.constant 0 : index
      %c0_293 = arith.constant 0 : index
      %704 = vector.load %arg24[%c0_292, %c0_293] : memref<64x128xf32, #tpu.memory_space<vmem>>, vector<64x128xf32>
      tpu.vector_store %arg24[%c0_292, %c0_293], %703 {strides = array<i32>} : memref<64x128xf32, #tpu.memory_space<vmem>>, vector<64x128xf32>,
    } else {
    }
    %c0 = arith.constant 0 : index
    %c0_1 = arith.constant 0 : index
    %3 = vector.load %arg24[%c0, %c0_1] : memref<64x128xf32, #tpu.memory_space<vmem>>, vector<64x128xf32>
    %c0_2 = arith.constant 0 : index
    %c0_3 = arith.constant 0 : index
    %c0_4 = arith.constant 0 : index
    %4 = vector.load %arg5[%c0_2, %c0_3, %c0_4] : memref<1x1x128xf32, #tpu.memory_space<vmem>>, vector<1x1x128xf32>
    %5 = vector.shape_cast %4 : vector<1x1x128xf32> to vector<1x128xf32>
    %c0_5 = arith.constant 0 : index
    %c0_6 = arith.constant 0 : index
    %c0_7 = arith.constant 0 : index
    %6 = vector.load %arg6[%c0_5, %c0_6, %c0_7] : memref<1x1x128xf32, #tpu.memory_space<vmem>>, vector<1x1x128xf32>
    %7 = vector.shape_cast %6 : vector<1x1x128xf32> to vector<1x128xf32>
    %cst = arith.constant dense<0.000000e+00> : vector<64xf32>
    %8 = vector.multi_reduction <add>, %3, %cst [1] : vector<64x128xf32> to vector<64xf32>
    %9 = vector.shape_cast %8 : vector<64xf32> to vector<64x1xf32>
    %cst_8 = arith.constant 1.280000e+02 : f32
    %10 = vector.broadcast %cst_8 : f32 to vector<64x1xf32>
    %11 = arith.divf %9, %10 : vector<64x1xf32>
    %12 = vector.broadcast %11 : vector<64x1xf32> to vector<64x128xf32>
    %13 = arith.subf %3, %12 : vector<64x128xf32>
    %14 = arith.mulf %13, %13 : vector<64x128xf32>
    %cst_9 = arith.constant dense<0.000000e+00> : vector<64xf32>
    %15 = vector.multi_reduction <add>, %14, %cst_9 [1] : vector<64x128xf32> to vector<64xf32>
    %16 = vector.shape_cast %15 : vector<64xf32> to vector<64x1xf32>
    %cst_10 = arith.constant 1.280000e+02 : f32
    %17 = vector.broadcast %cst_10 : f32 to vector<64x1xf32>
    %18 = arith.divf %16, %17 : vector<64x1xf32>
    %19 = vector.broadcast %11 : vector<64x1xf32> to vector<64x128xf32>
    %20 = arith.subf %3, %19 : vector<64x128xf32>
    %cst_11 = arith.constant 9.99999974E-6 : f32
    %21 = vector.broadcast %cst_11 : f32 to vector<64x1xf32>
    %22 = arith.addf %18, %21 : vector<64x1xf32>
    %23 = math.rsqrt %22 : vector<64x1xf32>
    %24 = vector.broadcast %23 : vector<64x1xf32> to vector<64x128xf32>
    %25 = arith.mulf %20, %24 : vector<64x128xf32>
    %26 = vector.broadcast %5 : vector<1x128xf32> to vector<64x128xf32>
    %27 = arith.mulf %25, %26 : vector<64x128xf32>
    %28 = vector.broadcast %7 : vector<1x128xf32> to vector<64x128xf32>
    %29 = arith.addf %27, %28 : vector<64x128xf32>
    %30 = tpu.iota {dimensions = array<i32: 0>} : vector<64x1xi32>
    %c0_12 = arith.constant 0 : index
    %c15 = arith.constant 15 : index
    %c0_13 = arith.constant 0 : index
    %31 = vector.load %arg7[%c0_12, %c15, %c0_13] : memref<1x31x128xf32, #tpu.memory_space<vmem>>, vector<1x1x128xf32>
    %32 = vector.shape_cast %31 : vector<1x1x128xf32> to vector<1x128xf32>
    %33 = vector.broadcast %32 : vector<1x128xf32> to vector<64x128xf32>
    %34 = arith.mulf %29, %33 : vector<64x128xf32>
    %c15_i32 = arith.constant 15 : i32
    %35 = tpu.dynamic_rotate %29 by %c15_i32 dim 0 : vector<64x128xf32>, i32 -> vector<64x128xf32>
    %c-15_i32 = arith.constant -15 : i32
    %36 = vector.broadcast %c-15_i32 : i32 to vector<64x1xi32>
    %37 = arith.addi %30, %36 : vector<64x1xi32>
    %c0_i32_14 = arith.constant 0 : i32
    %38 = vector.broadcast %c0_i32_14 : i32 to vector<64x1xi32>
    %39 = arith.cmpi sge, %37, %38 : vector<64x1xi32>
    %c-15_i32_15 = arith.constant -15 : i32
    %40 = vector.broadcast %c-15_i32_15 : i32 to vector<64x1xi32>
    %41 = arith.addi %30, %40 : vector<64x1xi32>
    %c64_i32 = arith.constant 64 : i32
    %42 = vector.broadcast %c64_i32 : i32 to vector<64x1xi32>
    %43 = arith.cmpi slt, %41, %42 : vector<64x1xi32>
    %44 = arith.andi %39, %43 : vector<64x1xi1>
    %cst_16 = arith.constant 1.000000e+00 : f32
    %cst_17 = arith.constant 0.000000e+00 : f32
    %45 = vector.broadcast %cst_16 : f32 to vector<64x1xf32>
    %46 = vector.broadcast %cst_17 : f32 to vector<64x1xf32>
    %47 = arith.select %44, %45, %46 : vector<64x1xi1>, vector<64x1xf32>
    %48 = vector.broadcast %47 : vector<64x1xf32> to vector<64x128xf32>
    %49 = arith.mulf %35, %48 : vector<64x128xf32>
    %c0_18 = arith.constant 0 : index
    %c0_19 = arith.constant 0 : index
    %c0_20 = arith.constant 0 : index
    %50 = vector.load %arg7[%c0_18, %c0_19, %c0_20] : memref<1x31x128xf32, #tpu.memory_space<vmem>>, vector<1x1x128xf32>
    %51 = vector.shape_cast %50 : vector<1x1x128xf32> to vector<1x128xf32>
    %52 = vector.broadcast %51 : vector<1x128xf32> to vector<64x128xf32>
    %53 = arith.mulf %49, %52 : vector<64x128xf32>
    %54 = arith.addf %34, %53 : vector<64x128xf32>
    %c14_i32 = arith.constant 14 : i32
    %55 = tpu.dynamic_rotate %29 by %c14_i32 dim 0 : vector<64x128xf32>, i32 -> vector<64x128xf32>
    %c-14_i32 = arith.constant -14 : i32
    %56 = vector.broadcast %c-14_i32 : i32 to vector<64x1xi32>
    %57 = arith.addi %30, %56 : vector<64x1xi32>
    %c0_i32_21 = arith.constant 0 : i32
    %58 = vector.broadcast %c0_i32_21 : i32 to vector<64x1xi32>
    %59 = arith.cmpi sge, %57, %58 : vector<64x1xi32>
    %c-14_i32_22 = arith.constant -14 : i32
    %60 = vector.broadcast %c-14_i32_22 : i32 to vector<64x1xi32>
    %61 = arith.addi %30, %60 : vector<64x1xi32>
    %c64_i32_23 = arith.constant 64 : i32
    %62 = vector.broadcast %c64_i32_23 : i32 to vector<64x1xi32>
    %63 = arith.cmpi slt, %61, %62 : vector<64x1xi32>
    %64 = arith.andi %59, %63 : vector<64x1xi1>
    %cst_24 = arith.constant 1.000000e+00 : f32
    %cst_25 = arith.constant 0.000000e+00 : f32
    %65 = vector.broadcast %cst_24 : f32 to vector<64x1xf32>
    %66 = vector.broadcast %cst_25 : f32 to vector<64x1xf32>
    %67 = arith.select %64, %65, %66 : vector<64x1xi1>, vector<64x1xf32>
    %68 = vector.broadcast %67 : vector<64x1xf32> to vector<64x128xf32>
    %69 = arith.mulf %55, %68 : vector<64x128xf32>
    %c0_26 = arith.constant 0 : index
    %c1 = arith.constant 1 : index
    %c0_27 = arith.constant 0 : index
    %70 = vector.load %arg7[%c0_26, %c1, %c0_27] : memref<1x31x128xf32, #tpu.memory_space<vmem>>, vector<1x1x128xf32>
    %71 = vector.shape_cast %70 : vector<1x1x128xf32> to vector<1x128xf32>
    %72 = vector.broadcast %71 : vector<1x128xf32> to vector<64x128xf32>
    %73 = arith.mulf %69, %72 : vector<64x128xf32>
    %74 = arith.addf %54, %73 : vector<64x128xf32>
    %c13_i32 = arith.constant 13 : i32
    %75 = tpu.dynamic_rotate %29 by %c13_i32 dim 0 : vector<64x128xf32>, i32 -> vector<64x128xf32>
    %c-13_i32 = arith.constant -13 : i32
    %76 = vector.broadcast %c-13_i32 : i32 to vector<64x1xi32>
    %77 = arith.addi %30, %76 : vector<64x1xi32>
    %c0_i32_28 = arith.constant 0 : i32
    %78 = vector.broadcast %c0_i32_28 : i32 to vector<64x1xi32>
    %79 = arith.cmpi sge, %77, %78 : vector<64x1xi32>
    %c-13_i32_29 = arith.constant -13 : i32
    %80 = vector.broadcast %c-13_i32_29 : i32 to vector<64x1xi32>
    %81 = arith.addi %30, %80 : vector<64x1xi32>
    %c64_i32_30 = arith.constant 64 : i32
    %82 = vector.broadcast %c64_i32_30 : i32 to vector<64x1xi32>
    %83 = arith.cmpi slt, %81, %82 : vector<64x1xi32>
    %84 = arith.andi %79, %83 : vector<64x1xi1>
    %cst_31 = arith.constant 1.000000e+00 : f32
    %cst_32 = arith.constant 0.000000e+00 : f32
    %85 = vector.broadcast %cst_31 : f32 to vector<64x1xf32>
    %86 = vector.broadcast %cst_32 : f32 to vector<64x1xf32>
    %87 = arith.select %84, %85, %86 : vector<64x1xi1>, vector<64x1xf32>
    %88 = vector.broadcast %87 : vector<64x1xf32> to vector<64x128xf32>
    %89 = arith.mulf %75, %88 : vector<64x128xf32>
    %c0_33 = arith.constant 0 : index
    %c2 = arith.constant 2 : index
    %c0_34 = arith.constant 0 : index
    %90 = vector.load %arg7[%c0_33, %c2, %c0_34] : memref<1x31x128xf32, #tpu.memory_space<vmem>>, vector<1x1x128xf32>
    %91 = vector.shape_cast %90 : vector<1x1x128xf32> to vector<1x128xf32>
    %92 = vector.broadcast %91 : vector<1x128xf32> to vector<64x128xf32>
    %93 = arith.mulf %89, %92 : vector<64x128xf32>
    %94 = arith.addf %74, %93 : vector<64x128xf32>
    %c12_i32 = arith.constant 12 : i32
    %95 = tpu.dynamic_rotate %29 by %c12_i32 dim 0 : vector<64x128xf32>, i32 -> vector<64x128xf32>
    %c-12_i32 = arith.constant -12 : i32
    %96 = vector.broadcast %c-12_i32 : i32 to vector<64x1xi32>
    %97 = arith.addi %30, %96 : vector<64x1xi32>
    %c0_i32_35 = arith.constant 0 : i32
    %98 = vector.broadcast %c0_i32_35 : i32 to vector<64x1xi32>
    %99 = arith.cmpi sge, %97, %98 : vector<64x1xi32>
    %c-12_i32_36 = arith.constant -12 : i32
    %100 = vector.broadcast %c-12_i32_36 : i32 to vector<64x1xi32>
    %101 = arith.addi %30, %100 : vector<64x1xi32>
    %c64_i32_37 = arith.constant 64 : i32
    %102 = vector.broadcast %c64_i32_37 : i32 to vector<64x1xi32>
    %103 = arith.cmpi slt, %101, %102 : vector<64x1xi32>
    %104 = arith.andi %99, %103 : vector<64x1xi1>
    %cst_38 = arith.constant 1.000000e+00 : f32
    %cst_39 = arith.constant 0.000000e+00 : f32
    %105 = vector.broadcast %cst_38 : f32 to vector<64x1xf32>
    %106 = vector.broadcast %cst_39 : f32 to vector<64x1xf32>
    %107 = arith.select %104, %105, %106 : vector<64x1xi1>, vector<64x1xf32>
    %108 = vector.broadcast %107 : vector<64x1xf32> to vector<64x128xf32>
    %109 = arith.mulf %95, %108 : vector<64x128xf32>
    %c0_40 = arith.constant 0 : index
    %c3 = arith.constant 3 : index
    %c0_41 = arith.constant 0 : index
    %110 = vector.load %arg7[%c0_40, %c3, %c0_41] : memref<1x31x128xf32, #tpu.memory_space<vmem>>, vector<1x1x128xf32>
    %111 = vector.shape_cast %110 : vector<1x1x128xf32> to vector<1x128xf32>
    %112 = vector.broadcast %111 : vector<1x128xf32> to vector<64x128xf32>
    %113 = arith.mulf %109, %112 : vector<64x128xf32>
    %114 = arith.addf %94, %113 : vector<64x128xf32>
    %c11_i32 = arith.constant 11 : i32
    %115 = tpu.dynamic_rotate %29 by %c11_i32 dim 0 : vector<64x128xf32>, i32 -> vector<64x128xf32>
    %c-11_i32 = arith.constant -11 : i32
    %116 = vector.broadcast %c-11_i32 : i32 to vector<64x1xi32>
    %117 = arith.addi %30, %116 : vector<64x1xi32>
    %c0_i32_42 = arith.constant 0 : i32
    %118 = vector.broadcast %c0_i32_42 : i32 to vector<64x1xi32>
    %119 = arith.cmpi sge, %117, %118 : vector<64x1xi32>
    %c-11_i32_43 = arith.constant -11 : i32
    %120 = vector.broadcast %c-11_i32_43 : i32 to vector<64x1xi32>
    %121 = arith.addi %30, %120 : vector<64x1xi32>
    %c64_i32_44 = arith.constant 64 : i32
    %122 = vector.broadcast %c64_i32_44 : i32 to vector<64x1xi32>
    %123 = arith.cmpi slt, %121, %122 : vector<64x1xi32>
    %124 = arith.andi %119, %123 : vector<64x1xi1>
    %cst_45 = arith.constant 1.000000e+00 : f32
    %cst_46 = arith.constant 0.000000e+00 : f32
    %125 = vector.broadcast %cst_45 : f32 to vector<64x1xf32>
    %126 = vector.broadcast %cst_46 : f32 to vector<64x1xf32>
    %127 = arith.select %124, %125, %126 : vector<64x1xi1>, vector<64x1xf32>
    %128 = vector.broadcast %127 : vector<64x1xf32> to vector<64x128xf32>
    %129 = arith.mulf %115, %128 : vector<64x128xf32>
    %c0_47 = arith.constant 0 : index
    %c4 = arith.constant 4 : index
    %c0_48 = arith.constant 0 : index
    %130 = vector.load %arg7[%c0_47, %c4, %c0_48] : memref<1x31x128xf32, #tpu.memory_space<vmem>>, vector<1x1x128xf32>
    %131 = vector.shape_cast %130 : vector<1x1x128xf32> to vector<1x128xf32>
    %132 = vector.broadcast %131 : vector<1x128xf32> to vector<64x128xf32>
    %133 = arith.mulf %129, %132 : vector<64x128xf32>
    %134 = arith.addf %114, %133 : vector<64x128xf32>
    %c10_i32 = arith.constant 10 : i32
    %135 = tpu.dynamic_rotate %29 by %c10_i32 dim 0 : vector<64x128xf32>, i32 -> vector<64x128xf32>
    %c-10_i32 = arith.constant -10 : i32
    %136 = vector.broadcast %c-10_i32 : i32 to vector<64x1xi32>
    %137 = arith.addi %30, %136 : vector<64x1xi32>
    %c0_i32_49 = arith.constant 0 : i32
    %138 = vector.broadcast %c0_i32_49 : i32 to vector<64x1xi32>
    %139 = arith.cmpi sge, %137, %138 : vector<64x1xi32>
    %c-10_i32_50 = arith.constant -10 : i32
    %140 = vector.broadcast %c-10_i32_50 : i32 to vector<64x1xi32>
    %141 = arith.addi %30, %140 : vector<64x1xi32>
    %c64_i32_51 = arith.constant 64 : i32
    %142 = vector.broadcast %c64_i32_51 : i32 to vector<64x1xi32>
    %143 = arith.cmpi slt, %141, %142 : vector<64x1xi32>
    %144 = arith.andi %139, %143 : vector<64x1xi1>
    %cst_52 = arith.constant 1.000000e+00 : f32
    %cst_53 = arith.constant 0.000000e+00 : f32
    %145 = vector.broadcast %cst_52 : f32 to vector<64x1xf32>
    %146 = vector.broadcast %cst_53 : f32 to vector<64x1xf32>
    %147 = arith.select %144, %145, %146 : vector<64x1xi1>, vector<64x1xf32>
    %148 = vector.broadcast %147 : vector<64x1xf32> to vector<64x128xf32>
    %149 = arith.mulf %135, %148 : vector<64x128xf32>
    %c0_54 = arith.constant 0 : index
    %c5 = arith.constant 5 : index
    %c0_55 = arith.constant 0 : index
    %150 = vector.load %arg7[%c0_54, %c5, %c0_55] : memref<1x31x128xf32, #tpu.memory_space<vmem>>, vector<1x1x128xf32>
    %151 = vector.shape_cast %150 : vector<1x1x128xf32> to vector<1x128xf32>
    %152 = vector.broadcast %151 : vector<1x128xf32> to vector<64x128xf32>
    %153 = arith.mulf %149, %152 : vector<64x128xf32>
    %154 = arith.addf %134, %153 : vector<64x128xf32>
    %c9_i32 = arith.constant 9 : i32
    %155 = tpu.dynamic_rotate %29 by %c9_i32 dim 0 : vector<64x128xf32>, i32 -> vector<64x128xf32>
    %c-9_i32 = arith.constant -9 : i32
    %156 = vector.broadcast %c-9_i32 : i32 to vector<64x1xi32>
    %157 = arith.addi %30, %156 : vector<64x1xi32>
    %c0_i32_56 = arith.constant 0 : i32
    %158 = vector.broadcast %c0_i32_56 : i32 to vector<64x1xi32>
    %159 = arith.cmpi sge, %157, %158 : vector<64x1xi32>
    %c-9_i32_57 = arith.constant -9 : i32
    %160 = vector.broadcast %c-9_i32_57 : i32 to vector<64x1xi32>
    %161 = arith.addi %30, %160 : vector<64x1xi32>
    %c64_i32_58 = arith.constant 64 : i32
    %162 = vector.broadcast %c64_i32_58 : i32 to vector<64x1xi32>
    %163 = arith.cmpi slt, %161, %162 : vector<64x1xi32>
    %164 = arith.andi %159, %163 : vector<64x1xi1>
    %cst_59 = arith.constant 1.000000e+00 : f32
    %cst_60 = arith.constant 0.000000e+00 : f32
    %165 = vector.broadcast %cst_59 : f32 to vector<64x1xf32>
    %166 = vector.broadcast %cst_60 : f32 to vector<64x1xf32>
    %167 = arith.select %164, %165, %166 : vector<64x1xi1>, vector<64x1xf32>
    %168 = vector.broadcast %167 : vector<64x1xf32> to vector<64x128xf32>
    %169 = arith.mulf %155, %168 : vector<64x128xf32>
    %c0_61 = arith.constant 0 : index
    %c6 = arith.constant 6 : index
    %c0_62 = arith.constant 0 : index
    %170 = vector.load %arg7[%c0_61, %c6, %c0_62] : memref<1x31x128xf32, #tpu.memory_space<vmem>>, vector<1x1x128xf32>
    %171 = vector.shape_cast %170 : vector<1x1x128xf32> to vector<1x128xf32>
    %172 = vector.broadcast %171 : vector<1x128xf32> to vector<64x128xf32>
    %173 = arith.mulf %169, %172 : vector<64x128xf32>
    %174 = arith.addf %154, %173 : vector<64x128xf32>
    %c8_i32 = arith.constant 8 : i32
    %175 = tpu.dynamic_rotate %29 by %c8_i32 dim 0 : vector<64x128xf32>, i32 -> vector<64x128xf32>
    %c-8_i32 = arith.constant -8 : i32
    %176 = vector.broadcast %c-8_i32 : i32 to vector<64x1xi32>
    %177 = arith.addi %30, %176 : vector<64x1xi32>
    %c0_i32_63 = arith.constant 0 : i32
    %178 = vector.broadcast %c0_i32_63 : i32 to vector<64x1xi32>
    %179 = arith.cmpi sge, %177, %178 : vector<64x1xi32>
    %c-8_i32_64 = arith.constant -8 : i32
    %180 = vector.broadcast %c-8_i32_64 : i32 to vector<64x1xi32>
    %181 = arith.addi %30, %180 : vector<64x1xi32>
    %c64_i32_65 = arith.constant 64 : i32
    %182 = vector.broadcast %c64_i32_65 : i32 to vector<64x1xi32>
    %183 = arith.cmpi slt, %181, %182 : vector<64x1xi32>
    %184 = arith.andi %179, %183 : vector<64x1xi1>
    %cst_66 = arith.constant 1.000000e+00 : f32
    %cst_67 = arith.constant 0.000000e+00 : f32
    %185 = vector.broadcast %cst_66 : f32 to vector<64x1xf32>
    %186 = vector.broadcast %cst_67 : f32 to vector<64x1xf32>
    %187 = arith.select %184, %185, %186 : vector<64x1xi1>, vector<64x1xf32>
    %188 = vector.broadcast %187 : vector<64x1xf32> to vector<64x128xf32>
    %189 = arith.mulf %175, %188 : vector<64x128xf32>
    %c0_68 = arith.constant 0 : index
    %c7 = arith.constant 7 : index
    %c0_69 = arith.constant 0 : index
    %190 = vector.load %arg7[%c0_68, %c7, %c0_69] : memref<1x31x128xf32, #tpu.memory_space<vmem>>, vector<1x1x128xf32>
    %191 = vector.shape_cast %190 : vector<1x1x128xf32> to vector<1x128xf32>
    %192 = vector.broadcast %191 : vector<1x128xf32> to vector<64x128xf32>
    %193 = arith.mulf %189, %192 : vector<64x128xf32>
    %194 = arith.addf %174, %193 : vector<64x128xf32>
    %c7_i32 = arith.constant 7 : i32
    %195 = tpu.dynamic_rotate %29 by %c7_i32 dim 0 : vector<64x128xf32>, i32 -> vector<64x128xf32>
    %c-7_i32 = arith.constant -7 : i32
    %196 = vector.broadcast %c-7_i32 : i32 to vector<64x1xi32>
    %197 = arith.addi %30, %196 : vector<64x1xi32>
    %c0_i32_70 = arith.constant 0 : i32
    %198 = vector.broadcast %c0_i32_70 : i32 to vector<64x1xi32>
    %199 = arith.cmpi sge, %197, %198 : vector<64x1xi32>
    %c-7_i32_71 = arith.constant -7 : i32
    %200 = vector.broadcast %c-7_i32_71 : i32 to vector<64x1xi32>
    %201 = arith.addi %30, %200 : vector<64x1xi32>
    %c64_i32_72 = arith.constant 64 : i32
    %202 = vector.broadcast %c64_i32_72 : i32 to vector<64x1xi32>
    %203 = arith.cmpi slt, %201, %202 : vector<64x1xi32>
    %204 = arith.andi %199, %203 : vector<64x1xi1>
    %cst_73 = arith.constant 1.000000e+00 : f32
    %cst_74 = arith.constant 0.000000e+00 : f32
    %205 = vector.broadcast %cst_73 : f32 to vector<64x1xf32>
    %206 = vector.broadcast %cst_74 : f32 to vector<64x1xf32>
    %207 = arith.select %204, %205, %206 : vector<64x1xi1>, vector<64x1xf32>
    %208 = vector.broadcast %207 : vector<64x1xf32> to vector<64x128xf32>
    %209 = arith.mulf %195, %208 : vector<64x128xf32>
    %c0_75 = arith.constant 0 : index
    %c8 = arith.constant 8 : index
    %c0_76 = arith.constant 0 : index
    %210 = vector.load %arg7[%c0_75, %c8, %c0_76] : memref<1x31x128xf32, #tpu.memory_space<vmem>>, vector<1x1x128xf32>
    %211 = vector.shape_cast %210 : vector<1x1x128xf32> to vector<1x128xf32>
    %212 = vector.broadcast %211 : vector<1x128xf32> to vector<64x128xf32>
    %213 = arith.mulf %209, %212 : vector<64x128xf32>
    %214 = arith.addf %194, %213 : vector<64x128xf32>
    %c6_i32 = arith.constant 6 : i32
    %215 = tpu.dynamic_rotate %29 by %c6_i32 dim 0 : vector<64x128xf32>, i32 -> vector<64x128xf32>
    %c-6_i32 = arith.constant -6 : i32
    %216 = vector.broadcast %c-6_i32 : i32 to vector<64x1xi32>
    %217 = arith.addi %30, %216 : vector<64x1xi32>
    %c0_i32_77 = arith.constant 0 : i32
    %218 = vector.broadcast %c0_i32_77 : i32 to vector<64x1xi32>
    %219 = arith.cmpi sge, %217, %218 : vector<64x1xi32>
    %c-6_i32_78 = arith.constant -6 : i32
    %220 = vector.broadcast %c-6_i32_78 : i32 to vector<64x1xi32>
    %221 = arith.addi %30, %220 : vector<64x1xi32>
    %c64_i32_79 = arith.constant 64 : i32
    %222 = vector.broadcast %c64_i32_79 : i32 to vector<64x1xi32>
    %223 = arith.cmpi slt, %221, %222 : vector<64x1xi32>
    %224 = arith.andi %219, %223 : vector<64x1xi1>
    %cst_80 = arith.constant 1.000000e+00 : f32
    %cst_81 = arith.constant 0.000000e+00 : f32
    %225 = vector.broadcast %cst_80 : f32 to vector<64x1xf32>
    %226 = vector.broadcast %cst_81 : f32 to vector<64x1xf32>
    %227 = arith.select %224, %225, %226 : vector<64x1xi1>, vector<64x1xf32>
    %228 = vector.broadcast %227 : vector<64x1xf32> to vector<64x128xf32>
    %229 = arith.mulf %215, %228 : vector<64x128xf32>
    %c0_82 = arith.constant 0 : index
    %c9 = arith.constant 9 : index
    %c0_83 = arith.constant 0 : index
    %230 = vector.load %arg7[%c0_82, %c9, %c0_83] : memref<1x31x128xf32, #tpu.memory_space<vmem>>, vector<1x1x128xf32>
    %231 = vector.shape_cast %230 : vector<1x1x128xf32> to vector<1x128xf32>
    %232 = vector.broadcast %231 : vector<1x128xf32> to vector<64x128xf32>
    %233 = arith.mulf %229, %232 : vector<64x128xf32>
    %234 = arith.addf %214, %233 : vector<64x128xf32>
    %c5_i32 = arith.constant 5 : i32
    %235 = tpu.dynamic_rotate %29 by %c5_i32 dim 0 : vector<64x128xf32>, i32 -> vector<64x128xf32>
    %c-5_i32 = arith.constant -5 : i32
    %236 = vector.broadcast %c-5_i32 : i32 to vector<64x1xi32>
    %237 = arith.addi %30, %236 : vector<64x1xi32>
    %c0_i32_84 = arith.constant 0 : i32
    %238 = vector.broadcast %c0_i32_84 : i32 to vector<64x1xi32>
    %239 = arith.cmpi sge, %237, %238 : vector<64x1xi32>
    %c-5_i32_85 = arith.constant -5 : i32
    %240 = vector.broadcast %c-5_i32_85 : i32 to vector<64x1xi32>
    %241 = arith.addi %30, %240 : vector<64x1xi32>
    %c64_i32_86 = arith.constant 64 : i32
    %242 = vector.broadcast %c64_i32_86 : i32 to vector<64x1xi32>
    %243 = arith.cmpi slt, %241, %242 : vector<64x1xi32>
    %244 = arith.andi %239, %243 : vector<64x1xi1>
    %cst_87 = arith.constant 1.000000e+00 : f32
    %cst_88 = arith.constant 0.000000e+00 : f32
    %245 = vector.broadcast %cst_87 : f32 to vector<64x1xf32>
    %246 = vector.broadcast %cst_88 : f32 to vector<64x1xf32>
    %247 = arith.select %244, %245, %246 : vector<64x1xi1>, vector<64x1xf32>
    %248 = vector.broadcast %247 : vector<64x1xf32> to vector<64x128xf32>
    %249 = arith.mulf %235, %248 : vector<64x128xf32>
    %c0_89 = arith.constant 0 : index
    %c10 = arith.constant 10 : index
    %c0_90 = arith.constant 0 : index
    %250 = vector.load %arg7[%c0_89, %c10, %c0_90] : memref<1x31x128xf32, #tpu.memory_space<vmem>>, vector<1x1x128xf32>
    %251 = vector.shape_cast %250 : vector<1x1x128xf32> to vector<1x128xf32>
    %252 = vector.broadcast %251 : vector<1x128xf32> to vector<64x128xf32>
    %253 = arith.mulf %249, %252 : vector<64x128xf32>
    %254 = arith.addf %234, %253 : vector<64x128xf32>
    %c4_i32 = arith.constant 4 : i32
    %255 = tpu.dynamic_rotate %29 by %c4_i32 dim 0 : vector<64x128xf32>, i32 -> vector<64x128xf32>
    %c-4_i32 = arith.constant -4 : i32
    %256 = vector.broadcast %c-4_i32 : i32 to vector<64x1xi32>
    %257 = arith.addi %30, %256 : vector<64x1xi32>
    %c0_i32_91 = arith.constant 0 : i32
    %258 = vector.broadcast %c0_i32_91 : i32 to vector<64x1xi32>
    %259 = arith.cmpi sge, %257, %258 : vector<64x1xi32>
    %c-4_i32_92 = arith.constant -4 : i32
    %260 = vector.broadcast %c-4_i32_92 : i32 to vector<64x1xi32>
    %261 = arith.addi %30, %260 : vector<64x1xi32>
    %c64_i32_93 = arith.constant 64 : i32
    %262 = vector.broadcast %c64_i32_93 : i32 to vector<64x1xi32>
    %263 = arith.cmpi slt, %261, %262 : vector<64x1xi32>
    %264 = arith.andi %259, %263 : vector<64x1xi1>
    %cst_94 = arith.constant 1.000000e+00 : f32
    %cst_95 = arith.constant 0.000000e+00 : f32
    %265 = vector.broadcast %cst_94 : f32 to vector<64x1xf32>
    %266 = vector.broadcast %cst_95 : f32 to vector<64x1xf32>
    %267 = arith.select %264, %265, %266 : vector<64x1xi1>, vector<64x1xf32>
    %268 = vector.broadcast %267 : vector<64x1xf32> to vector<64x128xf32>
    %269 = arith.mulf %255, %268 : vector<64x128xf32>
    %c0_96 = arith.constant 0 : index
    %c11 = arith.constant 11 : index
    %c0_97 = arith.constant 0 : index
    %270 = vector.load %arg7[%c0_96, %c11, %c0_97] : memref<1x31x128xf32, #tpu.memory_space<vmem>>, vector<1x1x128xf32>
    %271 = vector.shape_cast %270 : vector<1x1x128xf32> to vector<1x128xf32>
    %272 = vector.broadcast %271 : vector<1x128xf32> to vector<64x128xf32>
    %273 = arith.mulf %269, %272 : vector<64x128xf32>
    %274 = arith.addf %254, %273 : vector<64x128xf32>
    %c3_i32 = arith.constant 3 : i32
    %275 = tpu.dynamic_rotate %29 by %c3_i32 dim 0 : vector<64x128xf32>, i32 -> vector<64x128xf32>
    %c-3_i32 = arith.constant -3 : i32
    %276 = vector.broadcast %c-3_i32 : i32 to vector<64x1xi32>
    %277 = arith.addi %30, %276 : vector<64x1xi32>
    %c0_i32_98 = arith.constant 0 : i32
    %278 = vector.broadcast %c0_i32_98 : i32 to vector<64x1xi32>
    %279 = arith.cmpi sge, %277, %278 : vector<64x1xi32>
    %c-3_i32_99 = arith.constant -3 : i32
    %280 = vector.broadcast %c-3_i32_99 : i32 to vector<64x1xi32>
    %281 = arith.addi %30, %280 : vector<64x1xi32>
    %c64_i32_100 = arith.constant 64 : i32
    %282 = vector.broadcast %c64_i32_100 : i32 to vector<64x1xi32>
    %283 = arith.cmpi slt, %281, %282 : vector<64x1xi32>
    %284 = arith.andi %279, %283 : vector<64x1xi1>
    %cst_101 = arith.constant 1.000000e+00 : f32
    %cst_102 = arith.constant 0.000000e+00 : f32
    %285 = vector.broadcast %cst_101 : f32 to vector<64x1xf32>
    %286 = vector.broadcast %cst_102 : f32 to vector<64x1xf32>
    %287 = arith.select %284, %285, %286 : vector<64x1xi1>, vector<64x1xf32>
    %288 = vector.broadcast %287 : vector<64x1xf32> to vector<64x128xf32>
    %289 = arith.mulf %275, %288 : vector<64x128xf32>
    %c0_103 = arith.constant 0 : index
    %c12 = arith.constant 12 : index
    %c0_104 = arith.constant 0 : index
    %290 = vector.load %arg7[%c0_103, %c12, %c0_104] : memref<1x31x128xf32, #tpu.memory_space<vmem>>, vector<1x1x128xf32>
    %291 = vector.shape_cast %290 : vector<1x1x128xf32> to vector<1x128xf32>
    %292 = vector.broadcast %291 : vector<1x128xf32> to vector<64x128xf32>
    %293 = arith.mulf %289, %292 : vector<64x128xf32>
    %294 = arith.addf %274, %293 : vector<64x128xf32>
    %c2_i32 = arith.constant 2 : i32
    %295 = tpu.dynamic_rotate %29 by %c2_i32 dim 0 : vector<64x128xf32>, i32 -> vector<64x128xf32>
    %c-2_i32 = arith.constant -2 : i32
    %296 = vector.broadcast %c-2_i32 : i32 to vector<64x1xi32>
    %297 = arith.addi %30, %296 : vector<64x1xi32>
    %c0_i32_105 = arith.constant 0 : i32
    %298 = vector.broadcast %c0_i32_105 : i32 to vector<64x1xi32>
    %299 = arith.cmpi sge, %297, %298 : vector<64x1xi32>
    %c-2_i32_106 = arith.constant -2 : i32
    %300 = vector.broadcast %c-2_i32_106 : i32 to vector<64x1xi32>
    %301 = arith.addi %30, %300 : vector<64x1xi32>
    %c64_i32_107 = arith.constant 64 : i32
    %302 = vector.broadcast %c64_i32_107 : i32 to vector<64x1xi32>
    %303 = arith.cmpi slt, %301, %302 : vector<64x1xi32>
    %304 = arith.andi %299, %303 : vector<64x1xi1>
    %cst_108 = arith.constant 1.000000e+00 : f32
    %cst_109 = arith.constant 0.000000e+00 : f32
    %305 = vector.broadcast %cst_108 : f32 to vector<64x1xf32>
    %306 = vector.broadcast %cst_109 : f32 to vector<64x1xf32>
    %307 = arith.select %304, %305, %306 : vector<64x1xi1>, vector<64x1xf32>
    %308 = vector.broadcast %307 : vector<64x1xf32> to vector<64x128xf32>
    %309 = arith.mulf %295, %308 : vector<64x128xf32>
    %c0_110 = arith.constant 0 : index
    %c13 = arith.constant 13 : index
    %c0_111 = arith.constant 0 : index
    %310 = vector.load %arg7[%c0_110, %c13, %c0_111] : memref<1x31x128xf32, #tpu.memory_space<vmem>>, vector<1x1x128xf32>
    %311 = vector.shape_cast %310 : vector<1x1x128xf32> to vector<1x128xf32>
    %312 = vector.broadcast %311 : vector<1x128xf32> to vector<64x128xf32>
    %313 = arith.mulf %309, %312 : vector<64x128xf32>
    %314 = arith.addf %294, %313 : vector<64x128xf32>
    %c1_i32 = arith.constant 1 : i32
    %315 = tpu.dynamic_rotate %29 by %c1_i32 dim 0 : vector<64x128xf32>, i32 -> vector<64x128xf32>
    %c-1_i32 = arith.constant -1 : i32
    %316 = vector.broadcast %c-1_i32 : i32 to vector<64x1xi32>
    %317 = arith.addi %30, %316 : vector<64x1xi32>
    %c0_i32_112 = arith.constant 0 : i32
    %318 = vector.broadcast %c0_i32_112 : i32 to vector<64x1xi32>
    %319 = arith.cmpi sge, %317, %318 : vector<64x1xi32>
    %c-1_i32_113 = arith.constant -1 : i32
    %320 = vector.broadcast %c-1_i32_113 : i32 to vector<64x1xi32>
    %321 = arith.addi %30, %320 : vector<64x1xi32>
    %c64_i32_114 = arith.constant 64 : i32
    %322 = vector.broadcast %c64_i32_114 : i32 to vector<64x1xi32>
    %323 = arith.cmpi slt, %321, %322 : vector<64x1xi32>
    %324 = arith.andi %319, %323 : vector<64x1xi1>
    %cst_115 = arith.constant 1.000000e+00 : f32
    %cst_116 = arith.constant 0.000000e+00 : f32
    %325 = vector.broadcast %cst_115 : f32 to vector<64x1xf32>
    %326 = vector.broadcast %cst_116 : f32 to vector<64x1xf32>
    %327 = arith.select %324, %325, %326 : vector<64x1xi1>, vector<64x1xf32>
    %328 = vector.broadcast %327 : vector<64x1xf32> to vector<64x128xf32>
    %329 = arith.mulf %315, %328 : vector<64x128xf32>
    %c0_117 = arith.constant 0 : index
    %c14 = arith.constant 14 : index
    %c0_118 = arith.constant 0 : index
    %330 = vector.load %arg7[%c0_117, %c14, %c0_118] : memref<1x31x128xf32, #tpu.memory_space<vmem>>, vector<1x1x128xf32>
    %331 = vector.shape_cast %330 : vector<1x1x128xf32> to vector<1x128xf32>
    %332 = vector.broadcast %331 : vector<1x128xf32> to vector<64x128xf32>
    %333 = arith.mulf %329, %332 : vector<64x128xf32>
    %334 = arith.addf %314, %333 : vector<64x128xf32>
    %c63_i32 = arith.constant 63 : i32
    %335 = tpu.dynamic_rotate %29 by %c63_i32 dim 0 : vector<64x128xf32>, i32 -> vector<64x128xf32>
    %c1_i32_119 = arith.constant 1 : i32
    %336 = vector.broadcast %c1_i32_119 : i32 to vector<64x1xi32>
    %337 = arith.addi %30, %336 : vector<64x1xi32>
    %c0_i32_120 = arith.constant 0 : i32
    %338 = vector.broadcast %c0_i32_120 : i32 to vector<64x1xi32>
    %339 = arith.cmpi sge, %337, %338 : vector<64x1xi32>
    %c1_i32_121 = arith.constant 1 : i32
    %340 = vector.broadcast %c1_i32_121 : i32 to vector<64x1xi32>
    %341 = arith.addi %30, %340 : vector<64x1xi32>
    %c64_i32_122 = arith.constant 64 : i32
    %342 = vector.broadcast %c64_i32_122 : i32 to vector<64x1xi32>
    %343 = arith.cmpi slt, %341, %342 : vector<64x1xi32>
    %344 = arith.andi %339, %343 : vector<64x1xi1>
    %cst_123 = arith.constant 1.000000e+00 : f32
    %cst_124 = arith.constant 0.000000e+00 : f32
    %345 = vector.broadcast %cst_123 : f32 to vector<64x1xf32>
    %346 = vector.broadcast %cst_124 : f32 to vector<64x1xf32>
    %347 = arith.select %344, %345, %346 : vector<64x1xi1>, vector<64x1xf32>
    %348 = vector.broadcast %347 : vector<64x1xf32> to vector<64x128xf32>
    %349 = arith.mulf %335, %348 : vector<64x128xf32>
    %c0_125 = arith.constant 0 : index
    %c16 = arith.constant 16 : index
    %c0_126 = arith.constant 0 : index
    %350 = vector.load %arg7[%c0_125, %c16, %c0_126] : memref<1x31x128xf32, #tpu.memory_space<vmem>>, vector<1x1x128xf32>
    %351 = vector.shape_cast %350 : vector<1x1x128xf32> to vector<1x128xf32>
    %352 = vector.broadcast %351 : vector<1x128xf32> to vector<64x128xf32>
    %353 = arith.mulf %349, %352 : vector<64x128xf32>
    %354 = arith.addf %334, %353 : vector<64x128xf32>
    %c62_i32 = arith.constant 62 : i32
    %355 = tpu.dynamic_rotate %29 by %c62_i32 dim 0 : vector<64x128xf32>, i32 -> vector<64x128xf32>
    %c2_i32_127 = arith.constant 2 : i32
    %356 = vector.broadcast %c2_i32_127 : i32 to vector<64x1xi32>
    %357 = arith.addi %30, %356 : vector<64x1xi32>
    %c0_i32_128 = arith.constant 0 : i32
    %358 = vector.broadcast %c0_i32_128 : i32 to vector<64x1xi32>
    %359 = arith.cmpi sge, %357, %358 : vector<64x1xi32>
    %c2_i32_129 = arith.constant 2 : i32
    %360 = vector.broadcast %c2_i32_129 : i32 to vector<64x1xi32>
    %361 = arith.addi %30, %360 : vector<64x1xi32>
    %c64_i32_130 = arith.constant 64 : i32
    %362 = vector.broadcast %c64_i32_130 : i32 to vector<64x1xi32>
    %363 = arith.cmpi slt, %361, %362 : vector<64x1xi32>
    %364 = arith.andi %359, %363 : vector<64x1xi1>
    %cst_131 = arith.constant 1.000000e+00 : f32
    %cst_132 = arith.constant 0.000000e+00 : f32
    %365 = vector.broadcast %cst_131 : f32 to vector<64x1xf32>
    %366 = vector.broadcast %cst_132 : f32 to vector<64x1xf32>
    %367 = arith.select %364, %365, %366 : vector<64x1xi1>, vector<64x1xf32>
    %368 = vector.broadcast %367 : vector<64x1xf32> to vector<64x128xf32>
    %369 = arith.mulf %355, %368 : vector<64x128xf32>
    %c0_133 = arith.constant 0 : index
    %c17 = arith.constant 17 : index
    %c0_134 = arith.constant 0 : index
    %370 = vector.load %arg7[%c0_133, %c17, %c0_134] : memref<1x31x128xf32, #tpu.memory_space<vmem>>, vector<1x1x128xf32>
    %371 = vector.shape_cast %370 : vector<1x1x128xf32> to vector<1x128xf32>
    %372 = vector.broadcast %371 : vector<1x128xf32> to vector<64x128xf32>
    %373 = arith.mulf %369, %372 : vector<64x128xf32>
    %374 = arith.addf %354, %373 : vector<64x128xf32>
    %c61_i32 = arith.constant 61 : i32
    %375 = tpu.dynamic_rotate %29 by %c61_i32 dim 0 : vector<64x128xf32>, i32 -> vector<64x128xf32>
    %c3_i32_135 = arith.constant 3 : i32
    %376 = vector.broadcast %c3_i32_135 : i32 to vector<64x1xi32>
    %377 = arith.addi %30, %376 : vector<64x1xi32>
    %c0_i32_136 = arith.constant 0 : i32
    %378 = vector.broadcast %c0_i32_136 : i32 to vector<64x1xi32>
    %379 = arith.cmpi sge, %377, %378 : vector<64x1xi32>
    %c3_i32_137 = arith.constant 3 : i32
    %380 = vector.broadcast %c3_i32_137 : i32 to vector<64x1xi32>
    %381 = arith.addi %30, %380 : vector<64x1xi32>
    %c64_i32_138 = arith.constant 64 : i32
    %382 = vector.broadcast %c64_i32_138 : i32 to vector<64x1xi32>
    %383 = arith.cmpi slt, %381, %382 : vector<64x1xi32>
    %384 = arith.andi %379, %383 : vector<64x1xi1>
    %cst_139 = arith.constant 1.000000e+00 : f32
    %cst_140 = arith.constant 0.000000e+00 : f32
    %385 = vector.broadcast %cst_139 : f32 to vector<64x1xf32>
    %386 = vector.broadcast %cst_140 : f32 to vector<64x1xf32>
    %387 = arith.select %384, %385, %386 : vector<64x1xi1>, vector<64x1xf32>
    %388 = vector.broadcast %387 : vector<64x1xf32> to vector<64x128xf32>
    %389 = arith.mulf %375, %388 : vector<64x128xf32>
    %c0_141 = arith.constant 0 : index
    %c18 = arith.constant 18 : index
    %c0_142 = arith.constant 0 : index
    %390 = vector.load %arg7[%c0_141, %c18, %c0_142] : memref<1x31x128xf32, #tpu.memory_space<vmem>>, vector<1x1x128xf32>
    %391 = vector.shape_cast %390 : vector<1x1x128xf32> to vector<1x128xf32>
    %392 = vector.broadcast %391 : vector<1x128xf32> to vector<64x128xf32>
    %393 = arith.mulf %389, %392 : vector<64x128xf32>
    %394 = arith.addf %374, %393 : vector<64x128xf32>
    %c60_i32 = arith.constant 60 : i32
    %395 = tpu.dynamic_rotate %29 by %c60_i32 dim 0 : vector<64x128xf32>, i32 -> vector<64x128xf32>
    %c4_i32_143 = arith.constant 4 : i32
    %396 = vector.broadcast %c4_i32_143 : i32 to vector<64x1xi32>
    %397 = arith.addi %30, %396 : vector<64x1xi32>
    %c0_i32_144 = arith.constant 0 : i32
    %398 = vector.broadcast %c0_i32_144 : i32 to vector<64x1xi32>
    %399 = arith.cmpi sge, %397, %398 : vector<64x1xi32>
    %c4_i32_145 = arith.constant 4 : i32
    %400 = vector.broadcast %c4_i32_145 : i32 to vector<64x1xi32>
    %401 = arith.addi %30, %400 : vector<64x1xi32>
    %c64_i32_146 = arith.constant 64 : i32
    %402 = vector.broadcast %c64_i32_146 : i32 to vector<64x1xi32>
    %403 = arith.cmpi slt, %401, %402 : vector<64x1xi32>
    %404 = arith.andi %399, %403 : vector<64x1xi1>
    %cst_147 = arith.constant 1.000000e+00 : f32
    %cst_148 = arith.constant 0.000000e+00 : f32
    %405 = vector.broadcast %cst_147 : f32 to vector<64x1xf32>
    %406 = vector.broadcast %cst_148 : f32 to vector<64x1xf32>
    %407 = arith.select %404, %405, %406 : vector<64x1xi1>, vector<64x1xf32>
    %408 = vector.broadcast %407 : vector<64x1xf32> to vector<64x128xf32>
    %409 = arith.mulf %395, %408 : vector<64x128xf32>
    %c0_149 = arith.constant 0 : index
    %c19 = arith.constant 19 : index
    %c0_150 = arith.constant 0 : index
    %410 = vector.load %arg7[%c0_149, %c19, %c0_150] : memref<1x31x128xf32, #tpu.memory_space<vmem>>, vector<1x1x128xf32>
    %411 = vector.shape_cast %410 : vector<1x1x128xf32> to vector<1x128xf32>
    %412 = vector.broadcast %411 : vector<1x128xf32> to vector<64x128xf32>
    %413 = arith.mulf %409, %412 : vector<64x128xf32>
    %414 = arith.addf %394, %413 : vector<64x128xf32>
    %c59_i32 = arith.constant 59 : i32
    %415 = tpu.dynamic_rotate %29 by %c59_i32 dim 0 : vector<64x128xf32>, i32 -> vector<64x128xf32>
    %c5_i32_151 = arith.constant 5 : i32
    %416 = vector.broadcast %c5_i32_151 : i32 to vector<64x1xi32>
    %417 = arith.addi %30, %416 : vector<64x1xi32>
    %c0_i32_152 = arith.constant 0 : i32
    %418 = vector.broadcast %c0_i32_152 : i32 to vector<64x1xi32>
    %419 = arith.cmpi sge, %417, %418 : vector<64x1xi32>
    %c5_i32_153 = arith.constant 5 : i32
    %420 = vector.broadcast %c5_i32_153 : i32 to vector<64x1xi32>
    %421 = arith.addi %30, %420 : vector<64x1xi32>
    %c64_i32_154 = arith.constant 64 : i32
    %422 = vector.broadcast %c64_i32_154 : i32 to vector<64x1xi32>
    %423 = arith.cmpi slt, %421, %422 : vector<64x1xi32>
    %424 = arith.andi %419, %423 : vector<64x1xi1>
    %cst_155 = arith.constant 1.000000e+00 : f32
    %cst_156 = arith.constant 0.000000e+00 : f32
    %425 = vector.broadcast %cst_155 : f32 to vector<64x1xf32>
    %426 = vector.broadcast %cst_156 : f32 to vector<64x1xf32>
    %427 = arith.select %424, %425, %426 : vector<64x1xi1>, vector<64x1xf32>
    %428 = vector.broadcast %427 : vector<64x1xf32> to vector<64x128xf32>
    %429 = arith.mulf %415, %428 : vector<64x128xf32>
    %c0_157 = arith.constant 0 : index
    %c20 = arith.constant 20 : index
    %c0_158 = arith.constant 0 : index
    %430 = vector.load %arg7[%c0_157, %c20, %c0_158] : memref<1x31x128xf32, #tpu.memory_space<vmem>>, vector<1x1x128xf32>
    %431 = vector.shape_cast %430 : vector<1x1x128xf32> to vector<1x128xf32>
    %432 = vector.broadcast %431 : vector<1x128xf32> to vector<64x128xf32>
    %433 = arith.mulf %429, %432 : vector<64x128xf32>
    %434 = arith.addf %414, %433 : vector<64x128xf32>
    %c58_i32 = arith.constant 58 : i32
    %435 = tpu.dynamic_rotate %29 by %c58_i32 dim 0 : vector<64x128xf32>, i32 -> vector<64x128xf32>
    %c6_i32_159 = arith.constant 6 : i32
    %436 = vector.broadcast %c6_i32_159 : i32 to vector<64x1xi32>
    %437 = arith.addi %30, %436 : vector<64x1xi32>
    %c0_i32_160 = arith.constant 0 : i32
    %438 = vector.broadcast %c0_i32_160 : i32 to vector<64x1xi32>
    %439 = arith.cmpi sge, %437, %438 : vector<64x1xi32>
    %c6_i32_161 = arith.constant 6 : i32
    %440 = vector.broadcast %c6_i32_161 : i32 to vector<64x1xi32>
    %441 = arith.addi %30, %440 : vector<64x1xi32>
    %c64_i32_162 = arith.constant 64 : i32
    %442 = vector.broadcast %c64_i32_162 : i32 to vector<64x1xi32>
    %443 = arith.cmpi slt, %441, %442 : vector<64x1xi32>
    %444 = arith.andi %439, %443 : vector<64x1xi1>
    %cst_163 = arith.constant 1.000000e+00 : f32
    %cst_164 = arith.constant 0.000000e+00 : f32
    %445 = vector.broadcast %cst_163 : f32 to vector<64x1xf32>
    %446 = vector.broadcast %cst_164 : f32 to vector<64x1xf32>
    %447 = arith.select %444, %445, %446 : vector<64x1xi1>, vector<64x1xf32>
    %448 = vector.broadcast %447 : vector<64x1xf32> to vector<64x128xf32>
    %449 = arith.mulf %435, %448 : vector<64x128xf32>
    %c0_165 = arith.constant 0 : index
    %c21 = arith.constant 21 : index
    %c0_166 = arith.constant 0 : index
    %450 = vector.load %arg7[%c0_165, %c21, %c0_166] : memref<1x31x128xf32, #tpu.memory_space<vmem>>, vector<1x1x128xf32>
    %451 = vector.shape_cast %450 : vector<1x1x128xf32> to vector<1x128xf32>
    %452 = vector.broadcast %451 : vector<1x128xf32> to vector<64x128xf32>
    %453 = arith.mulf %449, %452 : vector<64x128xf32>
    %454 = arith.addf %434, %453 : vector<64x128xf32>
    %c57_i32 = arith.constant 57 : i32
    %455 = tpu.dynamic_rotate %29 by %c57_i32 dim 0 : vector<64x128xf32>, i32 -> vector<64x128xf32>
    %c7_i32_167 = arith.constant 7 : i32
    %456 = vector.broadcast %c7_i32_167 : i32 to vector<64x1xi32>
    %457 = arith.addi %30, %456 : vector<64x1xi32>
    %c0_i32_168 = arith.constant 0 : i32
    %458 = vector.broadcast %c0_i32_168 : i32 to vector<64x1xi32>
    %459 = arith.cmpi sge, %457, %458 : vector<64x1xi32>
    %c7_i32_169 = arith.constant 7 : i32
    %460 = vector.broadcast %c7_i32_169 : i32 to vector<64x1xi32>
    %461 = arith.addi %30, %460 : vector<64x1xi32>
    %c64_i32_170 = arith.constant 64 : i32
    %462 = vector.broadcast %c64_i32_170 : i32 to vector<64x1xi32>
    %463 = arith.cmpi slt, %461, %462 : vector<64x1xi32>
    %464 = arith.andi %459, %463 : vector<64x1xi1>
    %cst_171 = arith.constant 1.000000e+00 : f32
    %cst_172 = arith.constant 0.000000e+00 : f32
    %465 = vector.broadcast %cst_171 : f32 to vector<64x1xf32>
    %466 = vector.broadcast %cst_172 : f32 to vector<64x1xf32>
    %467 = arith.select %464, %465, %466 : vector<64x1xi1>, vector<64x1xf32>
    %468 = vector.broadcast %467 : vector<64x1xf32> to vector<64x128xf32>
    %469 = arith.mulf %455, %468 : vector<64x128xf32>
    %c0_173 = arith.constant 0 : index
    %c22 = arith.constant 22 : index
    %c0_174 = arith.constant 0 : index
    %470 = vector.load %arg7[%c0_173, %c22, %c0_174] : memref<1x31x128xf32, #tpu.memory_space<vmem>>, vector<1x1x128xf32>
    %471 = vector.shape_cast %470 : vector<1x1x128xf32> to vector<1x128xf32>
    %472 = vector.broadcast %471 : vector<1x128xf32> to vector<64x128xf32>
    %473 = arith.mulf %469, %472 : vector<64x128xf32>
    %474 = arith.addf %454, %473 : vector<64x128xf32>
    %c56_i32 = arith.constant 56 : i32
    %475 = tpu.dynamic_rotate %29 by %c56_i32 dim 0 : vector<64x128xf32>, i32 -> vector<64x128xf32>
    %c8_i32_175 = arith.constant 8 : i32
    %476 = vector.broadcast %c8_i32_175 : i32 to vector<64x1xi32>
    %477 = arith.addi %30, %476 : vector<64x1xi32>
    %c0_i32_176 = arith.constant 0 : i32
    %478 = vector.broadcast %c0_i32_176 : i32 to vector<64x1xi32>
    %479 = arith.cmpi sge, %477, %478 : vector<64x1xi32>
    %c8_i32_177 = arith.constant 8 : i32
    %480 = vector.broadcast %c8_i32_177 : i32 to vector<64x1xi32>
    %481 = arith.addi %30, %480 : vector<64x1xi32>
    %c64_i32_178 = arith.constant 64 : i32
    %482 = vector.broadcast %c64_i32_178 : i32 to vector<64x1xi32>
    %483 = arith.cmpi slt, %481, %482 : vector<64x1xi32>
    %484 = arith.andi %479, %483 : vector<64x1xi1>
    %cst_179 = arith.constant 1.000000e+00 : f32
    %cst_180 = arith.constant 0.000000e+00 : f32
    %485 = vector.broadcast %cst_179 : f32 to vector<64x1xf32>
    %486 = vector.broadcast %cst_180 : f32 to vector<64x1xf32>
    %487 = arith.select %484, %485, %486 : vector<64x1xi1>, vector<64x1xf32>
    %488 = vector.broadcast %487 : vector<64x1xf32> to vector<64x128xf32>
    %489 = arith.mulf %475, %488 : vector<64x128xf32>
    %c0_181 = arith.constant 0 : index
    %c23 = arith.constant 23 : index
    %c0_182 = arith.constant 0 : index
    %490 = vector.load %arg7[%c0_181, %c23, %c0_182] : memref<1x31x128xf32, #tpu.memory_space<vmem>>, vector<1x1x128xf32>
    %491 = vector.shape_cast %490 : vector<1x1x128xf32> to vector<1x128xf32>
    %492 = vector.broadcast %491 : vector<1x128xf32> to vector<64x128xf32>
    %493 = arith.mulf %489, %492 : vector<64x128xf32>
    %494 = arith.addf %474, %493 : vector<64x128xf32>
    %c55_i32 = arith.constant 55 : i32
    %495 = tpu.dynamic_rotate %29 by %c55_i32 dim 0 : vector<64x128xf32>, i32 -> vector<64x128xf32>
    %c9_i32_183 = arith.constant 9 : i32
    %496 = vector.broadcast %c9_i32_183 : i32 to vector<64x1xi32>
    %497 = arith.addi %30, %496 : vector<64x1xi32>
    %c0_i32_184 = arith.constant 0 : i32
    %498 = vector.broadcast %c0_i32_184 : i32 to vector<64x1xi32>
    %499 = arith.cmpi sge, %497, %498 : vector<64x1xi32>
    %c9_i32_185 = arith.constant 9 : i32
    %500 = vector.broadcast %c9_i32_185 : i32 to vector<64x1xi32>
    %501 = arith.addi %30, %500 : vector<64x1xi32>
    %c64_i32_186 = arith.constant 64 : i32
    %502 = vector.broadcast %c64_i32_186 : i32 to vector<64x1xi32>
    %503 = arith.cmpi slt, %501, %502 : vector<64x1xi32>
    %504 = arith.andi %499, %503 : vector<64x1xi1>
    %cst_187 = arith.constant 1.000000e+00 : f32
    %cst_188 = arith.constant 0.000000e+00 : f32
    %505 = vector.broadcast %cst_187 : f32 to vector<64x1xf32>
    %506 = vector.broadcast %cst_188 : f32 to vector<64x1xf32>
    %507 = arith.select %504, %505, %506 : vector<64x1xi1>, vector<64x1xf32>
    %508 = vector.broadcast %507 : vector<64x1xf32> to vector<64x128xf32>
    %509 = arith.mulf %495, %508 : vector<64x128xf32>
    %c0_189 = arith.constant 0 : index
    %c24 = arith.constant 24 : index
    %c0_190 = arith.constant 0 : index
    %510 = vector.load %arg7[%c0_189, %c24, %c0_190] : memref<1x31x128xf32, #tpu.memory_space<vmem>>, vector<1x1x128xf32>
    %511 = vector.shape_cast %510 : vector<1x1x128xf32> to vector<1x128xf32>
    %512 = vector.broadcast %511 : vector<1x128xf32> to vector<64x128xf32>
    %513 = arith.mulf %509, %512 : vector<64x128xf32>
    %514 = arith.addf %494, %513 : vector<64x128xf32>
    %c54_i32 = arith.constant 54 : i32
    %515 = tpu.dynamic_rotate %29 by %c54_i32 dim 0 : vector<64x128xf32>, i32 -> vector<64x128xf32>
    %c10_i32_191 = arith.constant 10 : i32
    %516 = vector.broadcast %c10_i32_191 : i32 to vector<64x1xi32>
    %517 = arith.addi %30, %516 : vector<64x1xi32>
    %c0_i32_192 = arith.constant 0 : i32
    %518 = vector.broadcast %c0_i32_192 : i32 to vector<64x1xi32>
    %519 = arith.cmpi sge, %517, %518 : vector<64x1xi32>
    %c10_i32_193 = arith.constant 10 : i32
    %520 = vector.broadcast %c10_i32_193 : i32 to vector<64x1xi32>
    %521 = arith.addi %30, %520 : vector<64x1xi32>
    %c64_i32_194 = arith.constant 64 : i32
    %522 = vector.broadcast %c64_i32_194 : i32 to vector<64x1xi32>
    %523 = arith.cmpi slt, %521, %522 : vector<64x1xi32>
    %524 = arith.andi %519, %523 : vector<64x1xi1>
    %cst_195 = arith.constant 1.000000e+00 : f32
    %cst_196 = arith.constant 0.000000e+00 : f32
    %525 = vector.broadcast %cst_195 : f32 to vector<64x1xf32>
    %526 = vector.broadcast %cst_196 : f32 to vector<64x1xf32>
    %527 = arith.select %524, %525, %526 : vector<64x1xi1>, vector<64x1xf32>
    %528 = vector.broadcast %527 : vector<64x1xf32> to vector<64x128xf32>
    %529 = arith.mulf %515, %528 : vector<64x128xf32>
    %c0_197 = arith.constant 0 : index
    %c25 = arith.constant 25 : index
    %c0_198 = arith.constant 0 : index
    %530 = vector.load %arg7[%c0_197, %c25, %c0_198] : memref<1x31x128xf32, #tpu.memory_space<vmem>>, vector<1x1x128xf32>
    %531 = vector.shape_cast %530 : vector<1x1x128xf32> to vector<1x128xf32>
    %532 = vector.broadcast %531 : vector<1x128xf32> to vector<64x128xf32>
    %533 = arith.mulf %529, %532 : vector<64x128xf32>
    %534 = arith.addf %514, %533 : vector<64x128xf32>
    %c53_i32 = arith.constant 53 : i32
    %535 = tpu.dynamic_rotate %29 by %c53_i32 dim 0 : vector<64x128xf32>, i32 -> vector<64x128xf32>
    %c11_i32_199 = arith.constant 11 : i32
    %536 = vector.broadcast %c11_i32_199 : i32 to vector<64x1xi32>
    %537 = arith.addi %30, %536 : vector<64x1xi32>
    %c0_i32_200 = arith.constant 0 : i32
    %538 = vector.broadcast %c0_i32_200 : i32 to vector<64x1xi32>
    %539 = arith.cmpi sge, %537, %538 : vector<64x1xi32>
    %c11_i32_201 = arith.constant 11 : i32
    %540 = vector.broadcast %c11_i32_201 : i32 to vector<64x1xi32>
    %541 = arith.addi %30, %540 : vector<64x1xi32>
    %c64_i32_202 = arith.constant 64 : i32
    %542 = vector.broadcast %c64_i32_202 : i32 to vector<64x1xi32>
    %543 = arith.cmpi slt, %541, %542 : vector<64x1xi32>
    %544 = arith.andi %539, %543 : vector<64x1xi1>
    %cst_203 = arith.constant 1.000000e+00 : f32
    %cst_204 = arith.constant 0.000000e+00 : f32
    %545 = vector.broadcast %cst_203 : f32 to vector<64x1xf32>
    %546 = vector.broadcast %cst_204 : f32 to vector<64x1xf32>
    %547 = arith.select %544, %545, %546 : vector<64x1xi1>, vector<64x1xf32>
    %548 = vector.broadcast %547 : vector<64x1xf32> to vector<64x128xf32>
    %549 = arith.mulf %535, %548 : vector<64x128xf32>
    %c0_205 = arith.constant 0 : index
    %c26 = arith.constant 26 : index
    %c0_206 = arith.constant 0 : index
    %550 = vector.load %arg7[%c0_205, %c26, %c0_206] : memref<1x31x128xf32, #tpu.memory_space<vmem>>, vector<1x1x128xf32>
    %551 = vector.shape_cast %550 : vector<1x1x128xf32> to vector<1x128xf32>
    %552 = vector.broadcast %551 : vector<1x128xf32> to vector<64x128xf32>
    %553 = arith.mulf %549, %552 : vector<64x128xf32>
    %554 = arith.addf %534, %553 : vector<64x128xf32>
    %c52_i32 = arith.constant 52 : i32
    %555 = tpu.dynamic_rotate %29 by %c52_i32 dim 0 : vector<64x128xf32>, i32 -> vector<64x128xf32>
    %c12_i32_207 = arith.constant 12 : i32
    %556 = vector.broadcast %c12_i32_207 : i32 to vector<64x1xi32>
    %557 = arith.addi %30, %556 : vector<64x1xi32>
    %c0_i32_208 = arith.constant 0 : i32
    %558 = vector.broadcast %c0_i32_208 : i32 to vector<64x1xi32>
    %559 = arith.cmpi sge, %557, %558 : vector<64x1xi32>
    %c12_i32_209 = arith.constant 12 : i32
    %560 = vector.broadcast %c12_i32_209 : i32 to vector<64x1xi32>
    %561 = arith.addi %30, %560 : vector<64x1xi32>
    %c64_i32_210 = arith.constant 64 : i32
    %562 = vector.broadcast %c64_i32_210 : i32 to vector<64x1xi32>
    %563 = arith.cmpi slt, %561, %562 : vector<64x1xi32>
    %564 = arith.andi %559, %563 : vector<64x1xi1>
    %cst_211 = arith.constant 1.000000e+00 : f32
    %cst_212 = arith.constant 0.000000e+00 : f32
    %565 = vector.broadcast %cst_211 : f32 to vector<64x1xf32>
    %566 = vector.broadcast %cst_212 : f32 to vector<64x1xf32>
    %567 = arith.select %564, %565, %566 : vector<64x1xi1>, vector<64x1xf32>
    %568 = vector.broadcast %567 : vector<64x1xf32> to vector<64x128xf32>
    %569 = arith.mulf %555, %568 : vector<64x128xf32>
    %c0_213 = arith.constant 0 : index
    %c27 = arith.constant 27 : index
    %c0_214 = arith.constant 0 : index
    %570 = vector.load %arg7[%c0_213, %c27, %c0_214] : memref<1x31x128xf32, #tpu.memory_space<vmem>>, vector<1x1x128xf32>
    %571 = vector.shape_cast %570 : vector<1x1x128xf32> to vector<1x128xf32>
    %572 = vector.broadcast %571 : vector<1x128xf32> to vector<64x128xf32>
    %573 = arith.mulf %569, %572 : vector<64x128xf32>
    %574 = arith.addf %554, %573 : vector<64x128xf32>
    %c51_i32 = arith.constant 51 : i32
    %575 = tpu.dynamic_rotate %29 by %c51_i32 dim 0 : vector<64x128xf32>, i32 -> vector<64x128xf32>
    %c13_i32_215 = arith.constant 13 : i32
    %576 = vector.broadcast %c13_i32_215 : i32 to vector<64x1xi32>
    %577 = arith.addi %30, %576 : vector<64x1xi32>
    %c0_i32_216 = arith.constant 0 : i32
    %578 = vector.broadcast %c0_i32_216 : i32 to vector<64x1xi32>
    %579 = arith.cmpi sge, %577, %578 : vector<64x1xi32>
    %c13_i32_217 = arith.constant 13 : i32
    %580 = vector.broadcast %c13_i32_217 : i32 to vector<64x1xi32>
    %581 = arith.addi %30, %580 : vector<64x1xi32>
    %c64_i32_218 = arith.constant 64 : i32
    %582 = vector.broadcast %c64_i32_218 : i32 to vector<64x1xi32>
    %583 = arith.cmpi slt, %581, %582 : vector<64x1xi32>
    %584 = arith.andi %579, %583 : vector<64x1xi1>
    %cst_219 = arith.constant 1.000000e+00 : f32
    %cst_220 = arith.constant 0.000000e+00 : f32
    %585 = vector.broadcast %cst_219 : f32 to vector<64x1xf32>
    %586 = vector.broadcast %cst_220 : f32 to vector<64x1xf32>
    %587 = arith.select %584, %585, %586 : vector<64x1xi1>, vector<64x1xf32>
    %588 = vector.broadcast %587 : vector<64x1xf32> to vector<64x128xf32>
    %589 = arith.mulf %575, %588 : vector<64x128xf32>
    %c0_221 = arith.constant 0 : index
    %c28 = arith.constant 28 : index
    %c0_222 = arith.constant 0 : index
    %590 = vector.load %arg7[%c0_221, %c28, %c0_222] : memref<1x31x128xf32, #tpu.memory_space<vmem>>, vector<1x1x128xf32>
    %591 = vector.shape_cast %590 : vector<1x1x128xf32> to vector<1x128xf32>
    %592 = vector.broadcast %591 : vector<1x128xf32> to vector<64x128xf32>
    %593 = arith.mulf %589, %592 : vector<64x128xf32>
    %594 = arith.addf %574, %593 : vector<64x128xf32>
    %c50_i32 = arith.constant 50 : i32
    %595 = tpu.dynamic_rotate %29 by %c50_i32 dim 0 : vector<64x128xf32>, i32 -> vector<64x128xf32>
    %c14_i32_223 = arith.constant 14 : i32
    %596 = vector.broadcast %c14_i32_223 : i32 to vector<64x1xi32>
    %597 = arith.addi %30, %596 : vector<64x1xi32>
    %c0_i32_224 = arith.constant 0 : i32
    %598 = vector.broadcast %c0_i32_224 : i32 to vector<64x1xi32>
    %599 = arith.cmpi sge, %597, %598 : vector<64x1xi32>
    %c14_i32_225 = arith.constant 14 : i32
    %600 = vector.broadcast %c14_i32_225 : i32 to vector<64x1xi32>
    %601 = arith.addi %30, %600 : vector<64x1xi32>
    %c64_i32_226 = arith.constant 64 : i32
    %602 = vector.broadcast %c64_i32_226 : i32 to vector<64x1xi32>
    %603 = arith.cmpi slt, %601, %602 : vector<64x1xi32>
    %604 = arith.andi %599, %603 : vector<64x1xi1>
    %cst_227 = arith.constant 1.000000e+00 : f32
    %cst_228 = arith.constant 0.000000e+00 : f32
    %605 = vector.broadcast %cst_227 : f32 to vector<64x1xf32>
    %606 = vector.broadcast %cst_228 : f32 to vector<64x1xf32>
    %607 = arith.select %604, %605, %606 : vector<64x1xi1>, vector<64x1xf32>
    %608 = vector.broadcast %607 : vector<64x1xf32> to vector<64x128xf32>
    %609 = arith.mulf %595, %608 : vector<64x128xf32>
    %c0_229 = arith.constant 0 : index
    %c29 = arith.constant 29 : index
    %c0_230 = arith.constant 0 : index
    %610 = vector.load %arg7[%c0_229, %c29, %c0_230] : memref<1x31x128xf32, #tpu.memory_space<vmem>>, vector<1x1x128xf32>
    %611 = vector.shape_cast %610 : vector<1x1x128xf32> to vector<1x128xf32>
    %612 = vector.broadcast %611 : vector<1x128xf32> to vector<64x128xf32>
    %613 = arith.mulf %609, %612 : vector<64x128xf32>
    %614 = arith.addf %594, %613 : vector<64x128xf32>
    %c49_i32 = arith.constant 49 : i32
    %615 = tpu.dynamic_rotate %29 by %c49_i32 dim 0 : vector<64x128xf32>, i32 -> vector<64x128xf32>
    %c15_i32_231 = arith.constant 15 : i32
    %616 = vector.broadcast %c15_i32_231 : i32 to vector<64x1xi32>
    %617 = arith.addi %30, %616 : vector<64x1xi32>
    %c0_i32_232 = arith.constant 0 : i32
    %618 = vector.broadcast %c0_i32_232 : i32 to vector<64x1xi32>
    %619 = arith.cmpi sge, %617, %618 : vector<64x1xi32>
    %c15_i32_233 = arith.constant 15 : i32
    %620 = vector.broadcast %c15_i32_233 : i32 to vector<64x1xi32>
    %621 = arith.addi %30, %620 : vector<64x1xi32>
    %c64_i32_234 = arith.constant 64 : i32
    %622 = vector.broadcast %c64_i32_234 : i32 to vector<64x1xi32>
    %623 = arith.cmpi slt, %621, %622 : vector<64x1xi32>
    %624 = arith.andi %619, %623 : vector<64x1xi1>
    %cst_235 = arith.constant 1.000000e+00 : f32
    %cst_236 = arith.constant 0.000000e+00 : f32
    %625 = vector.broadcast %cst_235 : f32 to vector<64x1xf32>
    %626 = vector.broadcast %cst_236 : f32 to vector<64x1xf32>
    %627 = arith.select %624, %625, %626 : vector<64x1xi1>, vector<64x1xf32>
    %628 = vector.broadcast %627 : vector<64x1xf32> to vector<64x128xf32>
    %629 = arith.mulf %615, %628 : vector<64x128xf32>
    %c0_237 = arith.constant 0 : index
    %c30 = arith.constant 30 : index
    %c0_238 = arith.constant 0 : index
    %630 = vector.load %arg7[%c0_237, %c30, %c0_238] : memref<1x31x128xf32, #tpu.memory_space<vmem>>, vector<1x1x128xf32>
    %631 = vector.shape_cast %630 : vector<1x1x128xf32> to vector<1x128xf32>
    %632 = vector.broadcast %631 : vector<1x128xf32> to vector<64x128xf32>
    %633 = arith.mulf %629, %632 : vector<64x128xf32>
    %634 = arith.addf %614, %633 : vector<64x128xf32>
    %c0_239 = arith.constant 0 : index
    %c0_240 = arith.constant 0 : index
    %c0_241 = arith.constant 0 : index
    %635 = vector.load %arg8[%c0_239, %c0_240, %c0_241] : memref<1x1x128xf32, #tpu.memory_space<vmem>>, vector<1x1x128xf32>
    %636 = vector.shape_cast %635 : vector<1x1x128xf32> to vector<1x128xf32>
    %637 = vector.broadcast %636 : vector<1x128xf32> to vector<64x128xf32>
    %638 = arith.addf %634, %637 : vector<64x128xf32>
    %639 = arith.truncf %638 : vector<64x128xf32> to vector<64x128xbf16>
    %c0_242 = arith.constant 0 : index
    %c0_243 = arith.constant 0 : index
    %c0_244 = arith.constant 0 : index
    %640 = vector.load %arg9[%c0_242, %c0_243, %c0_244] : memref<1x128x128xbf16, #tpu.memory_space<vmem>>, vector<1x128x128xbf16>
    %641 = vector.shape_cast %640 : vector<1x128x128xbf16> to vector<128x128xbf16>
    %cst_245 = arith.constant dense<0.000000e+00> : vector<64x128xf32>
    %642 = tpu.matmul %639, %641, %cst_245 {dimension_numbers = #tpu.dot_dimension_numbers<[1], [0], [0], [1], [0, 0, 1, 1], [], []>} : vector<64x128xbf16>, vector<128x128xbf16>, vector<64x128xf32> -> vector<64x128xf32>
    %c0_246 = arith.constant 0 : index
    %c0_247 = arith.constant 0 : index
    %c0_248 = arith.constant 0 : index
    %643 = vector.load %arg10[%c0_246, %c0_247, %c0_248] : memref<1x1x128xf32, #tpu.memory_space<vmem>>, vector<1x1x128xf32>
    %644 = vector.shape_cast %643 : vector<1x1x128xf32> to vector<1x128xf32>
    %645 = vector.broadcast %644 : vector<1x128xf32> to vector<64x128xf32>
    %646 = arith.addf %642, %645 : vector<64x128xf32>
    %c0_249 = arith.constant 0 : index
    %c0_250 = arith.constant 0 : index
    %c0_251 = arith.constant 0 : index
    %647 = vector.load %arg11[%c0_249, %c0_250, %c0_251] : memref<1x128x128xbf16, #tpu.memory_space<vmem>>, vector<1x128x128xbf16>
    %648 = vector.shape_cast %647 : vector<1x128x128xbf16> to vector<128x128xbf16>
    %cst_252 = arith.constant dense<0.000000e+00> : vector<64x128xf32>
    %649 = tpu.matmul %639, %648, %cst_252 {dimension_numbers = #tpu.dot_dimension_numbers<[1], [0], [0], [1], [0, 0, 1, 1], [], []>} : vector<64x128xbf16>, vector<128x128xbf16>, vector<64x128xf32> -> vector<64x128xf32>
    %c0_253 = arith.constant 0 : index
    %c0_254 = arith.constant 0 : index
    %c0_255 = arith.constant 0 : index
    %650 = vector.load %arg12[%c0_253, %c0_254, %c0_255] : memref<1x1x128xf32, #tpu.memory_space<vmem>>, vector<1x1x128xf32>
    %651 = vector.shape_cast %650 : vector<1x1x128xf32> to vector<1x128xf32>
    %652 = vector.broadcast %651 : vector<1x128xf32> to vector<64x128xf32>
    %653 = arith.addf %649, %652 : vector<64x128xf32>
    %654 = arith.negf %653 : vector<64x128xf32>
    %655 = math.exp %654 : vector<64x128xf32>
    %cst_256 = arith.constant 1.000000e+00 : f32
    %656 = vector.broadcast %cst_256 : f32 to vector<64x128xf32>
    %657 = arith.addf %656, %655 : vector<64x128xf32>
    %658 = arith.divf %656, %657 : vector<64x128xf32>
    %659 = arith.mulf %653, %658 : vector<64x128xf32>
    %660 = arith.mulf %646, %659 : vector<64x128xf32>
    %661 = arith.truncf %660 : vector<64x128xf32> to vector<64x128xbf16>
    %c0_257 = arith.constant 0 : index
    %c0_258 = arith.constant 0 : index
    %c0_259 = arith.constant 0 : index
    %662 = vector.load %arg13[%c0_257, %c0_258, %c0_259] : memref<1x128x128xbf16, #tpu.memory_space<vmem>>, vector<1x128x128xbf16>
    %663 = vector.shape_cast %662 : vector<1x128x128xbf16> to vector<128x128xbf16>
    %cst_260 = arith.constant dense<0.000000e+00> : vector<64x128xf32>
    %664 = tpu.matmul %661, %663, %cst_260 {dimension_numbers = #tpu.dot_dimension_numbers<[1], [0], [0], [1], [0, 0, 1, 1], [], []>} : vector<64x128xbf16>, vector<128x128xbf16>, vector<64x128xf32> -> vector<64x128xf32>
    %c0_261 = arith.constant 0 : index
    %c0_262 = arith.constant 0 : index
    %c0_263 = arith.constant 0 : index
    %665 = vector.load %arg14[%c0_261, %c0_262, %c0_263] : memref<1x1x128xf32, #tpu.memory_space<vmem>>, vector<1x1x128xf32>
    %666 = vector.shape_cast %665 : vector<1x1x128xf32> to vector<1x128xf32>
    %667 = vector.broadcast %666 : vector<1x128xf32> to vector<64x128xf32>
    %668 = arith.addf %664, %667 : vector<64x128xf32>
    %c0_264 = arith.constant 0 : index
    %c0_265 = arith.constant 0 : index
    %c0_266 = arith.constant 0 : index
    %669 = vector.load %arg15[%c0_264, %c0_265, %c0_266] : memref<1x128x128xbf16, #tpu.memory_space<vmem>>, vector<1x128x128xbf16>
    %670 = vector.shape_cast %669 : vector<1x128x128xbf16> to vector<128x128xbf16>
    %cst_267 = arith.constant dense<0.000000e+00> : vector<64x128xf32>
    %671 = tpu.matmul %661, %670, %cst_267 {dimension_numbers = #tpu.dot_dimension_numbers<[1], [0], [0], [1], [0, 0, 1, 1], [], []>} : vector<64x128xbf16>, vector<128x128xbf16>, vector<64x128xf32> -> vector<64x128xf32>
    %c0_268 = arith.constant 0 : index
    %c0_269 = arith.constant 0 : index
    %c0_270 = arith.constant 0 : index
    %672 = vector.load %arg16[%c0_268, %c0_269, %c0_270] : memref<1x1x128xf32, #tpu.memory_space<vmem>>, vector<1x1x128xf32>
    %673 = vector.shape_cast %672 : vector<1x1x128xf32> to vector<1x128xf32>
    %674 = vector.broadcast %673 : vector<1x128xf32> to vector<64x128xf32>
    %675 = arith.addf %671, %674 : vector<64x128xf32>
    %676 = arith.negf %675 : vector<64x128xf32>
    %677 = math.exp %676 : vector<64x128xf32>
    %cst_271 = arith.constant 1.000000e+00 : f32
    %678 = vector.broadcast %cst_271 : f32 to vector<64x128xf32>
    %679 = arith.addf %678, %677 : vector<64x128xf32>
    %680 = arith.divf %678, %679 : vector<64x128xf32>
    %681 = arith.mulf %675, %680 : vector<64x128xf32>
    %682 = arith.mulf %668, %681 : vector<64x128xf32>
    %683 = arith.truncf %682 : vector<64x128xf32> to vector<64x128xbf16>
    %c0_272 = arith.constant 0 : index
    %c0_273 = arith.constant 0 : index
    %c0_274 = arith.constant 0 : index
    %684 = vector.load %arg17[%c0_272, %c0_273, %c0_274] : memref<1x128x128xbf16, #tpu.memory_space<vmem>>, vector<1x128x128xbf16>
    %685 = vector.shape_cast %684 : vector<1x128x128xbf16> to vector<128x128xbf16>
    %cst_275 = arith.constant dense<0.000000e+00> : vector<64x128xf32>
    %686 = tpu.matmul %683, %685, %cst_275 {dimension_numbers = #tpu.dot_dimension_numbers<[1], [0], [0], [1], [0, 0, 1, 1], [], []>} : vector<64x128xbf16>, vector<128x128xbf16>, vector<64x128xf32> -> vector<64x128xf32>
    %c0_276 = arith.constant 0 : index
    %c0_277 = arith.constant 0 : index
    %c0_278 = arith.constant 0 : index
    %687 = vector.load %arg18[%c0_276, %c0_277, %c0_278] : memref<1x1x128xf32, #tpu.memory_space<vmem>>, vector<1x1x128xf32>
    %688 = vector.shape_cast %687 : vector<1x1x128xf32> to vector<1x128xf32>
    %689 = vector.broadcast %688 : vector<1x128xf32> to vector<64x128xf32>
    %690 = arith.addf %686, %689 : vector<64x128xf32>
    %691 = arith.addf %3, %690 : vector<64x128xf32>
    %c0_279 = arith.constant 0 : index
    %c0_280 = arith.constant 0 : index
    %692 = vector.load %arg24[%c0_279, %c0_280] : memref<64x128xf32, #tpu.memory_space<vmem>>, vector<64x128xf32>
    tpu.vector_store %arg24[%c0_279, %c0_280], %691 {strides = array<i32>} : memref<64x128xf32, #tpu.memory_space<vmem>>, vector<64x128xf32>,
    %c2_i32_281 = arith.constant 2 : i32
    %693 = arith.cmpi eq, %arg1, %c2_i32_281 : i32
    %694 = arith.extui %693 : i1 to i32
    %c0_i32_282 = arith.constant 0 : i32
    %695 = arith.cmpi ne, %694, %c0_i32_282 : i32
    scf.if %695 {
      %c0_283 = arith.constant 0 : index
      %c0_284 = arith.constant 0 : index
      %696 = vector.load %arg24[%c0_283, %c0_284] : memref<64x128xf32, #tpu.memory_space<vmem>>, vector<64x128xf32>
      %c0_285 = arith.constant 0 : index
      %c0_286 = arith.constant 0 : index
      %697 = vector.load %arg19[%c0_285, %c0_286] : memref<1x128xf32, #tpu.memory_space<vmem>>, vector<1x128xf32>
      %c0_287 = arith.constant 0 : index
      %c0_288 = arith.constant 0 : index
      %698 = vector.load %arg20[%c0_287, %c0_288] : memref<1x128xf32, #tpu.memory_space<vmem>>, vector<1x128xf32>
      %cst_289 = arith.constant dense<0.000000e+00> : vector<64xf32>
      %699 = vector.multi_reduction <add>, %696, %cst_289 [1] : vector<64x128xf32> to vector<64xf32>
      %700 = vector.shape_cast %699 : vector<64xf32> to vector<64x1xf32>
      %cst_290 = arith.constant 1.280000e+02 : f32
      %701 = vector.broadcast %cst_290 : f32 to vector<64x1xf32>
      %702 = arith.divf %700, %701 : vector<64x1xf32>
      %703 = vector.broadcast %702 : vector<64x1xf32> to vector<64x128xf32>
      %704 = arith.subf %696, %703 : vector<64x128xf32>
      %705 = arith.mulf %704, %704 : vector<64x128xf32>
      %cst_291 = arith.constant dense<0.000000e+00> : vector<64xf32>
      %706 = vector.multi_reduction <add>, %705, %cst_291 [1] : vector<64x128xf32> to vector<64xf32>
      %707 = vector.shape_cast %706 : vector<64xf32> to vector<64x1xf32>
      %cst_292 = arith.constant 1.280000e+02 : f32
      %708 = vector.broadcast %cst_292 : f32 to vector<64x1xf32>
      %709 = arith.divf %707, %708 : vector<64x1xf32>
      %710 = vector.broadcast %702 : vector<64x1xf32> to vector<64x128xf32>
      %711 = arith.subf %696, %710 : vector<64x128xf32>
      %cst_293 = arith.constant 9.99999974E-6 : f32
      %712 = vector.broadcast %cst_293 : f32 to vector<64x1xf32>
      %713 = arith.addf %709, %712 : vector<64x1xf32>
      %714 = math.rsqrt %713 : vector<64x1xf32>
      %715 = vector.broadcast %714 : vector<64x1xf32> to vector<64x128xf32>
      %716 = arith.mulf %711, %715 : vector<64x128xf32>
      %717 = vector.broadcast %697 : vector<1x128xf32> to vector<64x128xf32>
      %718 = arith.mulf %716, %717 : vector<64x128xf32>
      %719 = vector.broadcast %698 : vector<1x128xf32> to vector<64x128xf32>
      %720 = arith.addf %718, %719 : vector<64x128xf32>
      %721 = arith.truncf %720 : vector<64x128xf32> to vector<64x128xbf16>
      %c0_294 = arith.constant 0 : index
      %c0_295 = arith.constant 0 : index
      %722 = vector.load %arg21[%c0_294, %c0_295] : memref<128x128xbf16, #tpu.memory_space<vmem>>, vector<128x128xbf16>
      %cst_296 = arith.constant dense<0.000000e+00> : vector<64x128xf32>
      %723 = tpu.matmul %721, %722, %cst_296 {dimension_numbers = #tpu.dot_dimension_numbers<[1], [0], [0], [1], [0, 0, 1, 1], [], []>} : vector<64x128xbf16>, vector<128x128xbf16>, vector<64x128xf32> -> vector<64x128xf32>
      %c0_297 = arith.constant 0 : index
      %c0_298 = arith.constant 0 : index
      %724 = vector.load %arg22[%c0_297, %c0_298] : memref<1x128xf32, #tpu.memory_space<vmem>>, vector<1x128xf32>
      %725 = vector.broadcast %724 : vector<1x128xf32> to vector<64x128xf32>
      %726 = arith.addf %723, %725 : vector<64x128xf32>
      %c0_299 = arith.constant 0 : index
      %c0_300 = arith.constant 0 : index
      %c0_301 = arith.constant 0 : index
      %727 = vector.load %arg23[%c0_299, %c0_300, %c0_301] : memref<1x64x128xf32, #tpu.memory_space<vmem>>, vector<1x64x128xf32>
      %728 = vector.shape_cast %727 : vector<1x64x128xf32> to vector<64x128xf32>
      %729 = vector.shape_cast %726 : vector<64x128xf32> to vector<1x64x128xf32>
      tpu.vector_store %arg23[%c0_299, %c0_300, %c0_301], %729 {strides = array<i32>} : memref<1x64x128xf32, #tpu.memory_space<vmem>>, vector<1x64x128xf32>,
    } else {
    }
    return
  }
  func.func @transform_0(%arg0: i32, %arg1: i32) -> (i32, i32, i32) {
    %c0_i32 = arith.constant 0 : i32
    %c0_i32_0 = arith.constant 0 : i32
    %c0_i32_1 = arith.constant 0 : i32
    return %arg0, %c0_i32, %c0_i32_0 : i32, i32, i32
  }
  func.func @transform_1(%arg0: i32, %arg1: i32) -> (i32, i32, i32) {
    %c0_i32 = arith.constant 0 : i32
    %c0_i32_0 = arith.constant 0 : i32
    %c0_i32_1 = arith.constant 0 : i32
    return %arg0, %c0_i32, %c0_i32_0 : i32, i32, i32
  }
  func.func @transform_2(%arg0: i32, %arg1: i32) -> (i32, i32) {
    %c0_i32 = arith.constant 0 : i32
    %c0_i32_0 = arith.constant 0 : i32
    %c0_i32_1 = arith.constant 0 : i32
    return %c0_i32, %c0_i32_0 : i32, i32
  }
  func.func @transform_3(%arg0: i32, %arg1: i32) -> (i32, i32, i32) {
    %c0_i32 = arith.constant 0 : i32
    %c0_i32_0 = arith.constant 0 : i32
    %c0_i32_1 = arith.constant 0 : i32
    return %arg1, %c0_i32, %c0_i32_0 : i32, i32, i32
  }
  func.func @transform_4(%arg0: i32, %arg1: i32) -> (i32, i32, i32) {
    %c0_i32 = arith.constant 0 : i32
    %c0_i32_0 = arith.constant 0 : i32
    %c0_i32_1 = arith.constant 0 : i32
    return %arg1, %c0_i32, %c0_i32_0 : i32, i32, i32
  }
  func.func @transform_5(%arg0: i32, %arg1: i32) -> (i32, i32, i32) {
    %c0_i32 = arith.constant 0 : i32
    %c0_i32_0 = arith.constant 0 : i32
    %c0_i32_1 = arith.constant 0 : i32
    return %arg1, %c0_i32, %c0_i32_0 : i32, i32, i32
  }
  func.func @transform_6(%arg0: i32, %arg1: i32) -> (i32, i32, i32) {
    %c0_i32 = arith.constant 0 : i32
    %c0_i32_0 = arith.constant 0 : i32
    %c0_i32_1 = arith.constant 0 : i32
    return %arg1, %c0_i32, %c0_i32_0 : i32, i32, i32
  }
  func.func @transform_7(%arg0: i32, %arg1: i32) -> (i32, i32, i32) {
    %c0_i32 = arith.constant 0 : i32
    %c0_i32_0 = arith.constant 0 : i32
    %c0_i32_1 = arith.constant 0 : i32
    return %arg1, %c0_i32, %c0_i32_0 : i32, i32, i32
  }
  func.func @transform_8(%arg0: i32, %arg1: i32) -> (i32, i32, i32) {
    %c0_i32 = arith.constant 0 : i32
    %c0_i32_0 = arith.constant 0 : i32
    %c0_i32_1 = arith.constant 0 : i32
    return %arg1, %c0_i32, %c0_i32_0 : i32, i32, i32
  }
  func.func @transform_9(%arg0: i32, %arg1: i32) -> (i32, i32, i32) {
    %c0_i32 = arith.constant 0 : i32
    %c0_i32_0 = arith.constant 0 : i32
    %c0_i32_1 = arith.constant 0 : i32
    return %arg1, %c0_i32, %c0_i32_0 : i32, i32, i32
  }
  func.func @transform_10(%arg0: i32, %arg1: i32) -> (i32, i32, i32) {
    %c0_i32 = arith.constant 0 : i32
    %c0_i32_0 = arith.constant 0 : i32
    %c0_i32_1 = arith.constant 0 : i32
    return %arg1, %c0_i32, %c0_i32_0 : i32, i32, i32
  }
  func.func @transform_11(%arg0: i32, %arg1: i32) -> (i32, i32, i32) {
    %c0_i32 = arith.constant 0 : i32
    %c0_i32_0 = arith.constant 0 : i32
    %c0_i32_1 = arith.constant 0 : i32
    return %arg1, %c0_i32, %c0_i32_0 : i32, i32, i32
  }
  func.func @transform_12(%arg0: i32, %arg1: i32) -> (i32, i32, i32) {
    %c0_i32 = arith.constant 0 : i32
    %c0_i32_0 = arith.constant 0 : i32
    %c0_i32_1 = arith.constant 0 : i32
    return %arg1, %c0_i32, %c0_i32_0 : i32, i32, i32
  }
  func.func @transform_13(%arg0: i32, %arg1: i32) -> (i32, i32, i32) {
    %c0_i32 = arith.constant 0 : i32
    %c0_i32_0 = arith.constant 0 : i32
    %c0_i32_1 = arith.constant 0 : i32
    return %arg1, %c0_i32, %c0_i32_0 : i32, i32, i32
  }
  func.func @transform_14(%arg0: i32, %arg1: i32) -> (i32, i32, i32) {
    %c0_i32 = arith.constant 0 : i32
    %c0_i32_0 = arith.constant 0 : i32
    %c0_i32_1 = arith.constant 0 : i32
    return %arg1, %c0_i32, %c0_i32_0 : i32, i32, i32
  }
  func.func @transform_15(%arg0: i32, %arg1: i32) -> (i32, i32, i32) {
    %c0_i32 = arith.constant 0 : i32
    %c0_i32_0 = arith.constant 0 : i32
    %c0_i32_1 = arith.constant 0 : i32
    return %arg1, %c0_i32, %c0_i32_0 : i32, i32, i32
  }
  func.func @transform_16(%arg0: i32, %arg1: i32) -> (i32, i32, i32) {
    %c0_i32 = arith.constant 0 : i32
    %c0_i32_0 = arith.constant 0 : i32
    %c0_i32_1 = arith.constant 0 : i32
    return %arg1, %c0_i32, %c0_i32_0 : i32, i32, i32
  }
  func.func @transform_17(%arg0: i32, %arg1: i32) -> (i32, i32) {
    %c0_i32 = arith.constant 0 : i32
    %c0_i32_0 = arith.constant 0 : i32
    %c0_i32_1 = arith.constant 0 : i32
    return %c0_i32, %c0_i32_0 : i32, i32
  }
  func.func @transform_18(%arg0: i32, %arg1: i32) -> (i32, i32) {
    %c0_i32 = arith.constant 0 : i32
    %c0_i32_0 = arith.constant 0 : i32
    %c0_i32_1 = arith.constant 0 : i32
    return %c0_i32, %c0_i32_0 : i32, i32
  }
  func.func @transform_19(%arg0: i32, %arg1: i32) -> (i32, i32) {
    %c0_i32 = arith.constant 0 : i32
    %c0_i32_0 = arith.constant 0 : i32
    %c0_i32_1 = arith.constant 0 : i32
    return %c0_i32, %c0_i32_0 : i32, i32
  }
  func.func @transform_20(%arg0: i32, %arg1: i32) -> (i32, i32) {
    %c0_i32 = arith.constant 0 : i32
    %c0_i32_0 = arith.constant 0 : i32
    %c0_i32_1 = arith.constant 0 : i32
    return %c0_i32, %c0_i32_0 : i32, i32
  }
  func.func @transform_21(%arg0: i32, %arg1: i32) -> (i32, i32, i32) {
    %c0_i32 = arith.constant 0 : i32
    %c0_i32_0 = arith.constant 0 : i32
    %c0_i32_1 = arith.constant 0 : i32
    return %arg0, %c0_i32, %c0_i32_0 : i32, i32, i32
  }
}

</mosaic_0001>

<llo_original>
// kernel: lynxnet2_forward.1
$region0: #{lynxnet2_forward.1}
  #allocation0 [shape = 'u32[]', space=smem, size = 0x4, offset = 0x4, fixed_abs, tag = 'smem constant byte address 0x4 - core index']
  #allocation1 [shape = 'u32[144,128]{1,0:T(1,128)}', space=vmem, size = 0x12000, scoped, tag = 'internal scratch']
  #allocation2 [shape = 'f32[64,128]{1,0:T(8,128)}', space=vmem, size = 0x8000, scoped, tag = 'scratch operand']
  %s0 = inlined_call_operand.vmem [shape: bf16[2,64,128], index: 0, kind: input, shape index: {}]
  %s1 = inlined_call_operand.vmem [shape: f32[2,1,128], index: 1, kind: input, shape index: {}]
  %s2 = inlined_call_operand.vmem [shape: bf16[128,128], index: 2, kind: input, shape index: {}]
  %s3 = inlined_call_operand.vmem [shape: f32[3,1,128], index: 3, kind: input, shape index: {}]
  %s4 = inlined_call_operand.vmem [shape: f32[3,1,128], index: 4, kind: input, shape index: {}]
  %s5 = inlined_call_operand.vmem [shape: f32[3,31,128], index: 5, kind: input, shape index: {}]
  %s6 = inlined_call_operand.vmem [shape: f32[3,1,128], index: 6, kind: input, shape index: {}]
  %s7 = inlined_call_operand.vmem [shape: bf16[3,128,128], index: 7, kind: input, shape index: {}]
  %s8 = inlined_call_operand.vmem [shape: f32[3,1,128], index: 8, kind: input, shape index: {}]
  %s9 = inlined_call_operand.vmem [shape: bf16[3,128,128], index: 9, kind: input, shape index: {}]
  %s10 = inlined_call_operand.vmem [shape: f32[3,1,128], index: 10, kind: input, shape index: {}]
  %s11 = inlined_call_operand.vmem [shape: bf16[3,128,128], index: 11, kind: input, shape index: {}]
  %s12 = inlined_call_operand.vmem [shape: f32[3,1,128], index: 12, kind: input, shape index: {}]
  %s13 = inlined_call_operand.vmem [shape: bf16[3,128,128], index: 13, kind: input, shape index: {}]
  %s14 = inlined_call_operand.vmem [shape: f32[3,1,128], index: 14, kind: input, shape index: {}]
  %s15 = inlined_call_operand.vmem [shape: bf16[3,128,128], index: 15, kind: input, shape index: {}]
  %s16 = inlined_call_operand.vmem [shape: f32[3,1,128], index: 16, kind: input, shape index: {}]
  %s17 = inlined_call_operand.vmem [shape: f32[1,128], index: 17, kind: input, shape index: {}]
  %s18 = inlined_call_operand.vmem [shape: f32[1,128], index: 18, kind: input, shape index: {}]
  %s19 = inlined_call_operand.vmem [shape: bf16[128,128], index: 19, kind: input, shape index: {}]
  %s20 = inlined_call_operand.vmem [shape: f32[1,128], index: 20, kind: input, shape index: {}]
  %s21 = inlined_call_operand.vmem [shape: f32[2,64,128], index: 21, kind: output, shape index: {}]
  %s22 = sld [smem:[#allocation0]]
  $region125: #{lynxnet2_forward.1} parent=0
    _
  %s24 = ssub.s32 1, %s22
  %s25 = scalar_select 0, %s24, %s22
  loop: start=0, step=1, limit=8
  $region2: #{lynxnet2_forward.1} parent=0 // loop_pre_header
    _
  $region3: #{lynxnet2_forward.1} parent=0 // loop_header
    %s27 = sphi 0, %s31
    %p28 = scmp.ge.s32.totalorder %s27, 8
    %s34 = sphi 0, %s46
    %s35 = sphi 0, %s42
    %s36 = sphi 0, %s34
    %s37 = sphi 0, %s35
    %s38 = sphi 0, %s36
    %s39 = sphi 0, %s37
    %s49 = sphi 0, %s51
    %s52 = sphi 0, %s49
    %s53 = sphi 0, %s52
    %s69 = sphi 0, %s53
    %s75 = sphi 0, %s77
    %s78 = sphi 0, %s75
    %s79 = sphi 0, %s78
    %s95 = sphi 0, %s79
    %s99 = sphi 0, %s99
    %s101 = sphi 0, %s99
    %s102 = sphi 0, %s101
    %s116 = sphi 0, %s102
    %s122 = sphi 0, %s124
    %s125 = sphi 0, %s122
    %s126 = sphi 0, %s125
    %s142 = sphi 0, %s126
    %s148 = sphi 0, %s150
    %s151 = sphi 0, %s148
    %s152 = sphi 0, %s151
    %s168 = sphi 0, %s152
    %s174 = sphi 0, %s176
    %s177 = sphi 0, %s174
    %s178 = sphi 0, %s177
    %s194 = sphi 0, %s178
    %s200 = sphi 0, %s202
    %s203 = sphi 0, %s200
    %s204 = sphi 0, %s203
    %s220 = sphi 0, %s204
    %s226 = sphi 0, %s228
    %s229 = sphi 0, %s226
    %s230 = sphi 0, %s229
    %s246 = sphi 0, %s230
    %s252 = sphi 0, %s254
    %s255 = sphi 0, %s252
    %s256 = sphi 0, %s255
    %s272 = sphi 0, %s256
    %s278 = sphi 0, %s280
    %s281 = sphi 0, %s278
    %s282 = sphi 0, %s281
    %s298 = sphi 0, %s282
    %s304 = sphi 0, %s306
    %s307 = sphi 0, %s304
    %s308 = sphi 0, %s307
    %s324 = sphi 0, %s308
    %s330 = sphi 0, %s332
    %s333 = sphi 0, %s330
    %s334 = sphi 0, %s333
    %s350 = sphi 0, %s334
    %s356 = sphi 0, %s358
    %s359 = sphi 0, %s356
    %s360 = sphi 0, %s359
    %s376 = sphi 0, %s360
    %s382 = sphi 0, %s384
    %s385 = sphi 0, %s382
    %s386 = sphi 0, %s385
    %s402 = sphi 0, %s386
    %s408 = sphi 0, %s410
    %s411 = sphi 0, %s408
    %s412 = sphi 0, %s411
    %s428 = sphi 0, %s412
    %s434 = sphi 0, %s436
    %s437 = sphi 0, %s434
    %s438 = sphi 0, %s437
    %s454 = sphi 0, %s438
    %s460 = sphi 0, %s462
    %s463 = sphi 0, %s460
    %s464 = sphi 0, %s463
    %s480 = sphi 0, %s464
    %s484 = sphi 0, %s484
    %s486 = sphi 0, %s484
    %s487 = sphi 0, %s486
    %s501 = sphi 0, %s487
    %s505 = sphi 0, %s505
    %s507 = sphi 0, %s505
    %s508 = sphi 0, %s507
    %s522 = sphi 0, %s508
    %s526 = sphi 0, %s526
    %s528 = sphi 0, %s526
    %s529 = sphi 0, %s528
    %s543 = sphi 0, %s529
    %s547 = sphi 0, %s547
    %s549 = sphi 0, %s547
    %s550 = sphi 0, %s549
    %s564 = sphi 0, %s550
    %s570 = sphi 0, %s572
    %s573 = sphi 0, %s570
    %s574 = sphi 0, %s573
    %s590 = sphi 0, %s574
  $region4: #{lynxnet2_forward.1} parent=0 // loop_header_branch
    %30 = sbr.rel (%p28) target = $region8
  $region5: #{lynxnet2_forward.1} parent=0 // loop_body
    %s32 = ssub.s32 %s27, 1
    %s33 = ssub.s32 %s27, 2
    %s40 = sadd.s32 1, %s35
    %p41 = scmp.ge.s32.totalorder %s40, 3
    %s42 = scalar_select %p41, 0, %s40
    %s43 = sadd.s32 1, %s34
    %s44 = scalar_select %p41, %s43, %s34
    %p45 = scmp.ge.s32.totalorder %s44, 2
    %s46 = scalar_select %p45, 0, %s44
    %s47 = ssub.s32 %s34, %s46
    %p48 = scmp.eq.s32.totalorder %s47, 0
    %s50 = sadd.s32 %s49, 1
    %s51 = scalar_select %p48, %s49, %s50
    %p54 = pneg %p48
    %p55 = scmp.eq.s32.totalorder %s27, 5
    %p56 = por %p54, %p55
    %p57 = scmp.ne.s32.totalorder %s49, %s52
    %p58 = scmp.eq.s32.totalorder %s27, 0
    %p59 = por %p57, %p58
    %p60 = scmp.ne.s32.totalorder %s49, %s52
    %p61 = scmp.eq.s32.totalorder %s32, 5
    %p62 = por %p60, %p61
    %p63 = scmp.ne.s32.totalorder %s52, %s53
    %p64 = scmp.eq.s32.totalorder %s32, 0
    %p65 = por %p63, %p64
    %p66 = scmp.ne.s32.totalorder %s52, %s53
    %p67 = scmp.eq.s32.totalorder %s33, 5
    %p68 = por %p66, %p67
    %p70 = scmp.ne.s32.totalorder %s53, %s69
    %p71 = scmp.eq.s32.totalorder %s33, 0
    %p72 = por %p70, %p71
    %s73 = ssub.s32 %s34, %s46
    %p74 = scmp.eq.s32.totalorder %s73, 0
    %s76 = sadd.s32 %s75, 1
    %s77 = scalar_select %p74, %s75, %s76
    %p80 = pneg %p74
    %p81 = scmp.eq.s32.totalorder %s27, 5
    %p82 = por %p80, %p81
    %p83 = scmp.ne.s32.totalorder %s75, %s78
    %p84 = scmp.eq.s32.totalorder %s27, 0
    %p85 = por %p83, %p84
    %p86 = scmp.ne.s32.totalorder %s75, %s78
    %p87 = scmp.eq.s32.totalorder %s32, 5
    %p88 = por %p86, %p87
    %p89 = scmp.ne.s32.totalorder %s78, %s79
    %p90 = scmp.eq.s32.totalorder %s32, 0
    %p91 = por %p89, %p90
    %p92 = scmp.ne.s32.totalorder %s78, %s79
    %p93 = scmp.eq.s32.totalorder %s33, 5
    %p94 = por %p92, %p93
    %p96 = scmp.ne.s32.totalorder %s79, %s95
    %p97 = scmp.eq.s32.totalorder %s33, 0
    %p98 = por %p96, %p97
    %s100 = sadd.s32 %s99, 1
    %p103 = scmp.eq.s32.totalorder %s27, 5
    %p104 = scmp.ne.s32.totalorder %s99, %s101
    %p105 = scmp.eq.s32.totalorder %s27, 0
    %p106 = por %p104, %p105
    %p107 = scmp.ne.s32.totalorder %s99, %s101
    %p108 = scmp.eq.s32.totalorder %s32, 5
    %p109 = por %p107, %p108
    %p110 = scmp.ne.s32.totalorder %s101, %s102
    %p111 = scmp.eq.s32.totalorder %s32, 0
    %p112 = por %p110, %p111
    %p113 = scmp.ne.s32.totalorder %s101, %s102
    %p114 = scmp.eq.s32.totalorder %s33, 5
    %p115 = por %p113, %p114
    %p117 = scmp.ne.s32.totalorder %s102, %s116
    %p118 = scmp.eq.s32.totalorder %s33, 0
    %p119 = por %p117, %p118
    %s120 = ssub.s32 %s35, %s42
    %p121 = scmp.eq.s32.totalorder %s120, 0
    %s123 = sadd.s32 %s122, 1
    %s124 = scalar_select %p121, %s122, %s123
    %p127 = pneg %p121
    %p128 = scmp.eq.s32.totalorder %s27, 5
    %p129 = por %p127, %p128
    %p130 = scmp.ne.s32.totalorder %s122, %s125
    %p131 = scmp.eq.s32.totalorder %s27, 0
    %p132 = por %p130, %p131
    %p133 = scmp.ne.s32.totalorder %s122, %s125
    %p134 = scmp.eq.s32.totalorder %s32, 5
    %p135 = por %p133, %p134
    %p136 = scmp.ne.s32.totalorder %s125, %s126
    %p137 = scmp.eq.s32.totalorder %s32, 0
    %p138 = por %p136, %p137
    %p139 = scmp.ne.s32.totalorder %s125, %s126
    %p140 = scmp.eq.s32.totalorder %s33, 5
    %p141 = por %p139, %p140
    %p143 = scmp.ne.s32.totalorder %s126, %s142
    %p144 = scmp.eq.s32.totalorder %s33, 0
    %p145 = por %p143, %p144
    %s146 = ssub.s32 %s35, %s42
    %p147 = scmp.eq.s32.totalorder %s146, 0
    %s149 = sadd.s32 %s148, 1
    %s150 = scalar_select %p147, %s148, %s149
    %p153 = pneg %p147
    %p154 = scmp.eq.s32.totalorder %s27, 5
    %p155 = por %p153, %p154
    %p156 = scmp.ne.s32.totalorder %s148, %s151
    %p157 = scmp.eq.s32.totalorder %s27, 0
    %p158 = por %p156, %p157
    %p159 = scmp.ne.s32.totalorder %s148, %s151
    %p160 = scmp.eq.s32.totalorder %s32, 5
    %p161 = por %p159, %p160
    %p162 = scmp.ne.s32.totalorder %s151, %s152
    %p163 = scmp.eq.s32.totalorder %s32, 0
    %p164 = por %p162, %p163
    %p165 = scmp.ne.s32.totalorder %s151, %s152
    %p166 = scmp.eq.s32.totalorder %s33, 5
    %p167 = por %p165, %p166
    %p169 = scmp.ne.s32.totalorder %s152, %s168
    %p170 = scmp.eq.s32.totalorder %s33, 0
    %p171 = por %p169, %p170
    %s172 = ssub.s32 %s35, %s42
    %p173 = scmp.eq.s32.totalorder %s172, 0
    %s175 = sadd.s32 %s174, 1
    %s176 = scalar_select %p173, %s174, %s175
    %p179 = pneg %p173
    %p180 = scmp.eq.s32.totalorder %s27, 5
    %p181 = por %p179, %p180
    %p182 = scmp.ne.s32.totalorder %s174, %s177
    %p183 = scmp.eq.s32.totalorder %s27, 0
    %p184 = por %p182, %p183
    %p185 = scmp.ne.s32.totalorder %s174, %s177
    %p186 = scmp.eq.s32.totalorder %s32, 5
    %p187 = por %p185, %p186
    %p188 = scmp.ne.s32.totalorder %s177, %s178
    %p189 = scmp.eq.s32.totalorder %s32, 0
    %p190 = por %p188, %p189
    %p191 = scmp.ne.s32.totalorder %s177, %s178
    %p192 = scmp.eq.s32.totalorder %s33, 5
    %p193 = por %p191, %p192
    %p195 = scmp.ne.s32.totalorder %s178, %s194
    %p196 = scmp.eq.s32.totalorder %s33, 0
    %p197 = por %p195, %p196
    %s198 = ssub.s32 %s35, %s42
    %p199 = scmp.eq.s32.totalorder %s198, 0
    %s201 = sadd.s32 %s200, 1
    %s202 = scalar_select %p199, %s200, %s201
    %p205 = pneg %p199
    %p206 = scmp.eq.s32.totalorder %s27, 5
    %p207 = por %p205, %p206
    %p208 = scmp.ne.s32.totalorder %s200, %s203
    %p209 = scmp.eq.s32.totalorder %s27, 0
    %p210 = por %p208, %p209
    %p211 = scmp.ne.s32.totalorder %s200, %s203
    %p212 = scmp.eq.s32.totalorder %s32, 5
    %p213 = por %p211, %p212
    %p214 = scmp.ne.s32.totalorder %s203, %s204
    %p215 = scmp.eq.s32.totalorder %s32, 0
    %p216 = por %p214, %p215
    %p217 = scmp.ne.s32.totalorder %s203, %s204
    %p218 = scmp.eq.s32.totalorder %s33, 5
    %p219 = por %p217, %p218
    %p221 = scmp.ne.s32.totalorder %s204, %s220
    %p222 = scmp.eq.s32.totalorder %s33, 0
    %p223 = por %p221, %p222
    %s224 = ssub.s32 %s35, %s42
    %p225 = scmp.eq.s32.totalorder %s224, 0
    %s227 = sadd.s32 %s226, 1
    %s228 = scalar_select %p225, %s226, %s227
    %p231 = pneg %p225
    %p232 = scmp.eq.s32.totalorder %s27, 5
    %p233 = por %p231, %p232
    %p234 = scmp.ne.s32.totalorder %s226, %s229
    %p235 = scmp.eq.s32.totalorder %s27, 0
    %p236 = por %p234, %p235
    %p237 = scmp.ne.s32.totalorder %s226, %s229
    %p238 = scmp.eq.s32.totalorder %s32, 5
    %p239 = por %p237, %p238
    %p240 = scmp.ne.s32.totalorder %s229, %s230
    %p241 = scmp.eq.s32.totalorder %s32, 0
    %p242 = por %p240, %p241
    %p243 = scmp.ne.s32.totalorder %s229, %s230
    %p244 = scmp.eq.s32.totalorder %s33, 5
    %p245 = por %p243, %p244
    %p247 = scmp.ne.s32.totalorder %s230, %s246
    %p248 = scmp.eq.s32.totalorder %s33, 0
    %p249 = por %p247, %p248
    %s250 = ssub.s32 %s35, %s42
    %p251 = scmp.eq.s32.totalorder %s250, 0
    %s253 = sadd.s32 %s252, 1
    %s254 = scalar_select %p251, %s252, %s253
    %p257 = pneg %p251
    %p258 = scmp.eq.s32.totalorder %s27, 5
    %p259 = por %p257, %p258
    %p260 = scmp.ne.s32.totalorder %s252, %s255
    %p261 = scmp.eq.s32.totalorder %s27, 0
    %p262 = por %p260, %p261
    %p263 = scmp.ne.s32.totalorder %s252, %s255
    %p264 = scmp.eq.s32.totalorder %s32, 5
    %p265 = por %p263, %p264
    %p266 = scmp.ne.s32.totalorder %s255, %s256
    %p267 = scmp.eq.s32.totalorder %s32, 0
    %p268 = por %p266, %p267
    %p269 = scmp.ne.s32.totalorder %s255, %s256
    %p270 = scmp.eq.s32.totalorder %s33, 5
    %p271 = por %p269, %p270
    %p273 = scmp.ne.s32.totalorder %s256, %s272
    %p274 = scmp.eq.s32.totalorder %s33, 0
    %p275 = por %p273, %p274
    %s276 = ssub.s32 %s35, %s42
    %p277 = scmp.eq.s32.totalorder %s276, 0
    %s279 = sadd.s32 %s278, 1
    %s280 = scalar_select %p277, %s278, %s279
    %p283 = pneg %p277
    %p284 = scmp.eq.s32.totalorder %s27, 5
    %p285 = por %p283, %p284
    %p286 = scmp.ne.s32.totalorder %s278, %s281
    %p287 = scmp.eq.s32.totalorder %s27, 0
    %p288 = por %p286, %p287
    %p289 = scmp.ne.s32.totalorder %s278, %s281
    %p290 = scmp.eq.s32.totalorder %s32, 5
    %p291 = por %p289, %p290
    %p292 = scmp.ne.s32.totalorder %s281, %s282
    %p293 = scmp.eq.s32.totalorder %s32, 0
    %p294 = por %p292, %p293
    %p295 = scmp.ne.s32.totalorder %s281, %s282
    %p296 = scmp.eq.s32.totalorder %s33, 5
    %p297 = por %p295, %p296
    %p299 = scmp.ne.s32.totalorder %s282, %s298
    %p300 = scmp.eq.s32.totalorder %s33, 0
    %p301 = por %p299, %p300
    %s302 = ssub.s32 %s35, %s42
    %p303 = scmp.eq.s32.totalorder %s302, 0
    %s305 = sadd.s32 %s304, 1
    %s306 = scalar_select %p303, %s304, %s305
    %p309 = pneg %p303
    %p310 = scmp.eq.s32.totalorder %s27, 5
    %p311 = por %p309, %p310
    %p312 = scmp.ne.s32.totalorder %s304, %s307
    %p313 = scmp.eq.s32.totalorder %s27, 0
    %p314 = por %p312, %p313
    %p315 = scmp.ne.s32.totalorder %s304, %s307
    %p316 = scmp.eq.s32.totalorder %s32, 5
    %p317 = por %p315, %p316
    %p318 = scmp.ne.s32.totalorder %s307, %s308
    %p319 = scmp.eq.s32.totalorder %s32, 0
    %p320 = por %p318, %p319
    %p321 = scmp.ne.s32.totalorder %s307, %s308
    %p322 = scmp.eq.s32.totalorder %s33, 5
    %p323 = por %p321, %p322
    %p325 = scmp.ne.s32.totalorder %s308, %s324
    %p326 = scmp.eq.s32.totalorder %s33, 0
    %p327 = por %p325, %p326
    %s328 = ssub.s32 %s35, %s42
    %p329 = scmp.eq.s32.totalorder %s328, 0
    %s331 = sadd.s32 %s330, 1
    %s332 = scalar_select %p329, %s330, %s331
    %p335 = pneg %p329
    %p336 = scmp.eq.s32.totalorder %s27, 5
    %p337 = por %p335, %p336
    %p338 = scmp.ne.s32.totalorder %s330, %s333
    %p339 = scmp.eq.s32.totalorder %s27, 0
    %p340 = por %p338, %p339
    %p341 = scmp.ne.s32.totalorder %s330, %s333
    %p342 = scmp.eq.s32.totalorder %s32, 5
    %p343 = por %p341, %p342
    %p344 = scmp.ne.s32.totalorder %s333, %s334
    %p345 = scmp.eq.s32.totalorder %s32, 0
    %p346 = por %p344, %p345
    %p347 = scmp.ne.s32.totalorder %s333, %s334
    %p348 = scmp.eq.s32.totalorder %s33, 5
    %p349 = por %p347, %p348
    %p351 = scmp.ne.s32.totalorder %s334, %s350
    %p352 = scmp.eq.s32.totalorder %s33, 0
    %p353 = por %p351, %p352
    %s354 = ssub.s32 %s35, %s42
    %p355 = scmp.eq.s32.totalorder %s354, 0
    %s357 = sadd.s32 %s356, 1
    %s358 = scalar_select %p355, %s356, %s357
    %p361 = pneg %p355
    %p362 = scmp.eq.s32.totalorder %s27, 5
    %p363 = por %p361, %p362
    %p364 = scmp.ne.s32.totalorder %s356, %s359
    %p365 = scmp.eq.s32.totalorder %s27, 0
    %p366 = por %p364, %p365
    %p367 = scmp.ne.s32.totalorder %s356, %s359
    %p368 = scmp.eq.s32.totalorder %s32, 5
    %p369 = por %p367, %p368
    %p370 = scmp.ne.s32.totalorder %s359, %s360
    %p371 = scmp.eq.s32.totalorder %s32, 0
    %p372 = por %p370, %p371
    %p373 = scmp.ne.s32.totalorder %s359, %s360
    %p374 = scmp.eq.s32.totalorder %s33, 5
    %p375 = por %p373, %p374
    %p377 = scmp.ne.s32.totalorder %s360, %s376
    %p378 = scmp.eq.s32.totalorder %s33, 0
    %p379 = por %p377, %p378
    %s380 = ssub.s32 %s35, %s42
    %p381 = scmp.eq.s32.totalorder %s380, 0
    %s383 = sadd.s32 %s382, 1
    %s384 = scalar_select %p381, %s382, %s383
    %p387 = pneg %p381
    %p388 = scmp.eq.s32.totalorder %s27, 5
    %p389 = por %p387, %p388
    %p390 = scmp.ne.s32.totalorder %s382, %s385
    %p391 = scmp.eq.s32.totalorder %s27, 0
    %p392 = por %p390, %p391
    %p393 = scmp.ne.s32.totalorder %s382, %s385
    %p394 = scmp.eq.s32.totalorder %s32, 5
    %p395 = por %p393, %p394
    %p396 = scmp.ne.s32.totalorder %s385, %s386
    %p397 = scmp.eq.s32.totalorder %s32, 0
    %p398 = por %p396, %p397
    %p399 = scmp.ne.s32.totalorder %s385, %s386
    %p400 = scmp.eq.s32.totalorder %s33, 5
    %p401 = por %p399, %p400
    %p403 = scmp.ne.s32.totalorder %s386, %s402
    %p404 = scmp.eq.s32.totalorder %s33, 0
    %p405 = por %p403, %p404
    %s406 = ssub.s32 %s35, %s42
    %p407 = scmp.eq.s32.totalorder %s406, 0
    %s409 = sadd.s32 %s408, 1
    %s410 = scalar_select %p407, %s408, %s409
    %p413 = pneg %p407
    %p414 = scmp.eq.s32.totalorder %s27, 5
    %p415 = por %p413, %p414
    %p416 = scmp.ne.s32.totalorder %s408, %s411
    %p417 = scmp.eq.s32.totalorder %s27, 0
    %p418 = por %p416, %p417
    %p419 = scmp.ne.s32.totalorder %s408, %s411
    %p420 = scmp.eq.s32.totalorder %s32, 5
    %p421 = por %p419, %p420
    %p422 = scmp.ne.s32.totalorder %s411, %s412
    %p423 = scmp.eq.s32.totalorder %s32, 0
    %p424 = por %p422, %p423
    %p425 = scmp.ne.s32.totalorder %s411, %s412
    %p426 = scmp.eq.s32.totalorder %s33, 5
    %p427 = por %p425, %p426
    %p429 = scmp.ne.s32.totalorder %s412, %s428
    %p430 = scmp.eq.s32.totalorder %s33, 0
    %p431 = por %p429, %p430
    %s432 = ssub.s32 %s35, %s42
    %p433 = scmp.eq.s32.totalorder %s432, 0
    %s435 = sadd.s32 %s434, 1
    %s436 = scalar_select %p433, %s434, %s435
    %p439 = pneg %p433
    %p440 = scmp.eq.s32.totalorder %s27, 5
    %p441 = por %p439, %p440
    %p442 = scmp.ne.s32.totalorder %s434, %s437
    %p443 = scmp.eq.s32.totalorder %s27, 0
    %p444 = por %p442, %p443
    %p445 = scmp.ne.s32.totalorder %s434, %s437
    %p446 = scmp.eq.s32.totalorder %s32, 5
    %p447 = por %p445, %p446
    %p448 = scmp.ne.s32.totalorder %s437, %s438
    %p449 = scmp.eq.s32.totalorder %s32, 0
    %p450 = por %p448, %p449
    %p451 = scmp.ne.s32.totalorder %s437, %s438
    %p452 = scmp.eq.s32.totalorder %s33, 5
    %p453 = por %p451, %p452
    %p455 = scmp.ne.s32.totalorder %s438, %s454
    %p456 = scmp.eq.s32.totalorder %s33, 0
    %p457 = por %p455, %p456
    %s458 = ssub.s32 %s35, %s42
    %p459 = scmp.eq.s32.totalorder %s458, 0
    %s461 = sadd.s32 %s460, 1
    %s462 = scalar_select %p459, %s460, %s461
    %p465 = pneg %p459
    %p466 = scmp.eq.s32.totalorder %s27, 5
    %p467 = por %p465, %p466
    %p468 = scmp.ne.s32.totalorder %s460, %s463
    %p469 = scmp.eq.s32.totalorder %s27, 0
    %p470 = por %p468, %p469
    %p471 = scmp.ne.s32.totalorder %s460, %s463
    %p472 = scmp.eq.s32.totalorder %s32, 5
    %p473 = por %p471, %p472
    %p474 = scmp.ne.s32.totalorder %s463, %s464
    %p475 = scmp.eq.s32.totalorder %s32, 0
    %p476 = por %p474, %p475
    %p477 = scmp.ne.s32.totalorder %s463, %s464
    %p478 = scmp.eq.s32.totalorder %s33, 5
    %p479 = por %p477, %p478
    %p481 = scmp.ne.s32.totalorder %s464, %s480
    %p482 = scmp.eq.s32.totalorder %s33, 0
    %p483 = por %p481, %p482
    %s485 = sadd.s32 %s484, 1
    %p488 = scmp.eq.s32.totalorder %s27, 5
    %p489 = scmp.ne.s32.totalorder %s484, %s486
    %p490 = scmp.eq.s32.totalorder %s27, 0
    %p491 = por %p489, %p490
    %p492 = scmp.ne.s32.totalorder %s484, %s486
    %p493 = scmp.eq.s32.totalorder %s32, 5
    %p494 = por %p492, %p493
    %p495 = scmp.ne.s32.totalorder %s486, %s487
    %p496 = scmp.eq.s32.totalorder %s32, 0
    %p497 = por %p495, %p496
    %p498 = scmp.ne.s32.totalorder %s486, %s487
    %p499 = scmp.eq.s32.totalorder %s33, 5
    %p500 = por %p498, %p499
    %p502 = scmp.ne.s32.totalorder %s487, %s501
    %p503 = scmp.eq.s32.totalorder %s33, 0
    %p504 = por %p502, %p503
    %s506 = sadd.s32 %s505, 1
    %p509 = scmp.eq.s32.totalorder %s27, 5
    %p510 = scmp.ne.s32.totalorder %s505, %s507
    %p511 = scmp.eq.s32.totalorder %s27, 0
    %p512 = por %p510, %p511
    %p513 = scmp.ne.s32.totalorder %s505, %s507
    %p514 = scmp.eq.s32.totalorder %s32, 5
    %p515 = por %p513, %p514
    %p516 = scmp.ne.s32.totalorder %s507, %s508
    %p517 = scmp.eq.s32.totalorder %s32, 0
    %p518 = por %p516, %p517
    %p519 = scmp.ne.s32.totalorder %s507, %s508
    %p520 = scmp.eq.s32.totalorder %s33, 5
    %p521 = por %p519, %p520
    %p523 = scmp.ne.s32.totalorder %s508, %s522
    %p524 = scmp.eq.s32.totalorder %s33, 0
    %p525 = por %p523, %p524
    %s527 = sadd.s32 %s526, 1
    %p530 = scmp.eq.s32.totalorder %s27, 5
    %p531 = scmp.ne.s32.totalorder %s526, %s528
    %p532 = scmp.eq.s32.totalorder %s27, 0
    %p533 = por %p531, %p532
    %p534 = scmp.ne.s32.totalorder %s526, %s528
    %p535 = scmp.eq.s32.totalorder %s32, 5
    %p536 = por %p534, %p535
    %p537 = scmp.ne.s32.totalorder %s528, %s529
    %p538 = scmp.eq.s32.totalorder %s32, 0
    %p539 = por %p537, %p538
    %p540 = scmp.ne.s32.totalorder %s528, %s529
    %p541 = scmp.eq.s32.totalorder %s33, 5
    %p542 = por %p540, %p541
    %p544 = scmp.ne.s32.totalorder %s529, %s543
    %p545 = scmp.eq.s32.totalorder %s33, 0
    %p546 = por %p544, %p545
    %s548 = sadd.s32 %s547, 1
    %p551 = scmp.eq.s32.totalorder %s27, 5
    %p552 = scmp.ne.s32.totalorder %s547, %s549
    %p553 = scmp.eq.s32.totalorder %s27, 0
    %p554 = por %p552, %p553
    %p555 = scmp.ne.s32.totalorder %s547, %s549
    %p556 = scmp.eq.s32.totalorder %s32, 5
    %p557 = por %p555, %p556
    %p558 = scmp.ne.s32.totalorder %s549, %s550
    %p559 = scmp.eq.s32.totalorder %s32, 0
    %p560 = por %p558, %p559
    %p561 = scmp.ne.s32.totalorder %s549, %s550
    %p562 = scmp.eq.s32.totalorder %s33, 5
    %p563 = por %p561, %p562
    %p565 = scmp.ne.s32.totalorder %s550, %s564
    %p566 = scmp.eq.s32.totalorder %s33, 0
    %p567 = por %p565, %p566
    %s568 = ssub.s32 %s34, %s46
    %p569 = scmp.eq.s32.totalorder %s568, 0
    %s571 = sadd.s32 %s570, 1
    %s572 = scalar_select %p569, %s570, %s571
    %p575 = pneg %p569
    %p576 = scmp.eq.s32.totalorder %s27, 5
    %p577 = por %p575, %p576
    %p578 = scmp.ne.s32.totalorder %s570, %s573
    %p579 = scmp.eq.s32.totalorder %s27, 0
    %p580 = por %p578, %p579
    %p581 = scmp.ne.s32.totalorder %s570, %s573
    %p582 = scmp.eq.s32.totalorder %s32, 5
    %p583 = por %p581, %p582
    %p584 = scmp.ne.s32.totalorder %s573, %s574
    %p585 = scmp.eq.s32.totalorder %s32, 0
    %p586 = por %p584, %p585
    %p587 = scmp.ne.s32.totalorder %s573, %s574
    %p588 = scmp.eq.s32.totalorder %s33, 5
    %p589 = por %p587, %p588
    %p591 = scmp.ne.s32.totalorder %s574, %s590
    %p592 = scmp.eq.s32.totalorder %s33, 0
    %p593 = por %p591, %p592
    %p594 = scmp.le.s32.totalorder 1, %s27
    %p595 = scmp.lt.s32.totalorder %s27, 7
    %p596 = pnand %p594, %p595
    %p597 = pneg %p596
    // Predicated region
    $region9: #{lynxnet2_forward.1} parent=5 // pred_check
      _
    $region10: #{lynxnet2_forward.1} parent=5 // pred_check_branch
      %599 = sbr.rel (%p596) target = $region12
    $region11: #{lynxnet2_forward.1} parent=5 // pred_region
      %s600 = ssub.s32 %s27, 1
      // Predicated region
      $region13: #{lynxnet2_forward.1} parent=11 // pred_check
        %p601 = pneg %p112
      $region14: #{lynxnet2_forward.1} parent=11 // pred_check_branch
        %603 = sbr.rel (%p601) target = $region16
      $region15: #{lynxnet2_forward.1} parent=11 // pred_region
        _
      $region16: #{lynxnet2_forward.1} parent=11 // pred_fallthru
        _
      // Predicated region
      $region17: #{lynxnet2_forward.1} parent=11 // pred_check
        %p604 = pneg %p497
      $region18: #{lynxnet2_forward.1} parent=11 // pred_check_branch
        %606 = sbr.rel (%p604) target = $region20
      $region19: #{lynxnet2_forward.1} parent=11 // pred_region
        _
      $region20: #{lynxnet2_forward.1} parent=11 // pred_fallthru
        _
      // Predicated region
      $region21: #{lynxnet2_forward.1} parent=11 // pred_check
        %p607 = pneg %p518
      $region22: #{lynxnet2_forward.1} parent=11 // pred_check_branch
        %609 = sbr.rel (%p607) target = $region24
      $region23: #{lynxnet2_forward.1} parent=11 // pred_region
        _
      $region24: #{lynxnet2_forward.1} parent=11 // pred_fallthru
        _
      // Predicated region
      $region25: #{lynxnet2_forward.1} parent=11 // pred_check
        %p610 = pneg %p539
      $region26: #{lynxnet2_forward.1} parent=11 // pred_check_branch
        %612 = sbr.rel (%p610) target = $region28
      $region27: #{lynxnet2_forward.1} parent=11 // pred_region
        _
      $region28: #{lynxnet2_forward.1} parent=11 // pred_fallthru
        _
      // Predicated region
      $region29: #{lynxnet2_forward.1} parent=11 // pred_check
        %p613 = pneg %p560
      $region30: #{lynxnet2_forward.1} parent=11 // pred_check_branch
        %615 = sbr.rel (%p613) target = $region32
      $region31: #{lynxnet2_forward.1} parent=11 // pred_region
        _
      $region32: #{lynxnet2_forward.1} parent=11 // pred_fallthru
        _
    $region12: #{lynxnet2_forward.1} parent=5 // pred_fallthru
      _
    %p616 = scmp.lt.s32.totalorder %s27, 6
    // Predicated region
    $region33: #{lynxnet2_forward.1} parent=5 // pred_check
      %p617 = pneg %p616
    $region34: #{lynxnet2_forward.1} parent=5 // pred_check_branch
      %619 = sbr.rel (%p617) target = $region36
    $region35: #{lynxnet2_forward.1} parent=5 // pred_region
      // Predicated region
      $region37: #{lynxnet2_forward.1} parent=35 // pred_check
        %p620 = pneg %p59
      $region38: #{lynxnet2_forward.1} parent=35 // pred_check_branch
        %622 = sbr.rel (%p620) target = $region40
      $region39: #{lynxnet2_forward.1} parent=35 // pred_region
        %p623 = scmp.lt.s32.totalorder %s34, 1
        %s624 = scalar_select %p623, %s34, 1
        %s625 = smul.addr %s624, 8
        %s626 = smul.addr %s625, 4
        %s627 = scalar_lea.vmem %s0, %s626
      $region40: #{lynxnet2_forward.1} parent=35 // pred_fallthru
        _
      // Predicated region
      $region41: #{lynxnet2_forward.1} parent=35 // pred_check
        %p628 = pneg %p85
      $region42: #{lynxnet2_forward.1} parent=35 // pred_check_branch
        %630 = sbr.rel (%p628) target = $region44
      $region43: #{lynxnet2_forward.1} parent=35 // pred_region
        %p631 = scmp.lt.s32.totalorder %s34, 1
        %s632 = scalar_select %p631, %s34, 1
        %s633 = scalar_lea.vmem %s1, %s632
      $region44: #{lynxnet2_forward.1} parent=35 // pred_fallthru
        _
      // Predicated region
      $region45: #{lynxnet2_forward.1} parent=35 // pred_check
        %p634 = pneg %p132
      $region46: #{lynxnet2_forward.1} parent=35 // pred_check_branch
        %636 = sbr.rel (%p634) target = $region48
      $region47: #{lynxnet2_forward.1} parent=35 // pred_region
        %p637 = scmp.lt.s32.totalorder %s35, 2
        %s638 = scalar_select %p637, %s35, 2
        %s639 = scalar_lea.vmem %s3, %s638
      $region48: #{lynxnet2_forward.1} parent=35 // pred_fallthru
        _
      // Predicated region
      $region49: #{lynxnet2_forward.1} parent=35 // pred_check
        %p640 = pneg %p158
      $region50: #{lynxnet2_forward.1} parent=35 // pred_check_branch
        %642 = sbr.rel (%p640) target = $region52
      $region51: #{lynxnet2_forward.1} parent=35 // pred_region
        %p643 = scmp.lt.s32.totalorder %s35, 2
        %s644 = scalar_select %p643, %s35, 2
        %s645 = scalar_lea.vmem %s4, %s644
      $region52: #{lynxnet2_forward.1} parent=35 // pred_fallthru
        _
      // Predicated region
      $region53: #{lynxnet2_forward.1} parent=35 // pred_check
        %p646 = pneg %p184
      $region54: #{lynxnet2_forward.1} parent=35 // pred_check_branch
        %648 = sbr.rel (%p646) target = $region56
      $region55: #{lynxnet2_forward.1} parent=35 // pred_region
        %p649 = scmp.lt.s32.totalorder %s35, 2
        %s650 = scalar_select %p649, %s35, 2
        %s651 = smul.addr %s650, 4
        %s652 = smul.addr %s651, 8
        %s653 = scalar_lea.vmem %s5, %s652
      $region56: #{lynxnet2_forward.1} parent=35 // pred_fallthru
        _
      // Predicated region
      $region57: #{lynxnet2_forward.1} parent=35 // pred_check
        %p654 = pneg %p210
      $region58: #{lynxnet2_forward.1} parent=35 // pred_check_branch
        %656 = sbr.rel (%p654) target = $region60
      $region59: #{lynxnet2_forward.1} parent=35 // pred_region
        %p657 = scmp.lt.s32.totalorder %s35, 2
        %s658 = scalar_select %p657, %s35, 2
        %s659 = scalar_lea.vmem %s6, %s658
      $region60: #{lynxnet2_forward.1} parent=35 // pred_fallthru
        _
      // Predicated region
      $region61: #{lynxnet2_forward.1} parent=35 // pred_check
        %p660 = pneg %p236
      $region62: #{lynxnet2_forward.1} parent=35 // pred_check_branch
        %662 = sbr.rel (%p660) target = $region64
      $region63: #{lynxnet2_forward.1} parent=35 // pred_region
        %p663 = scmp.lt.s32.totalorder %s35, 2
        %s664 = scalar_select %p663, %s35, 2
        %s665 = smul.addr %s664, 16
        %s666 = smul.addr %s665, 4
        %s667 = scalar_lea.vmem %s7, %s666
      $region64: #{lynxnet2_forward.1} parent=35 // pred_fallthru
        _
      // Predicated region
      $region65: #{lynxnet2_forward.1} parent=35 // pred_check
        %p668 = pneg %p262
      $region66: #{lynxnet2_forward.1} parent=35 // pred_check_branch
        %670 = sbr.rel (%p668) target = $region68
      $region67: #{lynxnet2_forward.1} parent=35 // pred_region
        %p671 = scmp.lt.s32.totalorder %s35, 2
        %s672 = scalar_select %p671, %s35, 2
        %s673 = scalar_lea.vmem %s8, %s672
      $region68: #{lynxnet2_forward.1} parent=35 // pred_fallthru
        _
      // Predicated region
      $region69: #{lynxnet2_forward.1} parent=35 // pred_check
        %p674 = pneg %p288
      $region70: #{lynxnet2_forward.1} parent=35 // pred_check_branch
        %676 = sbr.rel (%p674) target = $region72
      $region71: #{lynxnet2_forward.1} parent=35 // pred_region
        %p677 = scmp.lt.s32.totalorder %s35, 2
        %s678 = scalar_select %p677, %s35, 2
        %s679 = smul.addr %s678, 16
        %s680 = smul.addr %s679, 4
        %s681 = scalar_lea.vmem %s9, %s680
      $region72: #{lynxnet2_forward.1} parent=35 // pred_fallthru
        _
      // Predicated region
      $region73: #{lynxnet2_forward.1} parent=35 // pred_check
        %p682 = pneg %p314
      $region74: #{lynxnet2_forward.1} parent=35 // pred_check_branch
        %684 = sbr.rel (%p682) target = $region76
      $region75: #{lynxnet2_forward.1} parent=35 // pred_region
        %p685 = scmp.lt.s32.totalorder %s35, 2
        %s686 = scalar_select %p685, %s35, 2
        %s687 = scalar_lea.vmem %s10, %s686
      $region76: #{lynxnet2_forward.1} parent=35 // pred_fallthru
        _
      // Predicated region
      $region77: #{lynxnet2_forward.1} parent=35 // pred_check
        %p688 = pneg %p340
      $region78: #{lynxnet2_forward.1} parent=35 // pred_check_branch
        %690 = sbr.rel (%p688) target = $region80
      $region79: #{lynxnet2_forward.1} parent=35 // pred_region
        %p691 = scmp.lt.s32.totalorder %s35, 2
        %s692 = scalar_select %p691, %s35, 2
        %s693 = smul.addr %s692, 16
        %s694 = smul.addr %s693, 4
        %s695 = scalar_lea.vmem %s11, %s694
      $region80: #{lynxnet2_forward.1} parent=35 // pred_fallthru
        _
      // Predicated region
      $region81: #{lynxnet2_forward.1} parent=35 // pred_check
        %p696 = pneg %p366
      $region82: #{lynxnet2_forward.1} parent=35 // pred_check_branch
        %698 = sbr.rel (%p696) target = $region84
      $region83: #{lynxnet2_forward.1} parent=35 // pred_region
        %p699 = scmp.lt.s32.totalorder %s35, 2
        %s700 = scalar_select %p699, %s35, 2
        %s701 = scalar_lea.vmem %s12, %s700
      $region84: #{lynxnet2_forward.1} parent=35 // pred_fallthru
        _
      // Predicated region
      $region85: #{lynxnet2_forward.1} parent=35 // pred_check
        %p702 = pneg %p392
      $region86: #{lynxnet2_forward.1} parent=35 // pred_check_branch
        %704 = sbr.rel (%p702) target = $region88
      $region87: #{lynxnet2_forward.1} parent=35 // pred_region
        %p705 = scmp.lt.s32.totalorder %s35, 2
        %s706 = scalar_select %p705, %s35, 2
        %s707 = smul.addr %s706, 16
        %s708 = smul.addr %s707, 4
        %s709 = scalar_lea.vmem %s13, %s708
      $region88: #{lynxnet2_forward.1} parent=35 // pred_fallthru
        _
      // Predicated region
      $region89: #{lynxnet2_forward.1} parent=35 // pred_check
        %p710 = pneg %p418
      $region90: #{lynxnet2_forward.1} parent=35 // pred_check_branch
        %712 = sbr.rel (%p710) target = $region92
      $region91: #{lynxnet2_forward.1} parent=35 // pred_region
        %p713 = scmp.lt.s32.totalorder %s35, 2
        %s714 = scalar_select %p713, %s35, 2
        %s715 = scalar_lea.vmem %s14, %s714
      $region92: #{lynxnet2_forward.1} parent=35 // pred_fallthru
        _
      // Predicated region
      $region93: #{lynxnet2_forward.1} parent=35 // pred_check
        %p716 = pneg %p444
      $region94: #{lynxnet2_forward.1} parent=35 // pred_check_branch
        %718 = sbr.rel (%p716) target = $region96
      $region95: #{lynxnet2_forward.1} parent=35 // pred_region
        %p719 = scmp.lt.s32.totalorder %s35, 2
        %s720 = scalar_select %p719, %s35, 2
        %s721 = smul.addr %s720, 16
        %s722 = smul.addr %s721, 4
        %s723 = scalar_lea.vmem %s15, %s722
      $region96: #{lynxnet2_forward.1} parent=35 // pred_fallthru
        _
      // Predicated region
      $region97: #{lynxnet2_forward.1} parent=35 // pred_check
        %p724 = pneg %p470
      $region98: #{lynxnet2_forward.1} parent=35 // pred_check_branch
        %726 = sbr.rel (%p724) target = $region100
      $region99: #{lynxnet2_forward.1} parent=35 // pred_region
        %p727 = scmp.lt.s32.totalorder %s35, 2
        %s728 = scalar_select %p727, %s35, 2
        %s729 = scalar_lea.vmem %s16, %s728
      $region100: #{lynxnet2_forward.1} parent=35 // pred_fallthru
        _
    $region36: #{lynxnet2_forward.1} parent=5 // pred_fallthru
      _
    %p730 = scmp.le.s32.totalorder 1, %s27
    %p731 = scmp.lt.s32.totalorder %s27, 7
    %p732 = pnand %p730, %p731
    %p733 = pneg %p732
    // Predicated region
    $region101: #{lynxnet2_forward.1} parent=5 // pred_check
      _
    $region102: #{lynxnet2_forward.1} parent=5 // pred_check_branch
      %735 = sbr.rel (%p732) target = $region104
    $region103: #{lynxnet2_forward.1} parent=5 // pred_region
      %s736 = ssub.s32 %s27, 1
      %p737 = scmp.lt.s32.totalorder %s36, 1
      %s738 = scalar_select %p737, %s36, 1
      %s739 = smul.addr %s738, 8
      %s740 = smul.addr %s739, 4
      %s741 = scalar_lea.vmem %s0, %s740
      %p742 = pneg %p65
      %p743 = pneg %p62
      %p744 = scmp.lt.s32.totalorder %s36, 1
      %s745 = scalar_select %p744, %s36, 1
      %s746 = scalar_lea.vmem %s1, %s745
      %p747 = pneg %p91
      %p748 = pneg %p88
      %p749 = pneg %p112
      %p750 = pneg %p109
      %p751 = scmp.lt.s32.totalorder %s37, 2
      %s752 = scalar_select %p751, %s37, 2
      %s753 = scalar_lea.vmem %s3, %s752
      %p754 = pneg %p138
      %p755 = pneg %p135
      %p756 = scmp.lt.s32.totalorder %s37, 2
      %s757 = scalar_select %p756, %s37, 2
      %s758 = scalar_lea.vmem %s4, %s757
      %p759 = pneg %p164
      %p760 = pneg %p161
      %p761 = scmp.lt.s32.totalorder %s37, 2
      %s762 = scalar_select %p761, %s37, 2
      %s763 = smul.addr %s762, 4
      %s764 = smul.addr %s763, 8
      %s765 = scalar_lea.vmem %s5, %s764
      %p766 = pneg %p190
      %p767 = pneg %p187
      %p768 = scmp.lt.s32.totalorder %s37, 2
      %s769 = scalar_select %p768, %s37, 2
      %s770 = scalar_lea.vmem %s6, %s769
      %p771 = pneg %p216
      %p772 = pneg %p213
      %p773 = scmp.lt.s32.totalorder %s37, 2
      %s774 = scalar_select %p773, %s37, 2
      %s775 = smul.addr %s774, 16
      %s776 = smul.addr %s775, 4
      %s777 = scalar_lea.vmem %s7, %s776
      %p778 = pneg %p242
      %p779 = pneg %p239
      %p780 = scmp.lt.s32.totalorder %s37, 2
      %s781 = scalar_select %p780, %s37, 2
      %s782 = scalar_lea.vmem %s8, %s781
      %p783 = pneg %p268
      %p784 = pneg %p265
      %p785 = scmp.lt.s32.totalorder %s37, 2
      %s786 = scalar_select %p785, %s37, 2
      %s787 = smul.addr %s786, 16
      %s788 = smul.addr %s787, 4
      %s789 = scalar_lea.vmem %s9, %s788
      %p790 = pneg %p294
      %p791 = pneg %p291
      %p792 = scmp.lt.s32.totalorder %s37, 2
      %s793 = scalar_select %p792, %s37, 2
      %s794 = scalar_lea.vmem %s10, %s793
      %p795 = pneg %p320
      %p796 = pneg %p317
      %p797 = scmp.lt.s32.totalorder %s37, 2
      %s798 = scalar_select %p797, %s37, 2
      %s799 = smul.addr %s798, 16
      %s800 = smul.addr %s799, 4
      %s801 = scalar_lea.vmem %s11, %s800
      %p802 = pneg %p346
      %p803 = pneg %p343
      %p804 = scmp.lt.s32.totalorder %s37, 2
      %s805 = scalar_select %p804, %s37, 2
      %s806 = scalar_lea.vmem %s12, %s805
      %p807 = pneg %p372
      %p808 = pneg %p369
      %p809 = scmp.lt.s32.totalorder %s37, 2
      %s810 = scalar_select %p809, %s37, 2
      %s811 = smul.addr %s810, 16
      %s812 = smul.addr %s811, 4
      %s813 = scalar_lea.vmem %s13, %s812
      %p814 = pneg %p398
      %p815 = pneg %p395
      %p816 = scmp.lt.s32.totalorder %s37, 2
      %s817 = scalar_select %p816, %s37, 2
      %s818 = scalar_lea.vmem %s14, %s817
      %p819 = pneg %p424
      %p820 = pneg %p421
      %p821 = scmp.lt.s32.totalorder %s37, 2
      %s822 = scalar_select %p821, %s37, 2
      %s823 = smul.addr %s822, 16
      %s824 = smul.addr %s823, 4
      %s825 = scalar_lea.vmem %s15, %s824
      %p826 = pneg %p450
      %p827 = pneg %p447
      %p828 = scmp.lt.s32.totalorder %s37, 2
      %s829 = scalar_select %p828, %s37, 2
      %s830 = scalar_lea.vmem %s16, %s829
      %p831 = pneg %p476
      %p832 = pneg %p473
      %p833 = pneg %p497
      %p834 = pneg %p494
      %p835 = pneg %p518
      %p836 = pneg %p515
      %p837 = pneg %p539
      %p838 = pneg %p536
      %p839 = pneg %p560
      %p840 = pneg %p557
      %p841 = pneg %p586
      %p842 = pneg %p583
      %p843 = scmp.lt.s32.totalorder %s36, 1
      %s844 = scalar_select %p843, %s36, 1
      %s845 = smul.addr %s844, 8
      %s846 = smul.addr %s845, 8
      %s847 = scalar_lea.vmem %s21, %s846
      %p848 = scmp.lt.s32.totalorder %s36, 1
      %s849 = scalar_select %p848, %s36, 1
      %s850 = smul.addr %s849, 8
      %s851 = smul.addr %s850, 4
      %s852 = scalar_lea.vmem %s0, %s851
      %p853 = scmp.lt.s32.totalorder %s36, 1
      %s854 = scalar_select %p853, %s36, 1
      %s855 = scalar_lea.vmem %s1, %s854
      %p856 = scmp.lt.s32.totalorder %s37, 2
      %s857 = scalar_select %p856, %s37, 2
      %s858 = scalar_lea.vmem %s3, %s857
      %p859 = scmp.lt.s32.totalorder %s37, 2
      %s860 = scalar_select %p859, %s37, 2
      %s861 = scalar_lea.vmem %s4, %s860
      %p862 = scmp.lt.s32.totalorder %s37, 2
      %s863 = scalar_select %p862, %s37, 2
      %s864 = smul.addr %s863, 4
      %s865 = smul.addr %s864, 8
      %s866 = scalar_lea.vmem %s5, %s865
      %p867 = scmp.lt.s32.totalorder %s37, 2
      %s868 = scalar_select %p867, %s37, 2
      %s869 = scalar_lea.vmem %s6, %s868
      %p870 = scmp.lt.s32.totalorder %s37, 2
      %s871 = scalar_select %p870, %s37, 2
      %s872 = smul.addr %s871, 16
      %s873 = smul.addr %s872, 4
      %s874 = scalar_lea.vmem %s7, %s873
      %p875 = scmp.lt.s32.totalorder %s37, 2
      %s876 = scalar_select %p875, %s37, 2
      %s877 = scalar_lea.vmem %s8, %s876
      %p878 = scmp.lt.s32.totalorder %s37, 2
      %s879 = scalar_select %p878, %s37, 2
      %s880 = smul.addr %s879, 16
      %s881 = smul.addr %s880, 4
      %s882 = scalar_lea.vmem %s9, %s881
      %p883 = scmp.lt.s32.totalorder %s37, 2
      %s884 = scalar_select %p883, %s37, 2
      %s885 = scalar_lea.vmem %s10, %s884
      %p886 = scmp.lt.s32.totalorder %s37, 2
      %s887 = scalar_select %p886, %s37, 2
      %s888 = smul.addr %s887, 16
      %s889 = smul.addr %s888, 4
      %s890 = scalar_lea.vmem %s11, %s889
      %p891 = scmp.lt.s32.totalorder %s37, 2
      %s892 = scalar_select %p891, %s37, 2
      %s893 = scalar_lea.vmem %s12, %s892
      %p894 = scmp.lt.s32.totalorder %s37, 2
      %s895 = scalar_select %p894, %s37, 2
      %s896 = smul.addr %s895, 16
      %s897 = smul.addr %s896, 4
      %s898 = scalar_lea.vmem %s13, %s897
      %p899 = scmp.lt.s32.totalorder %s37, 2
      %s900 = scalar_select %p899, %s37, 2
      %s901 = scalar_lea.vmem %s14, %s900
      %p902 = scmp.lt.s32.totalorder %s37, 2
      %s903 = scalar_select %p902, %s37, 2
      %s904 = smul.addr %s903, 16
      %s905 = smul.addr %s904, 4
      %s906 = scalar_lea.vmem %s15, %s905
      %p907 = scmp.lt.s32.totalorder %s37, 2
      %s908 = scalar_select %p907, %s37, 2
      %s909 = scalar_lea.vmem %s16, %s908
      %p910 = scmp.lt.s32.totalorder %s36, 1
      %s911 = scalar_select %p910, %s36, 1
      %s912 = smul.addr %s911, 8
      %s913 = smul.addr %s912, 8
      %s914 = scalar_lea.vmem %s21, %s913
      %p916 = scmp.eq.s32.totalorder %s37, 0
      // Predicated region
      $region105: #{lynxnet2_forward.1} parent=103 // pred_check
        %p917 = pneg %p916
      $region106: #{lynxnet2_forward.1} parent=103 // pred_check_branch
        %919 = sbr.rel (%p917) target = $region108
      $region107: #{lynxnet2_forward.1} parent=103 // pred_region
        %v920 = vld [vmem:[%s852] sm:$0xf]
        %v921 = vld [vmem:[%s852 + $0x4] sm:$0xf]
        %v922 = vld [vmem:[%s852 + $0x8] sm:$0xf]
        %v923 = vld [vmem:[%s852 + $0xc] sm:$0xf]
        %v924 = vld [vmem:[%s852 + $0x10] sm:$0xf]
        %v925 = vld [vmem:[%s852 + $0x14] sm:$0xf]
        %v926 = vld [vmem:[%s852 + $0x18] sm:$0xf]
        %v927 = vld [vmem:[%s852 + $0x1c] sm:$0xf]
        %v928 = vld [vmem:[%s2] sm:$0xf]
        %v929 = vld [vmem:[%s2 + $0x4] sm:$0xf]
        %v930 = vld [vmem:[%s2 + $0x8] sm:$0xf]
        %v931 = vld [vmem:[%s2 + $0xc] sm:$0xf]
        %v932 = vld [vmem:[%s2 + $0x10] sm:$0xf]
        %v933 = vld [vmem:[%s2 + $0x14] sm:$0xf]
        %v934 = vld [vmem:[%s2 + $0x18] sm:$0xf]
        %v935 = vld [vmem:[%s2 + $0x1c] sm:$0xf]
        %v936 = vld [vmem:[%s2 + $0x20] sm:$0xf]
        %v937 = vld [vmem:[%s2 + $0x24] sm:$0xf]
        %v938 = vld [vmem:[%s2 + $0x28] sm:$0xf]
        %v939 = vld [vmem:[%s2 + $0x2c] sm:$0xf]
        %v940 = vld [vmem:[%s2 + $0x30] sm:$0xf]
        %v941 = vld [vmem:[%s2 + $0x34] sm:$0xf]
        %v942 = vld [vmem:[%s2 + $0x38] sm:$0xf]
        %v943 = vld [vmem:[%s2 + $0x3c] sm:$0xf]
        %v944 = vld [vmem:[%s855] sm:$0x1]
        %v946 = vlaneseq
        %v947 = vshrl.u32 %v946, 7
        %v948 = vsub.s32 0, %v947
        %v949 = vrot.slane %v944, %v948
        %v959 = vunpack.c.l.b16 %v920
        %v960 = vunpack.c.l.b16 %v921
        %v961 = vunpack.c.l.b16 %v922
        %v962 = vunpack.c.l.b16 %v923
        %v963 = vunpack.c.l.b16 %v924
        %v964 = vunpack.c.l.b16 %v925
        %v965 = vunpack.c.l.b16 %v926
        %v966 = vunpack.c.l.b16 %v927
        %v967 = vpack.c.b16 %v960, %v959
        %v968 = vpack.c.b16 %v962, %v961
        %v969 = vpack.c.b16 %v964, %v963
        %v970 = vpack.c.b16 %v966, %v965
        %v991 = vunpack.c.l.b16 %v928
        %v992 = vunpack.c.l.b16 %v929
        %v993 = vunpack.c.l.b16 %v930
        %v994 = vunpack.c.l.b16 %v931
        %v995 = vunpack.c.l.b16 %v932
        %v996 = vunpack.c.l.b16 %v933
        %v997 = vunpack.c.l.b16 %v934
        %v998 = vunpack.c.l.b16 %v935
        %v999 = vunpack.c.l.b16 %v936
        %v1000 = vunpack.c.l.b16 %v937
        %v1001 = vunpack.c.l.b16 %v938
        %v1002 = vunpack.c.l.b16 %v939
        %v1003 = vunpack.c.l.b16 %v940
        %v1004 = vunpack.c.l.b16 %v941
        %v1005 = vunpack.c.l.b16 %v942
        %v1006 = vunpack.c.l.b16 %v943
        %v1007 = vpack.c.b16 %v992, %v991
        %v1008 = vpack.c.b16 %v994, %v993
        %v1009 = vpack.c.b16 %v996, %v995
        %v1010 = vpack.c.b16 %v998, %v997
        %v1011 = vpack.c.b16 %v1000, %v999
        %v1012 = vpack.c.b16 %v1002, %v1001
        %v1013 = vpack.c.b16 %v1004, %v1003
        %v1014 = vpack.c.b16 %v1006, %v1005
        %1023 = vmatprep.subr.bf16.mxu0 0
        %1024 = vmatpush1.bf16.msra.mxu0 %v1007
        %1025 = vmatprep.subr.bf16.mxu0 0
        %1026 = vmatpush1.bf16.msra.mxu0 %v1008
        %1027 = vmatprep.subr.bf16.mxu0 0
        %1028 = vmatpush1.bf16.msra.mxu0 %v1009
        %1029 = vmatprep.subr.bf16.mxu0 0
        %1030 = vmatpush1.bf16.msra.mxu0 %v1010
        %1031 = vmatprep.subr.bf16.mxu0 0
        %1032 = vmatpush1.bf16.msra.mxu0 %v1011
        %1033 = vmatprep.subr.bf16.mxu0 0
        %1034 = vmatpush1.bf16.msra.mxu0 %v1012
        %1035 = vmatprep.subr.bf16.mxu0 0
        %1036 = vmatpush1.bf16.msra.mxu0 %v1013
        %1037 = vmatprep.subr.bf16.mxu0 0
        %1038 = vmatpush1.bf16.msra.mxu0 %v1014
        %1039 = vmatprep.subr.bf16.mxu0 0
        %1040 = vmatpush1.bf16.msra.mxu0 0
        %1041 = vmatprep.subr.bf16.mxu0 0
        %1042 = vmatpush1.bf16.msra.mxu0 0
        %1043 = vmatprep.subr.bf16.mxu0 0
        %1044 = vmatpush1.bf16.msra.mxu0 0
        %1045 = vmatprep.subr.bf16.mxu0 0
        %1046 = vmatpush1.bf16.msra.mxu0 0
        %1047 = vmatprep.subr.bf16.mxu0 0
        %1048 = vmatpush1.bf16.msra.mxu0 0
        %1049 = vmatprep.subr.bf16.mxu0 0
        %1050 = vmatpush1.bf16.msra.mxu0 0
        %1051 = vmatprep.subr.bf16.mxu0 0
        %1052 = vmatpush1.bf16.msra.mxu0 0
        %1053 = vmatprep.subr.bf16.mxu0 0
        %1054 = vmatpush1.bf16.msra.mxu0 0
        %1055 = vmatprep.mubr.bf16.mxu0 0
        %1056 = vmatmul.mubr.bf16.gmra.mrb[0].mxu0 %v967
        %v1057 = vpop.f32.mrb[0].mxu0
        %v1058 = vadd.f32 %v949, %v1057
        %v1059 = vpop.f32.mrb[0].mxu0
        %v1060 = vpop.f32.mrb[0].mxu0
        %v1061 = vadd.f32 %v949, %v1060
        %v1062 = vpop.f32.mrb[0].mxu0
        %1063 = vmatprep.mubr.bf16.mxu0 0
        %1064 = vmatmul.mubr.bf16.gmra.mrb[0].mxu0 %v968
        %v1065 = vpop.f32.mrb[0].mxu0
        %v1066 = vadd.f32 %v949, %v1065
        %v1067 = vpop.f32.mrb[0].mxu0
        %v1068 = vpop.f32.mrb[0].mxu0
        %v1069 = vadd.f32 %v949, %v1068
        %v1070 = vpop.f32.mrb[0].mxu0
        %1071 = vmatprep.mubr.bf16.mxu0 0
        %1072 = vmatmul.mubr.bf16.gmra.mrb[0].mxu0 %v969
        %v1073 = vpop.f32.mrb[0].mxu0
        %v1074 = vadd.f32 %v949, %v1073
        %v1075 = vpop.f32.mrb[0].mxu0
        %v1076 = vpop.f32.mrb[0].mxu0
        %v1077 = vadd.f32 %v949, %v1076
        %v1078 = vpop.f32.mrb[0].mxu0
        %1079 = vmatprep.mubr.bf16.mxu0 0
        %1080 = vmatmul.mubr.bf16.gmra.mrb[0].mxu0 %v970
        %v1081 = vpop.f32.mrb[0].mxu0
        %v1082 = vadd.f32 %v949, %v1081
        %v1083 = vpop.f32.mrb[0].mxu0
        %v1084 = vpop.f32.mrb[0].mxu0
        %v1085 = vadd.f32 %v949, %v1084
        %v1086 = vpop.f32.mrb[0].mxu0
        %1087 = vdwg.mxu0
        %1088 = vst [vmem:[#allocation2] sm:$0xff] %v1058
        %1089 = vst [vmem:[#allocation2 + $0x8] sm:$0xff] %v1061
        %1090 = vst [vmem:[#allocation2 + $0x10] sm:$0xff] %v1066
        %1091 = vst [vmem:[#allocation2 + $0x18] sm:$0xff] %v1069
        %1092 = vst [vmem:[#allocation2 + $0x20] sm:$0xff] %v1074
        %1093 = vst [vmem:[#allocation2 + $0x28] sm:$0xff] %v1077
        %1094 = vst [vmem:[#allocation2 + $0x30] sm:$0xff] %v1082
        %1095 = vst [vmem:[#allocation2 + $0x38] sm:$0xff] %v1085
      $region108: #{lynxnet2_forward.1} parent=103 // pred_fallthru
        _
      %v1096 = vld [vmem:[#allocation2] sm:$0xff]
      %v1097 = vld [vmem:[#allocation2 + $0x8] sm:$0xff]
      %v1098 = vld [vmem:[#allocation2 + $0x10] sm:$0xff]
      %v1099 = vld [vmem:[#allocation2 + $0x18] sm:$0xff]
      %v1100 = vld [vmem:[#allocation2 + $0x20] sm:$0xff]
      %v1101 = vld [vmem:[#allocation2 + $0x28] sm:$0xff]
      %v1102 = vld [vmem:[#allocation2 + $0x30] sm:$0xff]
      %v1103 = vld [vmem:[#allocation2 + $0x38] sm:$0xff]
      %v1104 = vld [vmem:[%s858] sm:$0x1]
      %v1105 = vld [vmem:[%s861] sm:$0x1]
      %1106 = vadd.xlane.f32.xlu0 %v1096
      %v1107 = vpop.xlane.xlu0 %1106
      %1108 = vadd.xlane.f32.xlu0 %v1097
      %v1109 = vpop.xlane.xlu0 %1108
      %1110 = vadd.xlane.f32.xlu0 %v1098
      %v1111 = vpop.xlane.xlu0 %1110
      %1112 = vadd.xlane.f32.xlu0 %v1099
      %v1113 = vpop.xlane.xlu0 %1112
      %1114 = vadd.xlane.f32.xlu0 %v1100
      %v1115 = vpop.xlane.xlu0 %1114
      %1116 = vadd.xlane.f32.xlu0 %v1101
      %v1117 = vpop.xlane.xlu0 %1116
      %1118 = vadd.xlane.f32.xlu0 %v1102
      %v1119 = vpop.xlane.xlu0 %1118
      %1120 = vadd.xlane.f32.xlu0 %v1103
      %v1121 = vpop.xlane.xlu0 %1120
      %v1122 = vrcp.pop 128.0
      %v1123 = vmul.f32 %v1107, %v1122
      %v1124 = vmul.f32 %v1109, %v1122
      %v1125 = vmul.f32 %v1111, %v1122
      %v1126 = vmul.f32 %v1113, %v1122
      %v1127 = vmul.f32 %v1115, %v1122
      %v1128 = vmul.f32 %v1117, %v1122
      %v1129 = vmul.f32 %v1119, %v1122
      %v1130 = vmul.f32 %v1121, %v1122
      %v1131 = vsub.f32 %v1096, %v1123
      %v1132 = vsub.f32 %v1097, %v1124
      %v1133 = vsub.f32 %v1098, %v1125
      %v1134 = vsub.f32 %v1099, %v1126
      %v1135 = vsub.f32 %v1100, %v1127
      %v1136 = vsub.f32 %v1101, %v1128
      %v1137 = vsub.f32 %v1102, %v1129
      %v1138 = vsub.f32 %v1103, %v1130
      %v1139 = vmul.f32 %v1131, %v1131
      %v1140 = vmul.f32 %v1132, %v1132
      %v1141 = vmul.f32 %v1133, %v1133
      %v1142 = vmul.f32 %v1134, %v1134
      %v1143 = vmul.f32 %v1135, %v1135
      %v1144 = vmul.f32 %v1136, %v1136
      %v1145 = vmul.f32 %v1137, %v1137
      %v1146 = vmul.f32 %v1138, %v1138
      %1147 = vadd.xlane.f32.xlu0 %v1139
      %v1148 = vpop.xlane.xlu0 %1147
      %1149 = vadd.xlane.f32.xlu0 %v1140
      %v1150 = vpop.xlane.xlu0 %1149
      %1151 = vadd.xlane.f32.xlu0 %v1141
      %v1152 = vpop.xlane.xlu0 %1151
      %1153 = vadd.xlane.f32.xlu0 %v1142
      %v1154 = vpop.xlane.xlu0 %1153
      %1155 = vadd.xlane.f32.xlu0 %v1143
      %v1156 = vpop.xlane.xlu0 %1155
      %1157 = vadd.xlane.f32.xlu0 %v1144
      %v1158 = vpop.xlane.xlu0 %1157
      %1159 = vadd.xlane.f32.xlu0 %v1145
      %v1160 = vpop.xlane.xlu0 %1159
      %1161 = vadd.xlane.f32.xlu0 %v1146
      %v1162 = vpop.xlane.xlu0 %1161
      %v1163 = vmul.f32 %v1148, %v1122
      %v1164 = vmul.f32 %v1150, %v1122
      %v1165 = vmul.f32 %v1152, %v1122
      %v1166 = vmul.f32 %v1154, %v1122
      %v1167 = vmul.f32 %v1156, %v1122
      %v1168 = vmul.f32 %v1158, %v1122
      %v1169 = vmul.f32 %v1160, %v1122
      %v1170 = vmul.f32 %v1162, %v1122
      %v1171 = vadd.f32 %v1163, 1e-05
      %v1172 = vadd.f32 %v1164, 1e-05
      %v1173 = vadd.f32 %v1165, 1e-05
      %v1174 = vadd.f32 %v1166, 1e-05
      %v1175 = vadd.f32 %v1167, 1e-05
      %v1176 = vadd.f32 %v1168, 1e-05
      %v1177 = vadd.f32 %v1169, 1e-05
      %v1178 = vadd.f32 %v1170, 1e-05
      %v1179 = vrsqrt.pop %v1171
      %v1180 = vrsqrt.pop %v1172
      %v1181 = vrsqrt.pop %v1173
      %v1182 = vrsqrt.pop %v1174
      %v1183 = vrsqrt.pop %v1175
      %v1184 = vrsqrt.pop %v1176
      %v1185 = vrsqrt.pop %v1177
      %v1186 = vrsqrt.pop %v1178
      %v1187 = vmul.f32 %v1131, %v1179
      %v1188 = vmul.f32 %v1132, %v1180
      %v1189 = vmul.f32 %v1133, %v1181
      %v1190 = vmul.f32 %v1134, %v1182
      %v1191 = vmul.f32 %v1135, %v1183
      %v1192 = vmul.f32 %v1136, %v1184
      %v1193 = vmul.f32 %v1137, %v1185
      %v1194 = vmul.f32 %v1138, %v1186
      %v1196 = vlaneseq
      %v1197 = vshrl.u32 %v1196, 7
      %v1198 = vsub.s32 0, %v1197
      %v1199 = vrot.slane %v1104, %v1198
      %v1201 = vmul.f32 %v1187, %v1199
      %v1202 = vmul.f32 %v1188, %v1199
      %v1203 = vmul.f32 %v1189, %v1199
      %v1204 = vmul.f32 %v1190, %v1199
      %v1205 = vmul.f32 %v1191, %v1199
      %v1206 = vmul.f32 %v1192, %v1199
      %v1207 = vmul.f32 %v1193, %v1199
      %v1208 = vmul.f32 %v1194, %v1199
      %v1210 = vlaneseq
      %v1211 = vshrl.u32 %v1210, 7
      %v1212 = vsub.s32 0, %v1211
      %v1213 = vrot.slane %v1105, %v1212
      %v1215 = vadd.f32 %v1201, %v1213
      %v1216 = vadd.f32 %v1202, %v1213
      %v1217 = vadd.f32 %v1203, %v1213
      %v1218 = vadd.f32 %v1204, %v1213
      %v1219 = vadd.f32 %v1205, %v1213
      %v1220 = vadd.f32 %v1206, %v1213
      %v1221 = vadd.f32 %v1207, %v1213
      %v1222 = vadd.f32 %v1208, %v1213
      %v1223 = vlaneseq
      %v1224 = vshrl.u32 %v1223, 7
      %v1225 = vadd.s32 %v1224, 8
      %v1226 = vadd.s32 %v1224, 16
      %v1227 = vadd.s32 %v1224, 24
      %v1228 = vadd.s32 %v1224, 32
      %v1229 = vadd.s32 %v1224, 40
      %v1230 = vadd.s32 %v1224, 48
      %v1231 = vadd.s32 %v1224, 56
      %v1232 = vld [vmem:[%s866 + $0xf] sm:$0x1]
      %v1233 = vlaneseq
      %v1234 = vshrl.u32 %v1233, 7
      %v1235 = vsub.s32 0, %v1234
      %v1236 = vrot.slane %v1232, %v1235
      %v1237 = vmul.f32 %v1215, %v1236
      %v1238 = vmul.f32 %v1216, %v1236
      %v1239 = vmul.f32 %v1217, %v1236
      %v1240 = vmul.f32 %v1218, %v1236
      %v1241 = vmul.f32 %v1219, %v1236
      %v1242 = vmul.f32 %v1220, %v1236
      %v1243 = vmul.f32 %v1221, %v1236
      %v1244 = vmul.f32 %v1222, %v1236
      %v1245 = vrot.slane %v1215, 1
      %v1246 = vrot.slane %v1216, 1
      %v1247 = vrot.slane %v1217, 1
      %v1248 = vrot.slane %v1218, 1
      %v1249 = vrot.slane %v1219, 1
      %v1250 = vrot.slane %v1220, 1
      %v1251 = vrot.slane %v1221, 1
      %v1252 = vrot.slane %v1222, 1
      %vm1253 = vcmp.lt.s32.totalorder %v1224, 7
      %v1254 = vsel %vm1253, %v1251, %v1252
      %v1255 = vsel %vm1253, %v1250, %v1251
      %v1256 = vsel %vm1253, %v1249, %v1250
      %v1257 = vsel %vm1253, %v1248, %v1249
      %v1258 = vsel %vm1253, %v1247, %v1248
      %v1259 = vsel %vm1253, %v1246, %v1247
      %v1260 = vsel %vm1253, %v1245, %v1246
      %v1261 = vsel %vm1253, %v1252, %v1245
      %v1262 = vadd.s32 %v1224, 4294967281
      %v1263 = vadd.s32 %v1225, 4294967281
      %v1264 = vadd.s32 %v1226, 4294967281
      %v1265 = vadd.s32 %v1227, 4294967281
      %v1266 = vadd.s32 %v1228, 4294967281
      %v1267 = vadd.s32 %v1229, 4294967281
      %v1268 = vadd.s32 %v1230, 4294967281
      %v1269 = vadd.s32 %v1231, 4294967281
      %vm1270 = vcmp.ge.s32.totalorder %v1262, 0
      %vm1271 = vcmp.ge.s32.totalorder %v1263, 0
      %vm1272 = vcmp.ge.s32.totalorder %v1264, 0
      %vm1273 = vcmp.ge.s32.totalorder %v1265, 0
      %vm1274 = vcmp.ge.s32.totalorder %v1266, 0
      %vm1275 = vcmp.ge.s32.totalorder %v1267, 0
      %vm1276 = vcmp.ge.s32.totalorder %v1268, 0
      %vm1277 = vcmp.ge.s32.totalorder %v1269, 0
      %vm1278 = vcmp.lt.s32.totalorder %v1262, 64
      %vm1279 = vcmp.lt.s32.totalorder %v1263, 64
      %vm1280 = vcmp.lt.s32.totalorder %v1264, 64
      %vm1281 = vcmp.lt.s32.totalorder %v1265, 64
      %vm1282 = vcmp.lt.s32.totalorder %v1266, 64
      %vm1283 = vcmp.lt.s32.totalorder %v1267, 64
      %vm1284 = vcmp.lt.s32.totalorder %v1268, 64
      %vm1285 = vcmp.lt.s32.totalorder %v1269, 64
      %vm1286 = vmand %vm1270, %vm1278
      %vm1287 = vmand %vm1271, %vm1279
      %vm1288 = vmand %vm1272, %vm1280
      %vm1289 = vmand %vm1273, %vm1281
      %vm1290 = vmand %vm1274, %vm1282
      %vm1291 = vmand %vm1275, %vm1283
      %vm1292 = vmand %vm1276, %vm1284
      %vm1293 = vmand %vm1277, %vm1285
      %v1294 = vsel %vm1286, 1.0, 0.0
      %v1295 = vsel %vm1287, 1.0, 0.0
      %v1296 = vsel %vm1288, 1.0, 0.0
      %v1297 = vsel %vm1289, 1.0, 0.0
      %v1298 = vsel %vm1290, 1.0, 0.0
      %v1299 = vsel %vm1291, 1.0, 0.0
      %v1300 = vsel %vm1292, 1.0, 0.0
      %v1301 = vsel %vm1293, 1.0, 0.0
      %v1302 = vmul.f32 %v1254, %v1294
      %v1303 = vmul.f32 %v1261, %v1295
      %v1304 = vmul.f32 %v1260, %v1296
      %v1305 = vmul.f32 %v1259, %v1297
      %v1306 = vmul.f32 %v1258, %v1298
      %v1307 = vmul.f32 %v1257, %v1299
      %v1308 = vmul.f32 %v1256, %v1300
      %v1309 = vmul.f32 %v1255, %v1301
      %v1310 = vld [vmem:[%s866] sm:$0x1]
      %v1311 = vlaneseq
      %v1312 = vshrl.u32 %v1311, 7
      %v1313 = vsub.s32 0, %v1312
      %v1314 = vrot.slane %v1310, %v1313
      %v1315 = vmul.f32 %v1302, %v1314
      %v1316 = vmul.f32 %v1303, %v1314
      %v1317 = vmul.f32 %v1304, %v1314
      %v1318 = vmul.f32 %v1305, %v1314
      %v1319 = vmul.f32 %v1306, %v1314
      %v1320 = vmul.f32 %v1307, %v1314
      %v1321 = vmul.f32 %v1308, %v1314
      %v1322 = vmul.f32 %v1309, %v1314
      %v1323 = vadd.f32 %v1237, %v1315
      %v1324 = vadd.f32 %v1238, %v1316
      %v1325 = vadd.f32 %v1239, %v1317
      %v1326 = vadd.f32 %v1240, %v1318
      %v1327 = vadd.f32 %v1241, %v1319
      %v1328 = vadd.f32 %v1242, %v1320
      %v1329 = vadd.f32 %v1243, %v1321
      %v1330 = vadd.f32 %v1244, %v1322
      %v1331 = vrot.slane %v1215, 2
      %v1332 = vrot.slane %v1216, 2
      %v1333 = vrot.slane %v1217, 2
      %v1334 = vrot.slane %v1218, 2
      %v1335 = vrot.slane %v1219, 2
      %v1336 = vrot.slane %v1220, 2
      %v1337 = vrot.slane %v1221, 2
      %v1338 = vrot.slane %v1222, 2
      %vm1339 = vcmp.lt.s32.totalorder %v1224, 6
      %v1340 = vsel %vm1339, %v1337, %v1338
      %v1341 = vsel %vm1339, %v1336, %v1337
      %v1342 = vsel %vm1339, %v1335, %v1336
      %v1343 = vsel %vm1339, %v1334, %v1335
      %v1344 = vsel %vm1339, %v1333, %v1334
      %v1345 = vsel %vm1339, %v1332, %v1333
      %v1346 = vsel %vm1339, %v1331, %v1332
      %v1347 = vsel %vm1339, %v1338, %v1331
      %v1348 = vadd.s32 %v1224, 4294967282
      %v1349 = vadd.s32 %v1225, 4294967282
      %v1350 = vadd.s32 %v1226, 4294967282
      %v1351 = vadd.s32 %v1227, 4294967282
      %v1352 = vadd.s32 %v1228, 4294967282
      %v1353 = vadd.s32 %v1229, 4294967282
      %v1354 = vadd.s32 %v1230, 4294967282
      %v1355 = vadd.s32 %v1231, 4294967282
      %vm1356 = vcmp.ge.s32.totalorder %v1348, 0
      %vm1357 = vcmp.ge.s32.totalorder %v1349, 0
      %vm1358 = vcmp.ge.s32.totalorder %v1350, 0
      %vm1359 = vcmp.ge.s32.totalorder %v1351, 0
      %vm1360 = vcmp.ge.s32.totalorder %v1352, 0
      %vm1361 = vcmp.ge.s32.totalorder %v1353, 0
      %vm1362 = vcmp.ge.s32.totalorder %v1354, 0
      %vm1363 = vcmp.ge.s32.totalorder %v1355, 0
      %vm1364 = vcmp.lt.s32.totalorder %v1348, 64
      %vm1365 = vcmp.lt.s32.totalorder %v1349, 64
      %vm1366 = vcmp.lt.s32.totalorder %v1350, 64
      %vm1367 = vcmp.lt.s32.totalorder %v1351, 64
      %vm1368 = vcmp.lt.s32.totalorder %v1352, 64
      %vm1369 = vcmp.lt.s32.totalorder %v1353, 64
      %vm1370 = vcmp.lt.s32.totalorder %v1354, 64
      %vm1371 = vcmp.lt.s32.totalorder %v1355, 64
      %vm1372 = vmand %vm1356, %vm1364
      %vm1373 = vmand %vm1357, %vm1365
      %vm1374 = vmand %vm1358, %vm1366
      %vm1375 = vmand %vm1359, %vm1367
      %vm1376 = vmand %vm1360, %vm1368
      %vm1377 = vmand %vm1361, %vm1369
      %vm1378 = vmand %vm1362, %vm1370
      %vm1379 = vmand %vm1363, %vm1371
      %v1380 = vsel %vm1372, 1.0, 0.0
      %v1381 = vsel %vm1373, 1.0, 0.0
      %v1382 = vsel %vm1374, 1.0, 0.0
      %v1383 = vsel %vm1375, 1.0, 0.0
      %v1384 = vsel %vm1376, 1.0, 0.0
      %v1385 = vsel %vm1377, 1.0, 0.0
      %v1386 = vsel %vm1378, 1.0, 0.0
      %v1387 = vsel %vm1379, 1.0, 0.0
      %v1388 = vmul.f32 %v1340, %v1380
      %v1389 = vmul.f32 %v1347, %v1381
      %v1390 = vmul.f32 %v1346, %v1382
      %v1391 = vmul.f32 %v1345, %v1383
      %v1392 = vmul.f32 %v1344, %v1384
      %v1393 = vmul.f32 %v1343, %v1385
      %v1394 = vmul.f32 %v1342, %v1386
      %v1395 = vmul.f32 %v1341, %v1387
      %v1396 = vld [vmem:[%s866 + $0x1] sm:$0x1]
      %v1397 = vlaneseq
      %v1398 = vshrl.u32 %v1397, 7
      %v1399 = vsub.s32 0, %v1398
      %v1400 = vrot.slane %v1396, %v1399
      %v1401 = vmul.f32 %v1388, %v1400
      %v1402 = vmul.f32 %v1389, %v1400
      %v1403 = vmul.f32 %v1390, %v1400
      %v1404 = vmul.f32 %v1391, %v1400
      %v1405 = vmul.f32 %v1392, %v1400
      %v1406 = vmul.f32 %v1393, %v1400
      %v1407 = vmul.f32 %v1394, %v1400
      %v1408 = vmul.f32 %v1395, %v1400
      %v1409 = vadd.f32 %v1323, %v1401
      %v1410 = vadd.f32 %v1324, %v1402
      %v1411 = vadd.f32 %v1325, %v1403
      %v1412 = vadd.f32 %v1326, %v1404
      %v1413 = vadd.f32 %v1327, %v1405
      %v1414 = vadd.f32 %v1328, %v1406
      %v1415 = vadd.f32 %v1329, %v1407
      %v1416 = vadd.f32 %v1330, %v1408
      %v1417 = vrot.slane %v1215, 3
      %v1418 = vrot.slane %v1216, 3
      %v1419 = vrot.slane %v1217, 3
      %v1420 = vrot.slane %v1218, 3
      %v1421 = vrot.slane %v1219, 3
      %v1422 = vrot.slane %v1220, 3
      %v1423 = vrot.slane %v1221, 3
      %v1424 = vrot.slane %v1222, 3
      %vm1425 = vcmp.lt.s32.totalorder %v1224, 5
      %v1426 = vsel %vm1425, %v1423, %v1424
      %v1427 = vsel %vm1425, %v1422, %v1423
      %v1428 = vsel %vm1425, %v1421, %v1422
      %v1429 = vsel %vm1425, %v1420, %v1421
      %v1430 = vsel %vm1425, %v1419, %v1420
      %v1431 = vsel %vm1425, %v1418, %v1419
      %v1432 = vsel %vm1425, %v1417, %v1418
      %v1433 = vsel %vm1425, %v1424, %v1417
      %v1434 = vadd.s32 %v1224, 4294967283
      %v1435 = vadd.s32 %v1225, 4294967283
      %v1436 = vadd.s32 %v1226, 4294967283
      %v1437 = vadd.s32 %v1227, 4294967283
      %v1438 = vadd.s32 %v1228, 4294967283
      %v1439 = vadd.s32 %v1229, 4294967283
      %v1440 = vadd.s32 %v1230, 4294967283
      %v1441 = vadd.s32 %v1231, 4294967283
      %vm1442 = vcmp.ge.s32.totalorder %v1434, 0
      %vm1443 = vcmp.ge.s32.totalorder %v1435, 0
      %vm1444 = vcmp.ge.s32.totalorder %v1436, 0
      %vm1445 = vcmp.ge.s32.totalorder %v1437, 0
      %vm1446 = vcmp.ge.s32.totalorder %v1438, 0
      %vm1447 = vcmp.ge.s32.totalorder %v1439, 0
      %vm1448 = vcmp.ge.s32.totalorder %v1440, 0
      %vm1449 = vcmp.ge.s32.totalorder %v1441, 0
      %vm1450 = vcmp.lt.s32.totalorder %v1434, 64
      %vm1451 = vcmp.lt.s32.totalorder %v1435, 64
      %vm1452 = vcmp.lt.s32.totalorder %v1436, 64
      %vm1453 = vcmp.lt.s32.totalorder %v1437, 64
      %vm1454 = vcmp.lt.s32.totalorder %v1438, 64
      %vm1455 = vcmp.lt.s32.totalorder %v1439, 64
      %vm1456 = vcmp.lt.s32.totalorder %v1440, 64
      %vm1457 = vcmp.lt.s32.totalorder %v1441, 64
      %vm1458 = vmand %vm1442, %vm1450
      %vm1459 = vmand %vm1443, %vm1451
      %vm1460 = vmand %vm1444, %vm1452
      %vm1461 = vmand %vm1445, %vm1453
      %vm1462 = vmand %vm1446, %vm1454
      %vm1463 = vmand %vm1447, %vm1455
      %vm1464 = vmand %vm1448, %vm1456
      %vm1465 = vmand %vm1449, %vm1457
      %v1466 = vsel %vm1458, 1.0, 0.0
      %v1467 = vsel %vm1459, 1.0, 0.0
      %v1468 = vsel %vm1460, 1.0, 0.0
      %v1469 = vsel %vm1461, 1.0, 0.0
      %v1470 = vsel %vm1462, 1.0, 0.0
      %v1471 = vsel %vm1463, 1.0, 0.0
      %v1472 = vsel %vm1464, 1.0, 0.0
      %v1473 = vsel %vm1465, 1.0, 0.0
      %v1474 = vmul.f32 %v1426, %v1466
      %v1475 = vmul.f32 %v1433, %v1467
      %v1476 = vmul.f32 %v1432, %v1468
      %v1477 = vmul.f32 %v1431, %v1469
      %v1478 = vmul.f32 %v1430, %v1470
      %v1479 = vmul.f32 %v1429, %v1471
      %v1480 = vmul.f32 %v1428, %v1472
      %v1481 = vmul.f32 %v1427, %v1473
      %v1482 = vld [vmem:[%s866 + $0x2] sm:$0x1]
      %v1483 = vlaneseq
      %v1484 = vshrl.u32 %v1483, 7
      %v1485 = vsub.s32 0, %v1484
      %v1486 = vrot.slane %v1482, %v1485
      %v1487 = vmul.f32 %v1474, %v1486
      %v1488 = vmul.f32 %v1475, %v1486
      %v1489 = vmul.f32 %v1476, %v1486
      %v1490 = vmul.f32 %v1477, %v1486
      %v1491 = vmul.f32 %v1478, %v1486
      %v1492 = vmul.f32 %v1479, %v1486
      %v1493 = vmul.f32 %v1480, %v1486
      %v1494 = vmul.f32 %v1481, %v1486
      %v1495 = vadd.f32 %v1409, %v1487
      %v1496 = vadd.f32 %v1410, %v1488
      %v1497 = vadd.f32 %v1411, %v1489
      %v1498 = vadd.f32 %v1412, %v1490
      %v1499 = vadd.f32 %v1413, %v1491
      %v1500 = vadd.f32 %v1414, %v1492
      %v1501 = vadd.f32 %v1415, %v1493
      %v1502 = vadd.f32 %v1416, %v1494
      %v1503 = vrot.slane %v1215, 4
      %v1504 = vrot.slane %v1216, 4
      %v1505 = vrot.slane %v1217, 4
      %v1506 = vrot.slane %v1218, 4
      %v1507 = vrot.slane %v1219, 4
      %v1508 = vrot.slane %v1220, 4
      %v1509 = vrot.slane %v1221, 4
      %v1510 = vrot.slane %v1222, 4
      %vm1511 = vcmp.lt.s32.totalorder %v1224, 4
      %v1512 = vsel %vm1511, %v1509, %v1510
      %v1513 = vsel %vm1511, %v1508, %v1509
      %v1514 = vsel %vm1511, %v1507, %v1508
      %v1515 = vsel %vm1511, %v1506, %v1507
      %v1516 = vsel %vm1511, %v1505, %v1506
      %v1517 = vsel %vm1511, %v1504, %v1505
      %v1518 = vsel %vm1511, %v1503, %v1504
      %v1519 = vsel %vm1511, %v1510, %v1503
      %v1520 = vadd.s32 %v1224, 4294967284
      %v1521 = vadd.s32 %v1225, 4294967284
      %v1522 = vadd.s32 %v1226, 4294967284
      %v1523 = vadd.s32 %v1227, 4294967284
      %v1524 = vadd.s32 %v1228, 4294967284
      %v1525 = vadd.s32 %v1229, 4294967284
      %v1526 = vadd.s32 %v1230, 4294967284
      %v1527 = vadd.s32 %v1231, 4294967284
      %vm1528 = vcmp.ge.s32.totalorder %v1520, 0
      %vm1529 = vcmp.ge.s32.totalorder %v1521, 0
      %vm1530 = vcmp.ge.s32.totalorder %v1522, 0
      %vm1531 = vcmp.ge.s32.totalorder %v1523, 0
      %vm1532 = vcmp.ge.s32.totalorder %v1524, 0
      %vm1533 = vcmp.ge.s32.totalorder %v1525, 0
      %vm1534 = vcmp.ge.s32.totalorder %v1526, 0
      %vm1535 = vcmp.ge.s32.totalorder %v1527, 0
      %vm1536 = vcmp.lt.s32.totalorder %v1520, 64
      %vm1537 = vcmp.lt.s32.totalorder %v1521, 64
      %vm1538 = vcmp.lt.s32.totalorder %v1522, 64
      %vm1539 = vcmp.lt.s32.totalorder %v1523, 64
      %vm1540 = vcmp.lt.s32.totalorder %v1524, 64
      %vm1541 = vcmp.lt.s32.totalorder %v1525, 64
      %vm1542 = vcmp.lt.s32.totalorder %v1526, 64
      %vm1543 = vcmp.lt.s32.totalorder %v1527, 64
      %vm1544 = vmand %vm1528, %vm1536
      %vm1545 = vmand %vm1529, %vm1537
      %vm1546 = vmand %vm1530, %vm1538
      %vm1547 = vmand %vm1531, %vm1539
      %vm1548 = vmand %vm1532, %vm1540
      %vm1549 = vmand %vm1533, %vm1541
      %vm1550 = vmand %vm1534, %vm1542
      %vm1551 = vmand %vm1535, %vm1543
      %v1552 = vsel %vm1544, 1.0, 0.0
      %v1553 = vsel %vm1545, 1.0, 0.0
      %v1554 = vsel %vm1546, 1.0, 0.0
      %v1555 = vsel %vm1547, 1.0, 0.0
      %v1556 = vsel %vm1548, 1.0, 0.0
      %v1557 = vsel %vm1549, 1.0, 0.0
      %v1558 = vsel %vm1550, 1.0, 0.0
      %v1559 = vsel %vm1551, 1.0, 0.0
      %v1560 = vmul.f32 %v1512, %v1552
      %v1561 = vmul.f32 %v1519, %v1553
      %v1562 = vmul.f32 %v1518, %v1554
      %v1563 = vmul.f32 %v1517, %v1555
      %v1564 = vmul.f32 %v1516, %v1556
      %v1565 = vmul.f32 %v1515, %v1557
      %v1566 = vmul.f32 %v1514, %v1558
      %v1567 = vmul.f32 %v1513, %v1559
      %v1568 = vld [vmem:[%s866 + $0x3] sm:$0x1]
      %v1569 = vlaneseq
      %v1570 = vshrl.u32 %v1569, 7
      %v1571 = vsub.s32 0, %v1570
      %v1572 = vrot.slane %v1568, %v1571
      %v1573 = vmul.f32 %v1560, %v1572
      %v1574 = vmul.f32 %v1561, %v1572
      %v1575 = vmul.f32 %v1562, %v1572
      %v1576 = vmul.f32 %v1563, %v1572
      %v1577 = vmul.f32 %v1564, %v1572
      %v1578 = vmul.f32 %v1565, %v1572
      %v1579 = vmul.f32 %v1566, %v1572
      %v1580 = vmul.f32 %v1567, %v1572
      %v1581 = vadd.f32 %v1495, %v1573
      %v1582 = vadd.f32 %v1496, %v1574
      %v1583 = vadd.f32 %v1497, %v1575
      %v1584 = vadd.f32 %v1498, %v1576
      %v1585 = vadd.f32 %v1499, %v1577
      %v1586 = vadd.f32 %v1500, %v1578
      %v1587 = vadd.f32 %v1501, %v1579
      %v1588 = vadd.f32 %v1502, %v1580
      %v1589 = vrot.slane %v1215, 5
      %v1590 = vrot.slane %v1216, 5
      %v1591 = vrot.slane %v1217, 5
      %v1592 = vrot.slane %v1218, 5
      %v1593 = vrot.slane %v1219, 5
      %v1594 = vrot.slane %v1220, 5
      %v1595 = vrot.slane %v1221, 5
      %v1596 = vrot.slane %v1222, 5
      %vm1597 = vcmp.lt.s32.totalorder %v1224, 3
      %v1598 = vsel %vm1597, %v1595, %v1596
      %v1599 = vsel %vm1597, %v1594, %v1595
      %v1600 = vsel %vm1597, %v1593, %v1594
      %v1601 = vsel %vm1597, %v1592, %v1593
      %v1602 = vsel %vm1597, %v1591, %v1592
      %v1603 = vsel %vm1597, %v1590, %v1591
      %v1604 = vsel %vm1597, %v1589, %v1590
      %v1605 = vsel %vm1597, %v1596, %v1589
      %v1606 = vadd.s32 %v1224, 4294967285
      %v1607 = vadd.s32 %v1225, 4294967285
      %v1608 = vadd.s32 %v1226, 4294967285
      %v1609 = vadd.s32 %v1227, 4294967285
      %v1610 = vadd.s32 %v1228, 4294967285
      %v1611 = vadd.s32 %v1229, 4294967285
      %v1612 = vadd.s32 %v1230, 4294967285
      %v1613 = vadd.s32 %v1231, 4294967285
      %vm1614 = vcmp.ge.s32.totalorder %v1606, 0
      %vm1615 = vcmp.ge.s32.totalorder %v1607, 0
      %vm1616 = vcmp.ge.s32.totalorder %v1608, 0
      %vm1617 = vcmp.ge.s32.totalorder %v1609, 0
      %vm1618 = vcmp.ge.s32.totalorder %v1610, 0
      %vm1619 = vcmp.ge.s32.totalorder %v1611, 0
      %vm1620 = vcmp.ge.s32.totalorder %v1612, 0
      %vm1621 = vcmp.ge.s32.totalorder %v1613, 0
      %vm1622 = vcmp.lt.s32.totalorder %v1606, 64
      %vm1623 = vcmp.lt.s32.totalorder %v1607, 64
      %vm1624 = vcmp.lt.s32.totalorder %v1608, 64
      %vm1625 = vcmp.lt.s32.totalorder %v1609, 64
      %vm1626 = vcmp.lt.s32.totalorder %v1610, 64
      %vm1627 = vcmp.lt.s32.totalorder %v1611, 64
      %vm1628 = vcmp.lt.s32.totalorder %v1612, 64
      %vm1629 = vcmp.lt.s32.totalorder %v1613, 64
      %vm1630 = vmand %vm1614, %vm1622
      %vm1631 = vmand %vm1615, %vm1623
      %vm1632 = vmand %vm1616, %vm1624
      %vm1633 = vmand %vm1617, %vm1625
      %vm1634 = vmand %vm1618, %vm1626
      %vm1635 = vmand %vm1619, %vm1627
      %vm1636 = vmand %vm1620, %vm1628
      %vm1637 = vmand %vm1621, %vm1629
      %v1638 = vsel %vm1630, 1.0, 0.0
      %v1639 = vsel %vm1631, 1.0, 0.0
      %v1640 = vsel %vm1632, 1.0, 0.0
      %v1641 = vsel %vm1633, 1.0, 0.0
      %v1642 = vsel %vm1634, 1.0, 0.0
      %v1643 = vsel %vm1635, 1.0, 0.0
      %v1644 = vsel %vm1636, 1.0, 0.0
      %v1645 = vsel %vm1637, 1.0, 0.0
      %v1646 = vmul.f32 %v1598, %v1638
      %v1647 = vmul.f32 %v1605, %v1639
      %v1648 = vmul.f32 %v1604, %v1640
      %v1649 = vmul.f32 %v1603, %v1641
      %v1650 = vmul.f32 %v1602, %v1642
      %v1651 = vmul.f32 %v1601, %v1643
      %v1652 = vmul.f32 %v1600, %v1644
      %v1653 = vmul.f32 %v1599, %v1645
      %v1654 = vld [vmem:[%s866 + $0x4] sm:$0x1]
      %v1655 = vlaneseq
      %v1656 = vshrl.u32 %v1655, 7
      %v1657 = vsub.s32 0, %v1656
      %v1658 = vrot.slane %v1654, %v1657
      %v1659 = vmul.f32 %v1646, %v1658
      %v1660 = vmul.f32 %v1647, %v1658
      %v1661 = vmul.f32 %v1648, %v1658
      %v1662 = vmul.f32 %v1649, %v1658
      %v1663 = vmul.f32 %v1650, %v1658
      %v1664 = vmul.f32 %v1651, %v1658
      %v1665 = vmul.f32 %v1652, %v1658
      %v1666 = vmul.f32 %v1653, %v1658
      %v1667 = vadd.f32 %v1581, %v1659
      %v1668 = vadd.f32 %v1582, %v1660
      %v1669 = vadd.f32 %v1583, %v1661
      %v1670 = vadd.f32 %v1584, %v1662
      %v1671 = vadd.f32 %v1585, %v1663
      %v1672 = vadd.f32 %v1586, %v1664
      %v1673 = vadd.f32 %v1587, %v1665
      %v1674 = vadd.f32 %v1588, %v1666
      %v1675 = vrot.slane %v1215, 6
      %v1676 = vrot.slane %v1216, 6
      %v1677 = vrot.slane %v1217, 6
      %v1678 = vrot.slane %v1218, 6
      %v1679 = vrot.slane %v1219, 6
      %v1680 = vrot.slane %v1220, 6
      %v1681 = vrot.slane %v1221, 6
      %v1682 = vrot.slane %v1222, 6
      %vm1683 = vcmp.lt.s32.totalorder %v1224, 2
      %v1684 = vsel %vm1683, %v1681, %v1682
      %v1685 = vsel %vm1683, %v1680, %v1681
      %v1686 = vsel %vm1683, %v1679, %v1680
      %v1687 = vsel %vm1683, %v1678, %v1679
      %v1688 = vsel %vm1683, %v1677, %v1678
      %v1689 = vsel %vm1683, %v1676, %v1677
      %v1690 = vsel %vm1683, %v1675, %v1676
      %v1691 = vsel %vm1683, %v1682, %v1675
      %v1692 = vadd.s32 %v1224, 4294967286
      %v1693 = vadd.s32 %v1225, 4294967286
      %v1694 = vadd.s32 %v1226, 4294967286
      %v1695 = vadd.s32 %v1227, 4294967286
      %v1696 = vadd.s32 %v1228, 4294967286
      %v1697 = vadd.s32 %v1229, 4294967286
      %v1698 = vadd.s32 %v1230, 4294967286
      %v1699 = vadd.s32 %v1231, 4294967286
      %vm1700 = vcmp.ge.s32.totalorder %v1692, 0
      %vm1701 = vcmp.ge.s32.totalorder %v1693, 0
      %vm1702 = vcmp.ge.s32.totalorder %v1694, 0
      %vm1703 = vcmp.ge.s32.totalorder %v1695, 0
      %vm1704 = vcmp.ge.s32.totalorder %v1696, 0
      %vm1705 = vcmp.ge.s32.totalorder %v1697, 0
      %vm1706 = vcmp.ge.s32.totalorder %v1698, 0
      %vm1707 = vcmp.ge.s32.totalorder %v1699, 0
      %vm1708 = vcmp.lt.s32.totalorder %v1692, 64
      %vm1709 = vcmp.lt.s32.totalorder %v1693, 64
      %vm1710 = vcmp.lt.s32.totalorder %v1694, 64
      %vm1711 = vcmp.lt.s32.totalorder %v1695, 64
      %vm1712 = vcmp.lt.s32.totalorder %v1696, 64
      %vm1713 = vcmp.lt.s32.totalorder %v1697, 64
      %vm1714 = vcmp.lt.s32.totalorder %v1698, 64
      %vm1715 = vcmp.lt.s32.totalorder %v1699, 64
      %vm1716 = vmand %vm1700, %vm1708
      %vm1717 = vmand %vm1701, %vm1709
      %vm1718 = vmand %vm1702, %vm1710
      %vm1719 = vmand %vm1703, %vm1711
      %vm1720 = vmand %vm1704, %vm1712
      %vm1721 = vmand %vm1705, %vm1713
      %vm1722 = vmand %vm1706, %vm1714
      %vm1723 = vmand %vm1707, %vm1715
      %v1724 = vsel %vm1716, 1.0, 0.0
      %v1725 = vsel %vm1717, 1.0, 0.0
      %v1726 = vsel %vm1718, 1.0, 0.0
      %v1727 = vsel %vm1719, 1.0, 0.0
      %v1728 = vsel %vm1720, 1.0, 0.0
      %v1729 = vsel %vm1721, 1.0, 0.0
      %v1730 = vsel %vm1722, 1.0, 0.0
      %v1731 = vsel %vm1723, 1.0, 0.0
      %v1732 = vmul.f32 %v1684, %v1724
      %v1733 = vmul.f32 %v1691, %v1725
      %v1734 = vmul.f32 %v1690, %v1726
      %v1735 = vmul.f32 %v1689, %v1727
      %v1736 = vmul.f32 %v1688, %v1728
      %v1737 = vmul.f32 %v1687, %v1729
      %v1738 = vmul.f32 %v1686, %v1730
      %v1739 = vmul.f32 %v1685, %v1731
      %v1740 = vld [vmem:[%s866 + $0x5] sm:$0x1]
      %v1741 = vlaneseq
      %v1742 = vshrl.u32 %v1741, 7
      %v1743 = vsub.s32 0, %v1742
      %v1744 = vrot.slane %v1740, %v1743
      %v1745 = vmul.f32 %v1732, %v1744
      %v1746 = vmul.f32 %v1733, %v1744
      %v1747 = vmul.f32 %v1734, %v1744
      %v1748 = vmul.f32 %v1735, %v1744
      %v1749 = vmul.f32 %v1736, %v1744
      %v1750 = vmul.f32 %v1737, %v1744
      %v1751 = vmul.f32 %v1738, %v1744
      %v1752 = vmul.f32 %v1739, %v1744
      %v1753 = vadd.f32 %v1667, %v1745
      %v1754 = vadd.f32 %v1668, %v1746
      %v1755 = vadd.f32 %v1669, %v1747
      %v1756 = vadd.f32 %v1670, %v1748
      %v1757 = vadd.f32 %v1671, %v1749
      %v1758 = vadd.f32 %v1672, %v1750
      %v1759 = vadd.f32 %v1673, %v1751
      %v1760 = vadd.f32 %v1674, %v1752
      %v1761 = vrot.slane %v1215, 7
      %v1762 = vrot.slane %v1216, 7
      %v1763 = vrot.slane %v1217, 7
      %v1764 = vrot.slane %v1218, 7
      %v1765 = vrot.slane %v1219, 7
      %v1766 = vrot.slane %v1220, 7
      %v1767 = vrot.slane %v1221, 7
      %v1768 = vrot.slane %v1222, 7
      %vm1769 = vcmp.lt.s32.totalorder %v1224, 1
      %v1770 = vsel %vm1769, %v1767, %v1768
      %v1771 = vsel %vm1769, %v1766, %v1767
      %v1772 = vsel %vm1769, %v1765, %v1766
      %v1773 = vsel %vm1769, %v1764, %v1765
      %v1774 = vsel %vm1769, %v1763, %v1764
      %v1775 = vsel %vm1769, %v1762, %v1763
      %v1776 = vsel %vm1769, %v1761, %v1762
      %v1777 = vsel %vm1769, %v1768, %v1761
      %v1778 = vadd.s32 %v1224, 4294967287
      %v1779 = vadd.s32 %v1225, 4294967287
      %v1780 = vadd.s32 %v1226, 4294967287
      %v1781 = vadd.s32 %v1227, 4294967287
      %v1782 = vadd.s32 %v1228, 4294967287
      %v1783 = vadd.s32 %v1229, 4294967287
      %v1784 = vadd.s32 %v1230, 4294967287
      %v1785 = vadd.s32 %v1231, 4294967287
      %vm1786 = vcmp.ge.s32.totalorder %v1778, 0
      %vm1787 = vcmp.ge.s32.totalorder %v1779, 0
      %vm1788 = vcmp.ge.s32.totalorder %v1780, 0
      %vm1789 = vcmp.ge.s32.totalorder %v1781, 0
      %vm1790 = vcmp.ge.s32.totalorder %v1782, 0
      %vm1791 = vcmp.ge.s32.totalorder %v1783, 0
      %vm1792 = vcmp.ge.s32.totalorder %v1784, 0
      %vm1793 = vcmp.ge.s32.totalorder %v1785, 0
      %vm1794 = vcmp.lt.s32.totalorder %v1778, 64
      %vm1795 = vcmp.lt.s32.totalorder %v1779, 64
      %vm1796 = vcmp.lt.s32.totalorder %v1780, 64
      %vm1797 = vcmp.lt.s32.totalorder %v1781, 64
      %vm1798 = vcmp.lt.s32.totalorder %v1782, 64
      %vm1799 = vcmp.lt.s32.totalorder %v1783, 64
      %vm1800 = vcmp.lt.s32.totalorder %v1784, 64
      %vm1801 = vcmp.lt.s32.totalorder %v1785, 64
      %vm1802 = vmand %vm1786, %vm1794
      %vm1803 = vmand %vm1787, %vm1795
      %vm1804 = vmand %vm1788, %vm1796
      %vm1805 = vmand %vm1789, %vm1797
      %vm1806 = vmand %vm1790, %vm1798
      %vm1807 = vmand %vm1791, %vm1799
      %vm1808 = vmand %vm1792, %vm1800
      %vm1809 = vmand %vm1793, %vm1801
      %v1810 = vsel %vm1802, 1.0, 0.0
      %v1811 = vsel %vm1803, 1.0, 0.0
      %v1812 = vsel %vm1804, 1.0, 0.0
      %v1813 = vsel %vm1805, 1.0, 0.0
      %v1814 = vsel %vm1806, 1.0, 0.0
      %v1815 = vsel %vm1807, 1.0, 0.0
      %v1816 = vsel %vm1808, 1.0, 0.0
      %v1817 = vsel %vm1809, 1.0, 0.0
      %v1818 = vmul.f32 %v1770, %v1810
      %v1819 = vmul.f32 %v1777, %v1811
      %v1820 = vmul.f32 %v1776, %v1812
      %v1821 = vmul.f32 %v1775, %v1813
      %v1822 = vmul.f32 %v1774, %v1814
      %v1823 = vmul.f32 %v1773, %v1815
      %v1824 = vmul.f32 %v1772, %v1816
      %v1825 = vmul.f32 %v1771, %v1817
      %v1826 = vld [vmem:[%s866 + $0x6] sm:$0x1]
      %v1827 = vlaneseq
      %v1828 = vshrl.u32 %v1827, 7
      %v1829 = vsub.s32 0, %v1828
      %v1830 = vrot.slane %v1826, %v1829
      %v1831 = vmul.f32 %v1818, %v1830
      %v1832 = vmul.f32 %v1819, %v1830
      %v1833 = vmul.f32 %v1820, %v1830
      %v1834 = vmul.f32 %v1821, %v1830
      %v1835 = vmul.f32 %v1822, %v1830
      %v1836 = vmul.f32 %v1823, %v1830
      %v1837 = vmul.f32 %v1824, %v1830
      %v1838 = vmul.f32 %v1825, %v1830
      %v1839 = vadd.f32 %v1753, %v1831
      %v1840 = vadd.f32 %v1754, %v1832
      %v1841 = vadd.f32 %v1755, %v1833
      %v1842 = vadd.f32 %v1756, %v1834
      %v1843 = vadd.f32 %v1757, %v1835
      %v1844 = vadd.f32 %v1758, %v1836
      %v1845 = vadd.f32 %v1759, %v1837
      %v1846 = vadd.f32 %v1760, %v1838
      %v1847 = vadd.s32 %v1224, 4294967288
      %v1848 = vadd.s32 %v1225, 4294967288
      %v1849 = vadd.s32 %v1226, 4294967288
      %v1850 = vadd.s32 %v1227, 4294967288
      %v1851 = vadd.s32 %v1228, 4294967288
      %v1852 = vadd.s32 %v1229, 4294967288
      %v1853 = vadd.s32 %v1230, 4294967288
      %v1854 = vadd.s32 %v1231, 4294967288
      %vm1855 = vcmp.ge.s32.totalorder %v1847, 0
      %vm1856 = vcmp.ge.s32.totalorder %v1848, 0
      %vm1857 = vcmp.ge.s32.totalorder %v1849, 0
      %vm1858 = vcmp.ge.s32.totalorder %v1850, 0
      %vm1859 = vcmp.ge.s32.totalorder %v1851, 0
      %vm1860 = vcmp.ge.s32.totalorder %v1852, 0
      %vm1861 = vcmp.ge.s32.totalorder %v1853, 0
      %vm1862 = vcmp.ge.s32.totalorder %v1854, 0
      %vm1863 = vcmp.lt.s32.totalorder %v1847, 64
      %vm1864 = vcmp.lt.s32.totalorder %v1848, 64
      %vm1865 = vcmp.lt.s32.totalorder %v1849, 64
      %vm1866 = vcmp.lt.s32.totalorder %v1850, 64
      %vm1867 = vcmp.lt.s32.totalorder %v1851, 64
      %vm1868 = vcmp.lt.s32.totalorder %v1852, 64
      %vm1869 = vcmp.lt.s32.totalorder %v1853, 64
      %vm1870 = vcmp.lt.s32.totalorder %v1854, 64
      %vm1871 = vmand %vm1855, %vm1863
      %vm1872 = vmand %vm1856, %vm1864
      %vm1873 = vmand %vm1857, %vm1865
      %vm1874 = vmand %vm1858, %vm1866
      %vm1875 = vmand %vm1859, %vm1867
      %vm1876 = vmand %vm1860, %vm1868
      %vm1877 = vmand %vm1861, %vm1869
      %vm1878 = vmand %vm1862, %vm1870
      %v1879 = vsel %vm1871, 1.0, 0.0
      %v1880 = vsel %vm1872, 1.0, 0.0
      %v1881 = vsel %vm1873, 1.0, 0.0
      %v1882 = vsel %vm1874, 1.0, 0.0
      %v1883 = vsel %vm1875, 1.0, 0.0
      %v1884 = vsel %vm1876, 1.0, 0.0
      %v1885 = vsel %vm1877, 1.0, 0.0
      %v1886 = vsel %vm1878, 1.0, 0.0
      %v1887 = vmul.f32 %v1222, %v1879
      %v1888 = vmul.f32 %v1215, %v1880
      %v1889 = vmul.f32 %v1216, %v1881
      %v1890 = vmul.f32 %v1217, %v1882
      %v1891 = vmul.f32 %v1218, %v1883
      %v1892 = vmul.f32 %v1219, %v1884
      %v1893 = vmul.f32 %v1220, %v1885
      %v1894 = vmul.f32 %v1221, %v1886
      %v1895 = vld [vmem:[%s866 + $0x7] sm:$0x1]
      %v1896 = vlaneseq
      %v1897 = vshrl.u32 %v1896, 7
      %v1898 = vsub.s32 0, %v1897
      %v1899 = vrot.slane %v1895, %v1898
      %v1900 = vmul.f32 %v1887, %v1899
      %v1901 = vmul.f32 %v1888, %v1899
      %v1902 = vmul.f32 %v1889, %v1899
      %v1903 = vmul.f32 %v1890, %v1899
      %v1904 = vmul.f32 %v1891, %v1899
      %v1905 = vmul.f32 %v1892, %v1899
      %v1906 = vmul.f32 %v1893, %v1899
      %v1907 = vmul.f32 %v1894, %v1899
      %v1908 = vadd.f32 %v1839, %v1900
      %v1909 = vadd.f32 %v1840, %v1901
      %v1910 = vadd.f32 %v1841, %v1902
      %v1911 = vadd.f32 %v1842, %v1903
      %v1912 = vadd.f32 %v1843, %v1904
      %v1913 = vadd.f32 %v1844, %v1905
      %v1914 = vadd.f32 %v1845, %v1906
      %v1915 = vadd.f32 %v1846, %v1907
      %v1916 = vadd.s32 %v1224, 4294967289
      %v1917 = vadd.s32 %v1225, 4294967289
      %v1918 = vadd.s32 %v1226, 4294967289
      %v1919 = vadd.s32 %v1227, 4294967289
      %v1920 = vadd.s32 %v1228, 4294967289
      %v1921 = vadd.s32 %v1229, 4294967289
      %v1922 = vadd.s32 %v1230, 4294967289
      %v1923 = vadd.s32 %v1231, 4294967289
      %vm1924 = vcmp.ge.s32.totalorder %v1916, 0
      %vm1925 = vcmp.ge.s32.totalorder %v1917, 0
      %vm1926 = vcmp.ge.s32.totalorder %v1918, 0
      %vm1927 = vcmp.ge.s32.totalorder %v1919, 0
      %vm1928 = vcmp.ge.s32.totalorder %v1920, 0
      %vm1929 = vcmp.ge.s32.totalorder %v1921, 0
      %vm1930 = vcmp.ge.s32.totalorder %v1922, 0
      %vm1931 = vcmp.ge.s32.totalorder %v1923, 0
      %vm1932 = vcmp.lt.s32.totalorder %v1916, 64
      %vm1933 = vcmp.lt.s32.totalorder %v1917, 64
      %vm1934 = vcmp.lt.s32.totalorder %v1918, 64
      %vm1935 = vcmp.lt.s32.totalorder %v1919, 64
      %vm1936 = vcmp.lt.s32.totalorder %v1920, 64
      %vm1937 = vcmp.lt.s32.totalorder %v1921, 64
      %vm1938 = vcmp.lt.s32.totalorder %v1922, 64
      %vm1939 = vcmp.lt.s32.totalorder %v1923, 64
      %vm1940 = vmand %vm1924, %vm1932
      %vm1941 = vmand %vm1925, %vm1933
      %vm1942 = vmand %vm1926, %vm1934
      %vm1943 = vmand %vm1927, %vm1935
      %vm1944 = vmand %vm1928, %vm1936
      %vm1945 = vmand %vm1929, %vm1937
      %vm1946 = vmand %vm1930, %vm1938
      %vm1947 = vmand %vm1931, %vm1939
      %v1948 = vsel %vm1940, 1.0, 0.0
      %v1949 = vsel %vm1941, 1.0, 0.0
      %v1950 = vsel %vm1942, 1.0, 0.0
      %v1951 = vsel %vm1943, 1.0, 0.0
      %v1952 = vsel %vm1944, 1.0, 0.0
      %v1953 = vsel %vm1945, 1.0, 0.0
      %v1954 = vsel %vm1946, 1.0, 0.0
      %v1955 = vsel %vm1947, 1.0, 0.0
      %v1956 = vmul.f32 %v1261, %v1948
      %v1957 = vmul.f32 %v1260, %v1949
      %v1958 = vmul.f32 %v1259, %v1950
      %v1959 = vmul.f32 %v1258, %v1951
      %v1960 = vmul.f32 %v1257, %v1952
      %v1961 = vmul.f32 %v1256, %v1953
      %v1962 = vmul.f32 %v1255, %v1954
      %v1963 = vmul.f32 %v1254, %v1955
      %v1964 = vld [vmem:[%s866 + $0x8] sm:$0x1]
      %v1965 = vlaneseq
      %v1966 = vshrl.u32 %v1965, 7
      %v1967 = vsub.s32 0, %v1966
      %v1968 = vrot.slane %v1964, %v1967
      %v1969 = vmul.f32 %v1956, %v1968
      %v1970 = vmul.f32 %v1957, %v1968
      %v1971 = vmul.f32 %v1958, %v1968
      %v1972 = vmul.f32 %v1959, %v1968
      %v1973 = vmul.f32 %v1960, %v1968
      %v1974 = vmul.f32 %v1961, %v1968
      %v1975 = vmul.f32 %v1962, %v1968
      %v1976 = vmul.f32 %v1963, %v1968
      %v1977 = vadd.f32 %v1908, %v1969
      %v1978 = vadd.f32 %v1909, %v1970
      %v1979 = vadd.f32 %v1910, %v1971
      %v1980 = vadd.f32 %v1911, %v1972
      %v1981 = vadd.f32 %v1912, %v1973
      %v1982 = vadd.f32 %v1913, %v1974
      %v1983 = vadd.f32 %v1914, %v1975
      %v1984 = vadd.f32 %v1915, %v1976
      %v1985 = vadd.s32 %v1224, 4294967290
      %v1986 = vadd.s32 %v1225, 4294967290
      %v1987 = vadd.s32 %v1226, 4294967290
      %v1988 = vadd.s32 %v1227, 4294967290
      %v1989 = vadd.s32 %v1228, 4294967290
      %v1990 = vadd.s32 %v1229, 4294967290
      %v1991 = vadd.s32 %v1230, 4294967290
      %v1992 = vadd.s32 %v1231, 4294967290
      %vm1993 = vcmp.ge.s32.totalorder %v1985, 0
      %vm1994 = vcmp.ge.s32.totalorder %v1986, 0
      %vm1995 = vcmp.ge.s32.totalorder %v1987, 0
      %vm1996 = vcmp.ge.s32.totalorder %v1988, 0
      %vm1997 = vcmp.ge.s32.totalorder %v1989, 0
      %vm1998 = vcmp.ge.s32.totalorder %v1990, 0
      %vm1999 = vcmp.ge.s32.totalorder %v1991, 0
      %vm2000 = vcmp.ge.s32.totalorder %v1992, 0
      %vm2001 = vcmp.lt.s32.totalorder %v1985, 64
      %vm2002 = vcmp.lt.s32.totalorder %v1986, 64
      %vm2003 = vcmp.lt.s32.totalorder %v1987, 64
      %vm2004 = vcmp.lt.s32.totalorder %v1988, 64
      %vm2005 = vcmp.lt.s32.totalorder %v1989, 64
      %vm2006 = vcmp.lt.s32.totalorder %v1990, 64
      %vm2007 = vcmp.lt.s32.totalorder %v1991, 64
      %vm2008 = vcmp.lt.s32.totalorder %v1992, 64
      %vm2009 = vmand %vm1993, %vm2001
      %vm2010 = vmand %vm1994, %vm2002
      %vm2011 = vmand %vm1995, %vm2003
      %vm2012 = vmand %vm1996, %vm2004
      %vm2013 = vmand %vm1997, %vm2005
      %vm2014 = vmand %vm1998, %vm2006
      %vm2015 = vmand %vm1999, %vm2007
      %vm2016 = vmand %vm2000, %vm2008
      %v2017 = vsel %vm2009, 1.0, 0.0
      %v2018 = vsel %vm2010, 1.0, 0.0
      %v2019 = vsel %vm2011, 1.0, 0.0
      %v2020 = vsel %vm2012, 1.0, 0.0
      %v2021 = vsel %vm2013, 1.0, 0.0
      %v2022 = vsel %vm2014, 1.0, 0.0
      %v2023 = vsel %vm2015, 1.0, 0.0
      %v2024 = vsel %vm2016, 1.0, 0.0
      %v2025 = vmul.f32 %v1347, %v2017
      %v2026 = vmul.f32 %v1346, %v2018
      %v2027 = vmul.f32 %v1345, %v2019
      %v2028 = vmul.f32 %v1344, %v2020
      %v2029 = vmul.f32 %v1343, %v2021
      %v2030 = vmul.f32 %v1342, %v2022
      %v2031 = vmul.f32 %v1341, %v2023
      %v2032 = vmul.f32 %v1340, %v2024
      %v2033 = vld [vmem:[%s866 + $0x9] sm:$0x1]
      %v2034 = vlaneseq
      %v2035 = vshrl.u32 %v2034, 7
      %v2036 = vsub.s32 0, %v2035
      %v2037 = vrot.slane %v2033, %v2036
      %v2038 = vmul.f32 %v2025, %v2037
      %v2039 = vmul.f32 %v2026, %v2037
      %v2040 = vmul.f32 %v2027, %v2037
      %v2041 = vmul.f32 %v2028, %v2037
      %v2042 = vmul.f32 %v2029, %v2037
      %v2043 = vmul.f32 %v2030, %v2037
      %v2044 = vmul.f32 %v2031, %v2037
      %v2045 = vmul.f32 %v2032, %v2037
      %v2046 = vadd.f32 %v1977, %v2038
      %v2047 = vadd.f32 %v1978, %v2039
      %v2048 = vadd.f32 %v1979, %v2040
      %v2049 = vadd.f32 %v1980, %v2041
      %v2050 = vadd.f32 %v1981, %v2042
      %v2051 = vadd.f32 %v1982, %v2043
      %v2052 = vadd.f32 %v1983, %v2044
      %v2053 = vadd.f32 %v1984, %v2045
      %v2054 = vadd.s32 %v1224, 4294967291
      %v2055 = vadd.s32 %v1225, 4294967291
      %v2056 = vadd.s32 %v1226, 4294967291
      %v2057 = vadd.s32 %v1227, 4294967291
      %v2058 = vadd.s32 %v1228, 4294967291
      %v2059 = vadd.s32 %v1229, 4294967291
      %v2060 = vadd.s32 %v1230, 4294967291
      %v2061 = vadd.s32 %v1231, 4294967291
      %vm2062 = vcmp.ge.s32.totalorder %v2054, 0
      %vm2063 = vcmp.ge.s32.totalorder %v2055, 0
      %vm2064 = vcmp.ge.s32.totalorder %v2056, 0
      %vm2065 = vcmp.ge.s32.totalorder %v2057, 0
      %vm2066 = vcmp.ge.s32.totalorder %v2058, 0
      %vm2067 = vcmp.ge.s32.totalorder %v2059, 0
      %vm2068 = vcmp.ge.s32.totalorder %v2060, 0
      %vm2069 = vcmp.ge.s32.totalorder %v2061, 0
      %vm2070 = vcmp.lt.s32.totalorder %v2054, 64
      %vm2071 = vcmp.lt.s32.totalorder %v2055, 64
      %vm2072 = vcmp.lt.s32.totalorder %v2056, 64
      %vm2073 = vcmp.lt.s32.totalorder %v2057, 64
      %vm2074 = vcmp.lt.s32.totalorder %v2058, 64
      %vm2075 = vcmp.lt.s32.totalorder %v2059, 64
      %vm2076 = vcmp.lt.s32.totalorder %v2060, 64
      %vm2077 = vcmp.lt.s32.totalorder %v2061, 64
      %vm2078 = vmand %vm2062, %vm2070
      %vm2079 = vmand %vm2063, %vm2071
      %vm2080 = vmand %vm2064, %vm2072
      %vm2081 = vmand %vm2065, %vm2073
      %vm2082 = vmand %vm2066, %vm2074
      %vm2083 = vmand %vm2067, %vm2075
      %vm2084 = vmand %vm2068, %vm2076
      %vm2085 = vmand %vm2069, %vm2077
      %v2086 = vsel %vm2078, 1.0, 0.0
      %v2087 = vsel %vm2079, 1.0, 0.0
      %v2088 = vsel %vm2080, 1.0, 0.0
      %v2089 = vsel %vm2081, 1.0, 0.0
      %v2090 = vsel %vm2082, 1.0, 0.0
      %v2091 = vsel %vm2083, 1.0, 0.0
      %v2092 = vsel %vm2084, 1.0, 0.0
      %v2093 = vsel %vm2085, 1.0, 0.0
      %v2094 = vmul.f32 %v1433, %v2086
      %v2095 = vmul.f32 %v1432, %v2087
      %v2096 = vmul.f32 %v1431, %v2088
      %v2097 = vmul.f32 %v1430, %v2089
      %v2098 = vmul.f32 %v1429, %v2090
      %v2099 = vmul.f32 %v1428, %v2091
      %v2100 = vmul.f32 %v1427, %v2092
      %v2101 = vmul.f32 %v1426, %v2093
      %v2102 = vld [vmem:[%s866 + $0xa] sm:$0x1]
      %v2103 = vlaneseq
      %v2104 = vshrl.u32 %v2103, 7
      %v2105 = vsub.s32 0, %v2104
      %v2106 = vrot.slane %v2102, %v2105
      %v2107 = vmul.f32 %v2094, %v2106
      %v2108 = vmul.f32 %v2095, %v2106
      %v2109 = vmul.f32 %v2096, %v2106
      %v2110 = vmul.f32 %v2097, %v2106
      %v2111 = vmul.f32 %v2098, %v2106
      %v2112 = vmul.f32 %v2099, %v2106
      %v2113 = vmul.f32 %v2100, %v2106
      %v2114 = vmul.f32 %v2101, %v2106
      %v2115 = vadd.f32 %v2046, %v2107
      %v2116 = vadd.f32 %v2047, %v2108
      %v2117 = vadd.f32 %v2048, %v2109
      %v2118 = vadd.f32 %v2049, %v2110
      %v2119 = vadd.f32 %v2050, %v2111
      %v2120 = vadd.f32 %v2051, %v2112
      %v2121 = vadd.f32 %v2052, %v2113
      %v2122 = vadd.f32 %v2053, %v2114
      %v2123 = vadd.s32 %v1224, 4294967292
      %v2124 = vadd.s32 %v1225, 4294967292
      %v2125 = vadd.s32 %v1226, 4294967292
      %v2126 = vadd.s32 %v1227, 4294967292
      %v2127 = vadd.s32 %v1228, 4294967292
      %v2128 = vadd.s32 %v1229, 4294967292
      %v2129 = vadd.s32 %v1230, 4294967292
      %v2130 = vadd.s32 %v1231, 4294967292
      %vm2131 = vcmp.ge.s32.totalorder %v2123, 0
      %vm2132 = vcmp.ge.s32.totalorder %v2124, 0
      %vm2133 = vcmp.ge.s32.totalorder %v2125, 0
      %vm2134 = vcmp.ge.s32.totalorder %v2126, 0
      %vm2135 = vcmp.ge.s32.totalorder %v2127, 0
      %vm2136 = vcmp.ge.s32.totalorder %v2128, 0
      %vm2137 = vcmp.ge.s32.totalorder %v2129, 0
      %vm2138 = vcmp.ge.s32.totalorder %v2130, 0
      %vm2139 = vcmp.lt.s32.totalorder %v2123, 64
      %vm2140 = vcmp.lt.s32.totalorder %v2124, 64
      %vm2141 = vcmp.lt.s32.totalorder %v2125, 64
      %vm2142 = vcmp.lt.s32.totalorder %v2126, 64
      %vm2143 = vcmp.lt.s32.totalorder %v2127, 64
      %vm2144 = vcmp.lt.s32.totalorder %v2128, 64
      %vm2145 = vcmp.lt.s32.totalorder %v2129, 64
      %vm2146 = vcmp.lt.s32.totalorder %v2130, 64
      %vm2147 = vmand %vm2131, %vm2139
      %vm2148 = vmand %vm2132, %vm2140
      %vm2149 = vmand %vm2133, %vm2141
      %vm2150 = vmand %vm2134, %vm2142
      %vm2151 = vmand %vm2135, %vm2143
      %vm2152 = vmand %vm2136, %vm2144
      %vm2153 = vmand %vm2137, %vm2145
      %vm2154 = vmand %vm2138, %vm2146
      %v2155 = vsel %vm2147, 1.0, 0.0
      %v2156 = vsel %vm2148, 1.0, 0.0
      %v2157 = vsel %vm2149, 1.0, 0.0
      %v2158 = vsel %vm2150, 1.0, 0.0
      %v2159 = vsel %vm2151, 1.0, 0.0
      %v2160 = vsel %vm2152, 1.0, 0.0
      %v2161 = vsel %vm2153, 1.0, 0.0
      %v2162 = vsel %vm2154, 1.0, 0.0
      %v2163 = vmul.f32 %v1519, %v2155
      %v2164 = vmul.f32 %v1518, %v2156
      %v2165 = vmul.f32 %v1517, %v2157
      %v2166 = vmul.f32 %v1516, %v2158
      %v2167 = vmul.f32 %v1515, %v2159
      %v2168 = vmul.f32 %v1514, %v2160
      %v2169 = vmul.f32 %v1513, %v2161
      %v2170 = vmul.f32 %v1512, %v2162
      %v2171 = vld [vmem:[%s866 + $0xb] sm:$0x1]
      %v2172 = vlaneseq
      %v2173 = vshrl.u32 %v2172, 7
      %v2174 = vsub.s32 0, %v2173
      %v2175 = vrot.slane %v2171, %v2174
      %v2176 = vmul.f32 %v2163, %v2175
      %v2177 = vmul.f32 %v2164, %v2175
      %v2178 = vmul.f32 %v2165, %v2175
      %v2179 = vmul.f32 %v2166, %v2175
      %v2180 = vmul.f32 %v2167, %v2175
      %v2181 = vmul.f32 %v2168, %v2175
      %v2182 = vmul.f32 %v2169, %v2175
      %v2183 = vmul.f32 %v2170, %v2175
      %v2184 = vadd.f32 %v2115, %v2176
      %v2185 = vadd.f32 %v2116, %v2177
      %v2186 = vadd.f32 %v2117, %v2178
      %v2187 = vadd.f32 %v2118, %v2179
      %v2188 = vadd.f32 %v2119, %v2180
      %v2189 = vadd.f32 %v2120, %v2181
      %v2190 = vadd.f32 %v2121, %v2182
      %v2191 = vadd.f32 %v2122, %v2183
      %v2192 = vadd.s32 %v1224, 4294967293
      %v2193 = vadd.s32 %v1225, 4294967293
      %v2194 = vadd.s32 %v1226, 4294967293
      %v2195 = vadd.s32 %v1227, 4294967293
      %v2196 = vadd.s32 %v1228, 4294967293
      %v2197 = vadd.s32 %v1229, 4294967293
      %v2198 = vadd.s32 %v1230, 4294967293
      %v2199 = vadd.s32 %v1231, 4294967293
      %vm2200 = vcmp.ge.s32.totalorder %v2192, 0
      %vm2201 = vcmp.ge.s32.totalorder %v2193, 0
      %vm2202 = vcmp.ge.s32.totalorder %v2194, 0
      %vm2203 = vcmp.ge.s32.totalorder %v2195, 0
      %vm2204 = vcmp.ge.s32.totalorder %v2196, 0
      %vm2205 = vcmp.ge.s32.totalorder %v2197, 0
      %vm2206 = vcmp.ge.s32.totalorder %v2198, 0
      %vm2207 = vcmp.ge.s32.totalorder %v2199, 0
      %vm2208 = vcmp.lt.s32.totalorder %v2192, 64
      %vm2209 = vcmp.lt.s32.totalorder %v2193, 64
      %vm2210 = vcmp.lt.s32.totalorder %v2194, 64
      %vm2211 = vcmp.lt.s32.totalorder %v2195, 64
      %vm2212 = vcmp.lt.s32.totalorder %v2196, 64
      %vm2213 = vcmp.lt.s32.totalorder %v2197, 64
      %vm2214 = vcmp.lt.s32.totalorder %v2198, 64
      %vm2215 = vcmp.lt.s32.totalorder %v2199, 64
      %vm2216 = vmand %vm2200, %vm2208
      %vm2217 = vmand %vm2201, %vm2209
      %vm2218 = vmand %vm2202, %vm2210
      %vm2219 = vmand %vm2203, %vm2211
      %vm2220 = vmand %vm2204, %vm2212
      %vm2221 = vmand %vm2205, %vm2213
      %vm2222 = vmand %vm2206, %vm2214
      %vm2223 = vmand %vm2207, %vm2215
      %v2224 = vsel %vm2216, 1.0, 0.0
      %v2225 = vsel %vm2217, 1.0, 0.0
      %v2226 = vsel %vm2218, 1.0, 0.0
      %v2227 = vsel %vm2219, 1.0, 0.0
      %v2228 = vsel %vm2220, 1.0, 0.0
      %v2229 = vsel %vm2221, 1.0, 0.0
      %v2230 = vsel %vm2222, 1.0, 0.0
      %v2231 = vsel %vm2223, 1.0, 0.0
      %v2232 = vmul.f32 %v1605, %v2224
      %v2233 = vmul.f32 %v1604, %v2225
      %v2234 = vmul.f32 %v1603, %v2226
      %v2235 = vmul.f32 %v1602, %v2227
      %v2236 = vmul.f32 %v1601, %v2228
      %v2237 = vmul.f32 %v1600, %v2229
      %v2238 = vmul.f32 %v1599, %v2230
      %v2239 = vmul.f32 %v1598, %v2231
      %v2240 = vld [vmem:[%s866 + $0xc] sm:$0x1]
      %v2241 = vlaneseq
      %v2242 = vshrl.u32 %v2241, 7
      %v2243 = vsub.s32 0, %v2242
      %v2244 = vrot.slane %v2240, %v2243
      %v2245 = vmul.f32 %v2232, %v2244
      %v2246 = vmul.f32 %v2233, %v2244
      %v2247 = vmul.f32 %v2234, %v2244
      %v2248 = vmul.f32 %v2235, %v2244
      %v2249 = vmul.f32 %v2236, %v2244
      %v2250 = vmul.f32 %v2237, %v2244
      %v2251 = vmul.f32 %v2238, %v2244
      %v2252 = vmul.f32 %v2239, %v2244
      %v2253 = vadd.f32 %v2184, %v2245
      %v2254 = vadd.f32 %v2185, %v2246
      %v2255 = vadd.f32 %v2186, %v2247
      %v2256 = vadd.f32 %v2187, %v2248
      %v2257 = vadd.f32 %v2188, %v2249
      %v2258 = vadd.f32 %v2189, %v2250
      %v2259 = vadd.f32 %v2190, %v2251
      %v2260 = vadd.f32 %v2191, %v2252
      %v2261 = vadd.s32 %v1224, 4294967294
      %v2262 = vadd.s32 %v1225, 4294967294
      %v2263 = vadd.s32 %v1226, 4294967294
      %v2264 = vadd.s32 %v1227, 4294967294
      %v2265 = vadd.s32 %v1228, 4294967294
      %v2266 = vadd.s32 %v1229, 4294967294
      %v2267 = vadd.s32 %v1230, 4294967294
      %v2268 = vadd.s32 %v1231, 4294967294
      %vm2269 = vcmp.ge.s32.totalorder %v2261, 0
      %vm2270 = vcmp.ge.s32.totalorder %v2262, 0
      %vm2271 = vcmp.ge.s32.totalorder %v2263, 0
      %vm2272 = vcmp.ge.s32.totalorder %v2264, 0
      %vm2273 = vcmp.ge.s32.totalorder %v2265, 0
      %vm2274 = vcmp.ge.s32.totalorder %v2266, 0
      %vm2275 = vcmp.ge.s32.totalorder %v2267, 0
      %vm2276 = vcmp.ge.s32.totalorder %v2268, 0
      %vm2277 = vcmp.lt.s32.totalorder %v2261, 64
      %vm2278 = vcmp.lt.s32.totalorder %v2262, 64
      %vm2279 = vcmp.lt.s32.totalorder %v2263, 64
      %vm2280 = vcmp.lt.s32.totalorder %v2264, 64
      %vm2281 = vcmp.lt.s32.totalorder %v2265, 64
      %vm2282 = vcmp.lt.s32.totalorder %v2266, 64
      %vm2283 = vcmp.lt.s32.totalorder %v2267, 64
      %vm2284 = vcmp.lt.s32.totalorder %v2268, 64
      %vm2285 = vmand %vm2269, %vm2277
      %vm2286 = vmand %vm2270, %vm2278
      %vm2287 = vmand %vm2271, %vm2279
      %vm2288 = vmand %vm2272, %vm2280
      %vm2289 = vmand %vm2273, %vm2281
      %vm2290 = vmand %vm2274, %vm2282
      %vm2291 = vmand %vm2275, %vm2283
      %vm2292 = vmand %vm2276, %vm2284
      %v2293 = vsel %vm2285, 1.0, 0.0
      %v2294 = vsel %vm2286, 1.0, 0.0
      %v2295 = vsel %vm2287, 1.0, 0.0
      %v2296 = vsel %vm2288, 1.0, 0.0
      %v2297 = vsel %vm2289, 1.0, 0.0
      %v2298 = vsel %vm2290, 1.0, 0.0
      %v2299 = vsel %vm2291, 1.0, 0.0
      %v2300 = vsel %vm2292, 1.0, 0.0
      %v2301 = vmul.f32 %v1691, %v2293
      %v2302 = vmul.f32 %v1690, %v2294
      %v2303 = vmul.f32 %v1689, %v2295
      %v2304 = vmul.f32 %v1688, %v2296
      %v2305 = vmul.f32 %v1687, %v2297
      %v2306 = vmul.f32 %v1686, %v2298
      %v2307 = vmul.f32 %v1685, %v2299
      %v2308 = vmul.f32 %v1684, %v2300
      %v2309 = vld [vmem:[%s866 + $0xd] sm:$0x1]
      %v2310 = vlaneseq
      %v2311 = vshrl.u32 %v2310, 7
      %v2312 = vsub.s32 0, %v2311
      %v2313 = vrot.slane %v2309, %v2312
      %v2314 = vmul.f32 %v2301, %v2313
      %v2315 = vmul.f32 %v2302, %v2313
      %v2316 = vmul.f32 %v2303, %v2313
      %v2317 = vmul.f32 %v2304, %v2313
      %v2318 = vmul.f32 %v2305, %v2313
      %v2319 = vmul.f32 %v2306, %v2313
      %v2320 = vmul.f32 %v2307, %v2313
      %v2321 = vmul.f32 %v2308, %v2313
      %v2322 = vadd.f32 %v2253, %v2314
      %v2323 = vadd.f32 %v2254, %v2315
      %v2324 = vadd.f32 %v2255, %v2316
      %v2325 = vadd.f32 %v2256, %v2317
      %v2326 = vadd.f32 %v2257, %v2318
      %v2327 = vadd.f32 %v2258, %v2319
      %v2328 = vadd.f32 %v2259, %v2320
      %v2329 = vadd.f32 %v2260, %v2321
      %v2330 = vadd.s32 %v1224, 4294967295
      %v2331 = vadd.s32 %v1225, 4294967295
      %v2332 = vadd.s32 %v1226, 4294967295
      %v2333 = vadd.s32 %v1227, 4294967295
      %v2334 = vadd.s32 %v1228, 4294967295
      %v2335 = vadd.s32 %v1229, 4294967295
      %v2336 = vadd.s32 %v1230, 4294967295
      %v2337 = vadd.s32 %v1231, 4294967295
      %vm2338 = vcmp.ge.s32.totalorder %v2330, 0
      %vm2339 = vcmp.ge.s32.totalorder %v2331, 0
      %vm2340 = vcmp.ge.s32.totalorder %v2332, 0
      %vm2341 = vcmp.ge.s32.totalorder %v2333, 0
      %vm2342 = vcmp.ge.s32.totalorder %v2334, 0
      %vm2343 = vcmp.ge.s32.totalorder %v2335, 0
      %vm2344 = vcmp.ge.s32.totalorder %v2336, 0
      %vm2345 = vcmp.ge.s32.totalorder %v2337, 0
      %vm2346 = vcmp.lt.s32.totalorder %v2330, 64
      %vm2347 = vcmp.lt.s32.totalorder %v2331, 64
      %vm2348 = vcmp.lt.s32.totalorder %v2332, 64
      %vm2349 = vcmp.lt.s32.totalorder %v2333, 64
      %vm2350 = vcmp.lt.s32.totalorder %v2334, 64
      %vm2351 = vcmp.lt.s32.totalorder %v2335, 64
      %vm2352 = vcmp.lt.s32.totalorder %v2336, 64
      %vm2353 = vcmp.lt.s32.totalorder %v2337, 64
      %vm2354 = vmand %vm2338, %vm2346
      %vm2355 = vmand %vm2339, %vm2347
      %vm2356 = vmand %vm2340, %vm2348
      %vm2357 = vmand %vm2341, %vm2349
      %vm2358 = vmand %vm2342, %vm2350
      %vm2359 = vmand %vm2343, %vm2351
      %vm2360 = vmand %vm2344, %vm2352
      %vm2361 = vmand %vm2345, %vm2353
      %v2362 = vsel %vm2354, 1.0, 0.0
      %v2363 = vsel %vm2355, 1.0, 0.0
      %v2364 = vsel %vm2356, 1.0, 0.0
      %v2365 = vsel %vm2357, 1.0, 0.0
      %v2366 = vsel %vm2358, 1.0, 0.0
      %v2367 = vsel %vm2359, 1.0, 0.0
      %v2368 = vsel %vm2360, 1.0, 0.0
      %v2369 = vsel %vm2361, 1.0, 0.0
      %v2370 = vmul.f32 %v1777, %v2362
      %v2371 = vmul.f32 %v1776, %v2363
      %v2372 = vmul.f32 %v1775, %v2364
      %v2373 = vmul.f32 %v1774, %v2365
      %v2374 = vmul.f32 %v1773, %v2366
      %v2375 = vmul.f32 %v1772, %v2367
      %v2376 = vmul.f32 %v1771, %v2368
      %v2377 = vmul.f32 %v1770, %v2369
      %v2378 = vld [vmem:[%s866 + $0xe] sm:$0x1]
      %v2379 = vlaneseq
      %v2380 = vshrl.u32 %v2379, 7
      %v2381 = vsub.s32 0, %v2380
      %v2382 = vrot.slane %v2378, %v2381
      %v2383 = vmul.f32 %v2370, %v2382
      %v2384 = vmul.f32 %v2371, %v2382
      %v2385 = vmul.f32 %v2372, %v2382
      %v2386 = vmul.f32 %v2373, %v2382
      %v2387 = vmul.f32 %v2374, %v2382
      %v2388 = vmul.f32 %v2375, %v2382
      %v2389 = vmul.f32 %v2376, %v2382
      %v2390 = vmul.f32 %v2377, %v2382
      %v2391 = vadd.f32 %v2322, %v2383
      %v2392 = vadd.f32 %v2323, %v2384
      %v2393 = vadd.f32 %v2324, %v2385
      %v2394 = vadd.f32 %v2325, %v2386
      %v2395 = vadd.f32 %v2326, %v2387
      %v2396 = vadd.f32 %v2327, %v2388
      %v2397 = vadd.f32 %v2328, %v2389
      %v2398 = vadd.f32 %v2329, %v2390
      %v2399 = vadd.s32 %v1224, 1
      %v2400 = vadd.s32 %v1225, 1
      %v2401 = vadd.s32 %v1226, 1
      %v2402 = vadd.s32 %v1227, 1
      %v2403 = vadd.s32 %v1228, 1
      %v2404 = vadd.s32 %v1229, 1
      %v2405 = vadd.s32 %v1230, 1
      %v2406 = vadd.s32 %v1231, 1
      %vm2407 = vcmp.ge.s32.totalorder %v2399, 0
      %vm2408 = vcmp.ge.s32.totalorder %v2400, 0
      %vm2409 = vcmp.ge.s32.totalorder %v2401, 0
      %vm2410 = vcmp.ge.s32.totalorder %v2402, 0
      %vm2411 = vcmp.ge.s32.totalorder %v2403, 0
      %vm2412 = vcmp.ge.s32.totalorder %v2404, 0
      %vm2413 = vcmp.ge.s32.totalorder %v2405, 0
      %vm2414 = vcmp.ge.s32.totalorder %v2406, 0
      %vm2415 = vcmp.lt.s32.totalorder %v2399, 64
      %vm2416 = vcmp.lt.s32.totalorder %v2400, 64
      %vm2417 = vcmp.lt.s32.totalorder %v2401, 64
      %vm2418 = vcmp.lt.s32.totalorder %v2402, 64
      %vm2419 = vcmp.lt.s32.totalorder %v2403, 64
      %vm2420 = vcmp.lt.s32.totalorder %v2404, 64
      %vm2421 = vcmp.lt.s32.totalorder %v2405, 64
      %vm2422 = vcmp.lt.s32.totalorder %v2406, 64
      %vm2423 = vmand %vm2407, %vm2415
      %vm2424 = vmand %vm2408, %vm2416
      %vm2425 = vmand %vm2409, %vm2417
      %vm2426 = vmand %vm2410, %vm2418
      %vm2427 = vmand %vm2411, %vm2419
      %vm2428 = vmand %vm2412, %vm2420
      %vm2429 = vmand %vm2413, %vm2421
      %vm2430 = vmand %vm2414, %vm2422
      %v2431 = vsel %vm2423, 1.0, 0.0
      %v2432 = vsel %vm2424, 1.0, 0.0
      %v2433 = vsel %vm2425, 1.0, 0.0
      %v2434 = vsel %vm2426, 1.0, 0.0
      %v2435 = vsel %vm2427, 1.0, 0.0
      %v2436 = vsel %vm2428, 1.0, 0.0
      %v2437 = vsel %vm2429, 1.0, 0.0
      %v2438 = vsel %vm2430, 1.0, 0.0
      %v2439 = vmul.f32 %v1260, %v2431
      %v2440 = vmul.f32 %v1259, %v2432
      %v2441 = vmul.f32 %v1258, %v2433
      %v2442 = vmul.f32 %v1257, %v2434
      %v2443 = vmul.f32 %v1256, %v2435
      %v2444 = vmul.f32 %v1255, %v2436
      %v2445 = vmul.f32 %v1254, %v2437
      %v2446 = vmul.f32 %v1261, %v2438
      %v2447 = vld [vmem:[%s866 + $0x10] sm:$0x1]
      %v2448 = vlaneseq
      %v2449 = vshrl.u32 %v2448, 7
      %v2450 = vsub.s32 0, %v2449
      %v2451 = vrot.slane %v2447, %v2450
      %v2452 = vmul.f32 %v2439, %v2451
      %v2453 = vmul.f32 %v2440, %v2451
      %v2454 = vmul.f32 %v2441, %v2451
      %v2455 = vmul.f32 %v2442, %v2451
      %v2456 = vmul.f32 %v2443, %v2451
      %v2457 = vmul.f32 %v2444, %v2451
      %v2458 = vmul.f32 %v2445, %v2451
      %v2459 = vmul.f32 %v2446, %v2451
      %v2460 = vadd.f32 %v2391, %v2452
      %v2461 = vadd.f32 %v2392, %v2453
      %v2462 = vadd.f32 %v2393, %v2454
      %v2463 = vadd.f32 %v2394, %v2455
      %v2464 = vadd.f32 %v2395, %v2456
      %v2465 = vadd.f32 %v2396, %v2457
      %v2466 = vadd.f32 %v2397, %v2458
      %v2467 = vadd.f32 %v2398, %v2459
      %v2468 = vadd.s32 %v1224, 2
      %v2469 = vadd.s32 %v1225, 2
      %v2470 = vadd.s32 %v1226, 2
      %v2471 = vadd.s32 %v1227, 2
      %v2472 = vadd.s32 %v1228, 2
      %v2473 = vadd.s32 %v1229, 2
      %v2474 = vadd.s32 %v1230, 2
      %v2475 = vadd.s32 %v1231, 2
      %vm2476 = vcmp.ge.s32.totalorder %v2468, 0
      %vm2477 = vcmp.ge.s32.totalorder %v2469, 0
      %vm2478 = vcmp.ge.s32.totalorder %v2470, 0
      %vm2479 = vcmp.ge.s32.totalorder %v2471, 0
      %vm2480 = vcmp.ge.s32.totalorder %v2472, 0
      %vm2481 = vcmp.ge.s32.totalorder %v2473, 0
      %vm2482 = vcmp.ge.s32.totalorder %v2474, 0
      %vm2483 = vcmp.ge.s32.totalorder %v2475, 0
      %vm2484 = vcmp.lt.s32.totalorder %v2468, 64
      %vm2485 = vcmp.lt.s32.totalorder %v2469, 64
      %vm2486 = vcmp.lt.s32.totalorder %v2470, 64
      %vm2487 = vcmp.lt.s32.totalorder %v2471, 64
      %vm2488 = vcmp.lt.s32.totalorder %v2472, 64
      %vm2489 = vcmp.lt.s32.totalorder %v2473, 64
      %vm2490 = vcmp.lt.s32.totalorder %v2474, 64
      %vm2491 = vcmp.lt.s32.totalorder %v2475, 64
      %vm2492 = vmand %vm2476, %vm2484
      %vm2493 = vmand %vm2477, %vm2485
      %vm2494 = vmand %vm2478, %vm2486
      %vm2495 = vmand %vm2479, %vm2487
      %vm2496 = vmand %vm2480, %vm2488
      %vm2497 = vmand %vm2481, %vm2489
      %vm2498 = vmand %vm2482, %vm2490
      %vm2499 = vmand %vm2483, %vm2491
      %v2500 = vsel %vm2492, 1.0, 0.0
      %v2501 = vsel %vm2493, 1.0, 0.0
      %v2502 = vsel %vm2494, 1.0, 0.0
      %v2503 = vsel %vm2495, 1.0, 0.0
      %v2504 = vsel %vm2496, 1.0, 0.0
      %v2505 = vsel %vm2497, 1.0, 0.0
      %v2506 = vsel %vm2498, 1.0, 0.0
      %v2507 = vsel %vm2499, 1.0, 0.0
      %v2508 = vmul.f32 %v1346, %v2500
      %v2509 = vmul.f32 %v1345, %v2501
      %v2510 = vmul.f32 %v1344, %v2502
      %v2511 = vmul.f32 %v1343, %v2503
      %v2512 = vmul.f32 %v1342, %v2504
      %v2513 = vmul.f32 %v1341, %v2505
      %v2514 = vmul.f32 %v1340, %v2506
      %v2515 = vmul.f32 %v1347, %v2507
      %v2516 = vld [vmem:[%s866 + $0x11] sm:$0x1]
      %v2517 = vlaneseq
      %v2518 = vshrl.u32 %v2517, 7
      %v2519 = vsub.s32 0, %v2518
      %v2520 = vrot.slane %v2516, %v2519
      %v2521 = vmul.f32 %v2508, %v2520
      %v2522 = vmul.f32 %v2509, %v2520
      %v2523 = vmul.f32 %v2510, %v2520
      %v2524 = vmul.f32 %v2511, %v2520
      %v2525 = vmul.f32 %v2512, %v2520
      %v2526 = vmul.f32 %v2513, %v2520
      %v2527 = vmul.f32 %v2514, %v2520
      %v2528 = vmul.f32 %v2515, %v2520
      %v2529 = vadd.f32 %v2460, %v2521
      %v2530 = vadd.f32 %v2461, %v2522
      %v2531 = vadd.f32 %v2462, %v2523
      %v2532 = vadd.f32 %v2463, %v2524
      %v2533 = vadd.f32 %v2464, %v2525
      %v2534 = vadd.f32 %v2465, %v2526
      %v2535 = vadd.f32 %v2466, %v2527
      %v2536 = vadd.f32 %v2467, %v2528
      %v2537 = vadd.s32 %v1224, 3
      %v2538 = vadd.s32 %v1225, 3
      %v2539 = vadd.s32 %v1226, 3
      %v2540 = vadd.s32 %v1227, 3
      %v2541 = vadd.s32 %v1228, 3
      %v2542 = vadd.s32 %v1229, 3
      %v2543 = vadd.s32 %v1230, 3
      %v2544 = vadd.s32 %v1231, 3
      %vm2545 = vcmp.ge.s32.totalorder %v2537, 0
      %vm2546 = vcmp.ge.s32.totalorder %v2538, 0
      %vm2547 = vcmp.ge.s32.totalorder %v2539, 0
      %vm2548 = vcmp.ge.s32.totalorder %v2540, 0
      %vm2549 = vcmp.ge.s32.totalorder %v2541, 0
      %vm2550 = vcmp.ge.s32.totalorder %v2542, 0
      %vm2551 = vcmp.ge.s32.totalorder %v2543, 0
      %vm2552 = vcmp.ge.s32.totalorder %v2544, 0
      %vm2553 = vcmp.lt.s32.totalorder %v2537, 64
      %vm2554 = vcmp.lt.s32.totalorder %v2538, 64
      %vm2555 = vcmp.lt.s32.totalorder %v2539, 64
      %vm2556 = vcmp.lt.s32.totalorder %v2540, 64
      %vm2557 = vcmp.lt.s32.totalorder %v2541, 64
      %vm2558 = vcmp.lt.s32.totalorder %v2542, 64
      %vm2559 = vcmp.lt.s32.totalorder %v2543, 64
      %vm2560 = vcmp.lt.s32.totalorder %v2544, 64
      %vm2561 = vmand %vm2545, %vm2553
      %vm2562 = vmand %vm2546, %vm2554
      %vm2563 = vmand %vm2547, %vm2555
      %vm2564 = vmand %vm2548, %vm2556
      %vm2565 = vmand %vm2549, %vm2557
      %vm2566 = vmand %vm2550, %vm2558
      %vm2567 = vmand %vm2551, %vm2559
      %vm2568 = vmand %vm2552, %vm2560
      %v2569 = vsel %vm2561, 1.0, 0.0
      %v2570 = vsel %vm2562, 1.0, 0.0
      %v2571 = vsel %vm2563, 1.0, 0.0
      %v2572 = vsel %vm2564, 1.0, 0.0
      %v2573 = vsel %vm2565, 1.0, 0.0
      %v2574 = vsel %vm2566, 1.0, 0.0
      %v2575 = vsel %vm2567, 1.0, 0.0
      %v2576 = vsel %vm2568, 1.0, 0.0
      %v2577 = vmul.f32 %v1432, %v2569
      %v2578 = vmul.f32 %v1431, %v2570
      %v2579 = vmul.f32 %v1430, %v2571
      %v2580 = vmul.f32 %v1429, %v2572
      %v2581 = vmul.f32 %v1428, %v2573
      %v2582 = vmul.f32 %v1427, %v2574
      %v2583 = vmul.f32 %v1426, %v2575
      %v2584 = vmul.f32 %v1433, %v2576
      %v2585 = vld [vmem:[%s866 + $0x12] sm:$0x1]
      %v2586 = vlaneseq
      %v2587 = vshrl.u32 %v2586, 7
      %v2588 = vsub.s32 0, %v2587
      %v2589 = vrot.slane %v2585, %v2588
      %v2590 = vmul.f32 %v2577, %v2589
      %v2591 = vmul.f32 %v2578, %v2589
      %v2592 = vmul.f32 %v2579, %v2589
      %v2593 = vmul.f32 %v2580, %v2589
      %v2594 = vmul.f32 %v2581, %v2589
      %v2595 = vmul.f32 %v2582, %v2589
      %v2596 = vmul.f32 %v2583, %v2589
      %v2597 = vmul.f32 %v2584, %v2589
      %v2598 = vadd.f32 %v2529, %v2590
      %v2599 = vadd.f32 %v2530, %v2591
      %v2600 = vadd.f32 %v2531, %v2592
      %v2601 = vadd.f32 %v2532, %v2593
      %v2602 = vadd.f32 %v2533, %v2594
      %v2603 = vadd.f32 %v2534, %v2595
      %v2604 = vadd.f32 %v2535, %v2596
      %v2605 = vadd.f32 %v2536, %v2597
      %v2606 = vadd.s32 %v1224, 4
      %v2607 = vadd.s32 %v1225, 4
      %v2608 = vadd.s32 %v1226, 4
      %v2609 = vadd.s32 %v1227, 4
      %v2610 = vadd.s32 %v1228, 4
      %v2611 = vadd.s32 %v1229, 4
      %v2612 = vadd.s32 %v1230, 4
      %v2613 = vadd.s32 %v1231, 4
      %vm2614 = vcmp.ge.s32.totalorder %v2606, 0
      %vm2615 = vcmp.ge.s32.totalorder %v2607, 0
      %vm2616 = vcmp.ge.s32.totalorder %v2608, 0
      %vm2617 = vcmp.ge.s32.totalorder %v2609, 0
      %vm2618 = vcmp.ge.s32.totalorder %v2610, 0
      %vm2619 = vcmp.ge.s32.totalorder %v2611, 0
      %vm2620 = vcmp.ge.s32.totalorder %v2612, 0
      %vm2621 = vcmp.ge.s32.totalorder %v2613, 0
      %vm2622 = vcmp.lt.s32.totalorder %v2606, 64
      %vm2623 = vcmp.lt.s32.totalorder %v2607, 64
      %vm2624 = vcmp.lt.s32.totalorder %v2608, 64
      %vm2625 = vcmp.lt.s32.totalorder %v2609, 64
      %vm2626 = vcmp.lt.s32.totalorder %v2610, 64
      %vm2627 = vcmp.lt.s32.totalorder %v2611, 64
      %vm2628 = vcmp.lt.s32.totalorder %v2612, 64
      %vm2629 = vcmp.lt.s32.totalorder %v2613, 64
      %vm2630 = vmand %vm2614, %vm2622
      %vm2631 = vmand %vm2615, %vm2623
      %vm2632 = vmand %vm2616, %vm2624
      %vm2633 = vmand %vm2617, %vm2625
      %vm2634 = vmand %vm2618, %vm2626
      %vm2635 = vmand %vm2619, %vm2627
      %vm2636 = vmand %vm2620, %vm2628
      %vm2637 = vmand %vm2621, %vm2629
      %v2638 = vsel %vm2630, 1.0, 0.0
      %v2639 = vsel %vm2631, 1.0, 0.0
      %v2640 = vsel %vm2632, 1.0, 0.0
      %v2641 = vsel %vm2633, 1.0, 0.0
      %v2642 = vsel %vm2634, 1.0, 0.0
      %v2643 = vsel %vm2635, 1.0, 0.0
      %v2644 = vsel %vm2636, 1.0, 0.0
      %v2645 = vsel %vm2637, 1.0, 0.0
      %v2646 = vmul.f32 %v1518, %v2638
      %v2647 = vmul.f32 %v1517, %v2639
      %v2648 = vmul.f32 %v1516, %v2640
      %v2649 = vmul.f32 %v1515, %v2641
      %v2650 = vmul.f32 %v1514, %v2642
      %v2651 = vmul.f32 %v1513, %v2643
      %v2652 = vmul.f32 %v1512, %v2644
      %v2653 = vmul.f32 %v1519, %v2645
      %v2654 = vld [vmem:[%s866 + $0x13] sm:$0x1]
      %v2655 = vlaneseq
      %v2656 = vshrl.u32 %v2655, 7
      %v2657 = vsub.s32 0, %v2656
      %v2658 = vrot.slane %v2654, %v2657
      %v2659 = vmul.f32 %v2646, %v2658
      %v2660 = vmul.f32 %v2647, %v2658
      %v2661 = vmul.f32 %v2648, %v2658
      %v2662 = vmul.f32 %v2649, %v2658
      %v2663 = vmul.f32 %v2650, %v2658
      %v2664 = vmul.f32 %v2651, %v2658
      %v2665 = vmul.f32 %v2652, %v2658
      %v2666 = vmul.f32 %v2653, %v2658
      %v2667 = vadd.f32 %v2598, %v2659
      %v2668 = vadd.f32 %v2599, %v2660
      %v2669 = vadd.f32 %v2600, %v2661
      %v2670 = vadd.f32 %v2601, %v2662
      %v2671 = vadd.f32 %v2602, %v2663
      %v2672 = vadd.f32 %v2603, %v2664
      %v2673 = vadd.f32 %v2604, %v2665
      %v2674 = vadd.f32 %v2605, %v2666
      %v2675 = vadd.s32 %v1224, 5
      %v2676 = vadd.s32 %v1225, 5
      %v2677 = vadd.s32 %v1226, 5
      %v2678 = vadd.s32 %v1227, 5
      %v2679 = vadd.s32 %v1228, 5
      %v2680 = vadd.s32 %v1229, 5
      %v2681 = vadd.s32 %v1230, 5
      %v2682 = vadd.s32 %v1231, 5
      %vm2683 = vcmp.ge.s32.totalorder %v2675, 0
      %vm2684 = vcmp.ge.s32.totalorder %v2676, 0
      %vm2685 = vcmp.ge.s32.totalorder %v2677, 0
      %vm2686 = vcmp.ge.s32.totalorder %v2678, 0
      %vm2687 = vcmp.ge.s32.totalorder %v2679, 0
      %vm2688 = vcmp.ge.s32.totalorder %v2680, 0
      %vm2689 = vcmp.ge.s32.totalorder %v2681, 0
      %vm2690 = vcmp.ge.s32.totalorder %v2682, 0
      %vm2691 = vcmp.lt.s32.totalorder %v2675, 64
      %vm2692 = vcmp.lt.s32.totalorder %v2676, 64
      %vm2693 = vcmp.lt.s32.totalorder %v2677, 64
      %vm2694 = vcmp.lt.s32.totalorder %v2678, 64
      %vm2695 = vcmp.lt.s32.totalorder %v2679, 64
      %vm2696 = vcmp.lt.s32.totalorder %v2680, 64
      %vm2697 = vcmp.lt.s32.totalorder %v2681, 64
      %vm2698 = vcmp.lt.s32.totalorder %v2682, 64
      %vm2699 = vmand %vm2683, %vm2691
      %vm2700 = vmand %vm2684, %vm2692
      %vm2701 = vmand %vm2685, %vm2693
      %vm2702 = vmand %vm2686, %vm2694
      %vm2703 = vmand %vm2687, %vm2695
      %vm2704 = vmand %vm2688, %vm2696
      %vm2705 = vmand %vm2689, %vm2697
      %vm2706 = vmand %vm2690, %vm2698
      %v2707 = vsel %vm2699, 1.0, 0.0
      %v2708 = vsel %vm2700, 1.0, 0.0
      %v2709 = vsel %vm2701, 1.0, 0.0
      %v2710 = vsel %vm2702, 1.0, 0.0
      %v2711 = vsel %vm2703, 1.0, 0.0
      %v2712 = vsel %vm2704, 1.0, 0.0
      %v2713 = vsel %vm2705, 1.0, 0.0
      %v2714 = vsel %vm2706, 1.0, 0.0
      %v2715 = vmul.f32 %v1604, %v2707
      %v2716 = vmul.f32 %v1603, %v2708
      %v2717 = vmul.f32 %v1602, %v2709
      %v2718 = vmul.f32 %v1601, %v2710
      %v2719 = vmul.f32 %v1600, %v2711
      %v2720 = vmul.f32 %v1599, %v2712
      %v2721 = vmul.f32 %v1598, %v2713
      %v2722 = vmul.f32 %v1605, %v2714
      %v2723 = vld [vmem:[%s866 + $0x14] sm:$0x1]
      %v2724 = vlaneseq
      %v2725 = vshrl.u32 %v2724, 7
      %v2726 = vsub.s32 0, %v2725
      %v2727 = vrot.slane %v2723, %v2726
      %v2728 = vmul.f32 %v2715, %v2727
      %v2729 = vmul.f32 %v2716, %v2727
      %v2730 = vmul.f32 %v2717, %v2727
      %v2731 = vmul.f32 %v2718, %v2727
      %v2732 = vmul.f32 %v2719, %v2727
      %v2733 = vmul.f32 %v2720, %v2727
      %v2734 = vmul.f32 %v2721, %v2727
      %v2735 = vmul.f32 %v2722, %v2727
      %v2736 = vadd.f32 %v2667, %v2728
      %v2737 = vadd.f32 %v2668, %v2729
      %v2738 = vadd.f32 %v2669, %v2730
      %v2739 = vadd.f32 %v2670, %v2731
      %v2740 = vadd.f32 %v2671, %v2732
      %v2741 = vadd.f32 %v2672, %v2733
      %v2742 = vadd.f32 %v2673, %v2734
      %v2743 = vadd.f32 %v2674, %v2735
      %v2744 = vadd.s32 %v1224, 6
      %v2745 = vadd.s32 %v1225, 6
      %v2746 = vadd.s32 %v1226, 6
      %v2747 = vadd.s32 %v1227, 6
      %v2748 = vadd.s32 %v1228, 6
      %v2749 = vadd.s32 %v1229, 6
      %v2750 = vadd.s32 %v1230, 6
      %v2751 = vadd.s32 %v1231, 6
      %vm2752 = vcmp.ge.s32.totalorder %v2744, 0
      %vm2753 = vcmp.ge.s32.totalorder %v2745, 0
      %vm2754 = vcmp.ge.s32.totalorder %v2746, 0
      %vm2755 = vcmp.ge.s32.totalorder %v2747, 0
      %vm2756 = vcmp.ge.s32.totalorder %v2748, 0
      %vm2757 = vcmp.ge.s32.totalorder %v2749, 0
      %vm2758 = vcmp.ge.s32.totalorder %v2750, 0
      %vm2759 = vcmp.ge.s32.totalorder %v2751, 0
      %vm2760 = vcmp.lt.s32.totalorder %v2744, 64
      %vm2761 = vcmp.lt.s32.totalorder %v2745, 64
      %vm2762 = vcmp.lt.s32.totalorder %v2746, 64
      %vm2763 = vcmp.lt.s32.totalorder %v2747, 64
      %vm2764 = vcmp.lt.s32.totalorder %v2748, 64
      %vm2765 = vcmp.lt.s32.totalorder %v2749, 64
      %vm2766 = vcmp.lt.s32.totalorder %v2750, 64
      %vm2767 = vcmp.lt.s32.totalorder %v2751, 64
      %vm2768 = vmand %vm2752, %vm2760
      %vm2769 = vmand %vm2753, %vm2761
      %vm2770 = vmand %vm2754, %vm2762
      %vm2771 = vmand %vm2755, %vm2763
      %vm2772 = vmand %vm2756, %vm2764
      %vm2773 = vmand %vm2757, %vm2765
      %vm2774 = vmand %vm2758, %vm2766
      %vm2775 = vmand %vm2759, %vm2767
      %v2776 = vsel %vm2768, 1.0, 0.0
      %v2777 = vsel %vm2769, 1.0, 0.0
      %v2778 = vsel %vm2770, 1.0, 0.0
      %v2779 = vsel %vm2771, 1.0, 0.0
      %v2780 = vsel %vm2772, 1.0, 0.0
      %v2781 = vsel %vm2773, 1.0, 0.0
      %v2782 = vsel %vm2774, 1.0, 0.0
      %v2783 = vsel %vm2775, 1.0, 0.0
      %v2784 = vmul.f32 %v1690, %v2776
      %v2785 = vmul.f32 %v1689, %v2777
      %v2786 = vmul.f32 %v1688, %v2778
      %v2787 = vmul.f32 %v1687, %v2779
      %v2788 = vmul.f32 %v1686, %v2780
      %v2789 = vmul.f32 %v1685, %v2781
      %v2790 = vmul.f32 %v1684, %v2782
      %v2791 = vmul.f32 %v1691, %v2783
      %v2792 = vld [vmem:[%s866 + $0x15] sm:$0x1]
      %v2793 = vlaneseq
      %v2794 = vshrl.u32 %v2793, 7
      %v2795 = vsub.s32 0, %v2794
      %v2796 = vrot.slane %v2792, %v2795
      %v2797 = vmul.f32 %v2784, %v2796
      %v2798 = vmul.f32 %v2785, %v2796
      %v2799 = vmul.f32 %v2786, %v2796
      %v2800 = vmul.f32 %v2787, %v2796
      %v2801 = vmul.f32 %v2788, %v2796
      %v2802 = vmul.f32 %v2789, %v2796
      %v2803 = vmul.f32 %v2790, %v2796
      %v2804 = vmul.f32 %v2791, %v2796
      %v2805 = vadd.f32 %v2736, %v2797
      %v2806 = vadd.f32 %v2737, %v2798
      %v2807 = vadd.f32 %v2738, %v2799
      %v2808 = vadd.f32 %v2739, %v2800
      %v2809 = vadd.f32 %v2740, %v2801
      %v2810 = vadd.f32 %v2741, %v2802
      %v2811 = vadd.f32 %v2742, %v2803
      %v2812 = vadd.f32 %v2743, %v2804
      %v2813 = vadd.s32 %v1224, 7
      %v2814 = vadd.s32 %v1225, 7
      %v2815 = vadd.s32 %v1226, 7
      %v2816 = vadd.s32 %v1227, 7
      %v2817 = vadd.s32 %v1228, 7
      %v2818 = vadd.s32 %v1229, 7
      %v2819 = vadd.s32 %v1230, 7
      %v2820 = vadd.s32 %v1231, 7
      %vm2821 = vcmp.ge.s32.totalorder %v2813, 0
      %vm2822 = vcmp.ge.s32.totalorder %v2814, 0
      %vm2823 = vcmp.ge.s32.totalorder %v2815, 0
      %vm2824 = vcmp.ge.s32.totalorder %v2816, 0
      %vm2825 = vcmp.ge.s32.totalorder %v2817, 0
      %vm2826 = vcmp.ge.s32.totalorder %v2818, 0
      %vm2827 = vcmp.ge.s32.totalorder %v2819, 0
      %vm2828 = vcmp.ge.s32.totalorder %v2820, 0
      %vm2829 = vcmp.lt.s32.totalorder %v2813, 64
      %vm2830 = vcmp.lt.s32.totalorder %v2814, 64
      %vm2831 = vcmp.lt.s32.totalorder %v2815, 64
      %vm2832 = vcmp.lt.s32.totalorder %v2816, 64
      %vm2833 = vcmp.lt.s32.totalorder %v2817, 64
      %vm2834 = vcmp.lt.s32.totalorder %v2818, 64
      %vm2835 = vcmp.lt.s32.totalorder %v2819, 64
      %vm2836 = vcmp.lt.s32.totalorder %v2820, 64
      %vm2837 = vmand %vm2821, %vm2829
      %vm2838 = vmand %vm2822, %vm2830
      %vm2839 = vmand %vm2823, %vm2831
      %vm2840 = vmand %vm2824, %vm2832
      %vm2841 = vmand %vm2825, %vm2833
      %vm2842 = vmand %vm2826, %vm2834
      %vm2843 = vmand %vm2827, %vm2835
      %vm2844 = vmand %vm2828, %vm2836
      %v2845 = vsel %vm2837, 1.0, 0.0
      %v2846 = vsel %vm2838, 1.0, 0.0
      %v2847 = vsel %vm2839, 1.0, 0.0
      %v2848 = vsel %vm2840, 1.0, 0.0
      %v2849 = vsel %vm2841, 1.0, 0.0
      %v2850 = vsel %vm2842, 1.0, 0.0
      %v2851 = vsel %vm2843, 1.0, 0.0
      %v2852 = vsel %vm2844, 1.0, 0.0
      %v2853 = vmul.f32 %v1776, %v2845
      %v2854 = vmul.f32 %v1775, %v2846
      %v2855 = vmul.f32 %v1774, %v2847
      %v2856 = vmul.f32 %v1773, %v2848
      %v2857 = vmul.f32 %v1772, %v2849
      %v2858 = vmul.f32 %v1771, %v2850
      %v2859 = vmul.f32 %v1770, %v2851
      %v2860 = vmul.f32 %v1777, %v2852
      %v2861 = vld [vmem:[%s866 + $0x16] sm:$0x1]
      %v2862 = vlaneseq
      %v2863 = vshrl.u32 %v2862, 7
      %v2864 = vsub.s32 0, %v2863
      %v2865 = vrot.slane %v2861, %v2864
      %v2866 = vmul.f32 %v2853, %v2865
      %v2867 = vmul.f32 %v2854, %v2865
      %v2868 = vmul.f32 %v2855, %v2865
      %v2869 = vmul.f32 %v2856, %v2865
      %v2870 = vmul.f32 %v2857, %v2865
      %v2871 = vmul.f32 %v2858, %v2865
      %v2872 = vmul.f32 %v2859, %v2865
      %v2873 = vmul.f32 %v2860, %v2865
      %v2874 = vadd.f32 %v2805, %v2866
      %v2875 = vadd.f32 %v2806, %v2867
      %v2876 = vadd.f32 %v2807, %v2868
      %v2877 = vadd.f32 %v2808, %v2869
      %v2878 = vadd.f32 %v2809, %v2870
      %v2879 = vadd.f32 %v2810, %v2871
      %v2880 = vadd.f32 %v2811, %v2872
      %v2881 = vadd.f32 %v2812, %v2873
      %v2882 = vadd.s32 %v1225, 8
      %v2883 = vadd.s32 %v1226, 8
      %v2884 = vadd.s32 %v1227, 8
      %v2885 = vadd.s32 %v1228, 8
      %v2886 = vadd.s32 %v1229, 8
      %v2887 = vadd.s32 %v1230, 8
      %v2888 = vadd.s32 %v1231, 8
      %vm2889 = vcmp.ge.s32.totalorder %v1225, 0
      %vm2890 = vcmp.ge.s32.totalorder %v2882, 0
      %vm2891 = vcmp.ge.s32.totalorder %v2883, 0
      %vm2892 = vcmp.ge.s32.totalorder %v2884, 0
      %vm2893 = vcmp.ge.s32.totalorder %v2885, 0
      %vm2894 = vcmp.ge.s32.totalorder %v2886, 0
      %vm2895 = vcmp.ge.s32.totalorder %v2887, 0
      %vm2896 = vcmp.ge.s32.totalorder %v2888, 0
      %vm2897 = vcmp.lt.s32.totalorder %v1225, 64
      %vm2898 = vcmp.lt.s32.totalorder %v2882, 64
      %vm2899 = vcmp.lt.s32.totalorder %v2883, 64
      %vm2900 = vcmp.lt.s32.totalorder %v2884, 64
      %vm2901 = vcmp.lt.s32.totalorder %v2885, 64
      %vm2902 = vcmp.lt.s32.totalorder %v2886, 64
      %vm2903 = vcmp.lt.s32.totalorder %v2887, 64
      %vm2904 = vcmp.lt.s32.totalorder %v2888, 64
      %vm2905 = vmand %vm2889, %vm2897
      %vm2906 = vmand %vm2890, %vm2898
      %vm2907 = vmand %vm2891, %vm2899
      %vm2908 = vmand %vm2892, %vm2900
      %vm2909 = vmand %vm2893, %vm2901
      %vm2910 = vmand %vm2894, %vm2902
      %vm2911 = vmand %vm2895, %vm2903
      %vm2912 = vmand %vm2896, %vm2904
      %v2913 = vsel %vm2905, 1.0, 0.0
      %v2914 = vsel %vm2906, 1.0, 0.0
      %v2915 = vsel %vm2907, 1.0, 0.0
      %v2916 = vsel %vm2908, 1.0, 0.0
      %v2917 = vsel %vm2909, 1.0, 0.0
      %v2918 = vsel %vm2910, 1.0, 0.0
      %v2919 = vsel %vm2911, 1.0, 0.0
      %v2920 = vsel %vm2912, 1.0, 0.0
      %v2921 = vmul.f32 %v1216, %v2913
      %v2922 = vmul.f32 %v1217, %v2914
      %v2923 = vmul.f32 %v1218, %v2915
      %v2924 = vmul.f32 %v1219, %v2916
      %v2925 = vmul.f32 %v1220, %v2917
      %v2926 = vmul.f32 %v1221, %v2918
      %v2927 = vmul.f32 %v1222, %v2919
      %v2928 = vmul.f32 %v1215, %v2920
      %v2929 = vld [vmem:[%s866 + $0x17] sm:$0x1]
      %v2930 = vlaneseq
      %v2931 = vshrl.u32 %v2930, 7
      %v2932 = vsub.s32 0, %v2931
      %v2933 = vrot.slane %v2929, %v2932
      %v2934 = vmul.f32 %v2921, %v2933
      %v2935 = vmul.f32 %v2922, %v2933
      %v2936 = vmul.f32 %v2923, %v2933
      %v2937 = vmul.f32 %v2924, %v2933
      %v2938 = vmul.f32 %v2925, %v2933
      %v2939 = vmul.f32 %v2926, %v2933
      %v2940 = vmul.f32 %v2927, %v2933
      %v2941 = vmul.f32 %v2928, %v2933
      %v2942 = vadd.f32 %v2874, %v2934
      %v2943 = vadd.f32 %v2875, %v2935
      %v2944 = vadd.f32 %v2876, %v2936
      %v2945 = vadd.f32 %v2877, %v2937
      %v2946 = vadd.f32 %v2878, %v2938
      %v2947 = vadd.f32 %v2879, %v2939
      %v2948 = vadd.f32 %v2880, %v2940
      %v2949 = vadd.f32 %v2881, %v2941
      %v2950 = vadd.s32 %v1224, 9
      %v2951 = vadd.s32 %v1225, 9
      %v2952 = vadd.s32 %v1226, 9
      %v2953 = vadd.s32 %v1227, 9
      %v2954 = vadd.s32 %v1228, 9
      %v2955 = vadd.s32 %v1229, 9
      %v2956 = vadd.s32 %v1230, 9
      %v2957 = vadd.s32 %v1231, 9
      %vm2958 = vcmp.ge.s32.totalorder %v2950, 0
      %vm2959 = vcmp.ge.s32.totalorder %v2951, 0
      %vm2960 = vcmp.ge.s32.totalorder %v2952, 0
      %vm2961 = vcmp.ge.s32.totalorder %v2953, 0
      %vm2962 = vcmp.ge.s32.totalorder %v2954, 0
      %vm2963 = vcmp.ge.s32.totalorder %v2955, 0
      %vm2964 = vcmp.ge.s32.totalorder %v2956, 0
      %vm2965 = vcmp.ge.s32.totalorder %v2957, 0
      %vm2966 = vcmp.lt.s32.totalorder %v2950, 64
      %vm2967 = vcmp.lt.s32.totalorder %v2951, 64
      %vm2968 = vcmp.lt.s32.totalorder %v2952, 64
      %vm2969 = vcmp.lt.s32.totalorder %v2953, 64
      %vm2970 = vcmp.lt.s32.totalorder %v2954, 64
      %vm2971 = vcmp.lt.s32.totalorder %v2955, 64
      %vm2972 = vcmp.lt.s32.totalorder %v2956, 64
      %vm2973 = vcmp.lt.s32.totalorder %v2957, 64
      %vm2974 = vmand %vm2958, %vm2966
      %vm2975 = vmand %vm2959, %vm2967
      %vm2976 = vmand %vm2960, %vm2968
      %vm2977 = vmand %vm2961, %vm2969
      %vm2978 = vmand %vm2962, %vm2970
      %vm2979 = vmand %vm2963, %vm2971
      %vm2980 = vmand %vm2964, %vm2972
      %vm2981 = vmand %vm2965, %vm2973
      %v2982 = vsel %vm2974, 1.0, 0.0
      %v2983 = vsel %vm2975, 1.0, 0.0
      %v2984 = vsel %vm2976, 1.0, 0.0
      %v2985 = vsel %vm2977, 1.0, 0.0
      %v2986 = vsel %vm2978, 1.0, 0.0
      %v2987 = vsel %vm2979, 1.0, 0.0
      %v2988 = vsel %vm2980, 1.0, 0.0
      %v2989 = vsel %vm2981, 1.0, 0.0
      %v2990 = vmul.f32 %v1259, %v2982
      %v2991 = vmul.f32 %v1258, %v2983
      %v2992 = vmul.f32 %v1257, %v2984
      %v2993 = vmul.f32 %v1256, %v2985
      %v2994 = vmul.f32 %v1255, %v2986
      %v2995 = vmul.f32 %v1254, %v2987
      %v2996 = vmul.f32 %v1261, %v2988
      %v2997 = vmul.f32 %v1260, %v2989
      %v2998 = vld [vmem:[%s866 + $0x18] sm:$0x1]
      %v2999 = vlaneseq
      %v3000 = vshrl.u32 %v2999, 7
      %v3001 = vsub.s32 0, %v3000
      %v3002 = vrot.slane %v2998, %v3001
      %v3003 = vmul.f32 %v2990, %v3002
      %v3004 = vmul.f32 %v2991, %v3002
      %v3005 = vmul.f32 %v2992, %v3002
      %v3006 = vmul.f32 %v2993, %v3002
      %v3007 = vmul.f32 %v2994, %v3002
      %v3008 = vmul.f32 %v2995, %v3002
      %v3009 = vmul.f32 %v2996, %v3002
      %v3010 = vmul.f32 %v2997, %v3002
      %v3011 = vadd.f32 %v2942, %v3003
      %v3012 = vadd.f32 %v2943, %v3004
      %v3013 = vadd.f32 %v2944, %v3005
      %v3014 = vadd.f32 %v2945, %v3006
      %v3015 = vadd.f32 %v2946, %v3007
      %v3016 = vadd.f32 %v2947, %v3008
      %v3017 = vadd.f32 %v2948, %v3009
      %v3018 = vadd.f32 %v2949, %v3010
      %v3019 = vadd.s32 %v1224, 10
      %v3020 = vadd.s32 %v1225, 10
      %v3021 = vadd.s32 %v1226, 10
      %v3022 = vadd.s32 %v1227, 10
      %v3023 = vadd.s32 %v1228, 10
      %v3024 = vadd.s32 %v1229, 10
      %v3025 = vadd.s32 %v1230, 10
      %v3026 = vadd.s32 %v1231, 10
      %vm3027 = vcmp.ge.s32.totalorder %v3019, 0
      %vm3028 = vcmp.ge.s32.totalorder %v3020, 0
      %vm3029 = vcmp.ge.s32.totalorder %v3021, 0
      %vm3030 = vcmp.ge.s32.totalorder %v3022, 0
      %vm3031 = vcmp.ge.s32.totalorder %v3023, 0
      %vm3032 = vcmp.ge.s32.totalorder %v3024, 0
      %vm3033 = vcmp.ge.s32.totalorder %v3025, 0
      %vm3034 = vcmp.ge.s32.totalorder %v3026, 0
      %vm3035 = vcmp.lt.s32.totalorder %v3019, 64
      %vm3036 = vcmp.lt.s32.totalorder %v3020, 64
      %vm3037 = vcmp.lt.s32.totalorder %v3021, 64
      %vm3038 = vcmp.lt.s32.totalorder %v3022, 64
      %vm3039 = vcmp.lt.s32.totalorder %v3023, 64
      %vm3040 = vcmp.lt.s32.totalorder %v3024, 64
      %vm3041 = vcmp.lt.s32.totalorder %v3025, 64
      %vm3042 = vcmp.lt.s32.totalorder %v3026, 64
      %vm3043 = vmand %vm3027, %vm3035
      %vm3044 = vmand %vm3028, %vm3036
      %vm3045 = vmand %vm3029, %vm3037
      %vm3046 = vmand %vm3030, %vm3038
      %vm3047 = vmand %vm3031, %vm3039
      %vm3048 = vmand %vm3032, %vm3040
      %vm3049 = vmand %vm3033, %vm3041
      %vm3050 = vmand %vm3034, %vm3042
      %v3051 = vsel %vm3043, 1.0, 0.0
      %v3052 = vsel %vm3044, 1.0, 0.0
      %v3053 = vsel %vm3045, 1.0, 0.0
      %v3054 = vsel %vm3046, 1.0, 0.0
      %v3055 = vsel %vm3047, 1.0, 0.0
      %v3056 = vsel %vm3048, 1.0, 0.0
      %v3057 = vsel %vm3049, 1.0, 0.0
      %v3058 = vsel %vm3050, 1.0, 0.0
      %v3059 = vmul.f32 %v1345, %v3051
      %v3060 = vmul.f32 %v1344, %v3052
      %v3061 = vmul.f32 %v1343, %v3053
      %v3062 = vmul.f32 %v1342, %v3054
      %v3063 = vmul.f32 %v1341, %v3055
      %v3064 = vmul.f32 %v1340, %v3056
      %v3065 = vmul.f32 %v1347, %v3057
      %v3066 = vmul.f32 %v1346, %v3058
      %v3067 = vld [vmem:[%s866 + $0x19] sm:$0x1]
      %v3068 = vlaneseq
      %v3069 = vshrl.u32 %v3068, 7
      %v3070 = vsub.s32 0, %v3069
      %v3071 = vrot.slane %v3067, %v3070
      %v3072 = vmul.f32 %v3059, %v3071
      %v3073 = vmul.f32 %v3060, %v3071
      %v3074 = vmul.f32 %v3061, %v3071
      %v3075 = vmul.f32 %v3062, %v3071
      %v3076 = vmul.f32 %v3063, %v3071
      %v3077 = vmul.f32 %v3064, %v3071
      %v3078 = vmul.f32 %v3065, %v3071
      %v3079 = vmul.f32 %v3066, %v3071
      %v3080 = vadd.f32 %v3011, %v3072
      %v3081 = vadd.f32 %v3012, %v3073
      %v3082 = vadd.f32 %v3013, %v3074
      %v3083 = vadd.f32 %v3014, %v3075
      %v3084 = vadd.f32 %v3015, %v3076
      %v3085 = vadd.f32 %v3016, %v3077
      %v3086 = vadd.f32 %v3017, %v3078
      %v3087 = vadd.f32 %v3018, %v3079
      %v3088 = vadd.s32 %v1224, 11
      %v3089 = vadd.s32 %v1225, 11
      %v3090 = vadd.s32 %v1226, 11
      %v3091 = vadd.s32 %v1227, 11
      %v3092 = vadd.s32 %v1228, 11
      %v3093 = vadd.s32 %v1229, 11
      %v3094 = vadd.s32 %v1230, 11
      %v3095 = vadd.s32 %v1231, 11
      %vm3096 = vcmp.ge.s32.totalorder %v3088, 0
      %vm3097 = vcmp.ge.s32.totalorder %v3089, 0
      %vm3098 = vcmp.ge.s32.totalorder %v3090, 0
      %vm3099 = vcmp.ge.s32.totalorder %v3091, 0
      %vm3100 = vcmp.ge.s32.totalorder %v3092, 0
      %vm3101 = vcmp.ge.s32.totalorder %v3093, 0
      %vm3102 = vcmp.ge.s32.totalorder %v3094, 0
      %vm3103 = vcmp.ge.s32.totalorder %v3095, 0
      %vm3104 = vcmp.lt.s32.totalorder %v3088, 64
      %vm3105 = vcmp.lt.s32.totalorder %v3089, 64
      %vm3106 = vcmp.lt.s32.totalorder %v3090, 64
      %vm3107 = vcmp.lt.s32.totalorder %v3091, 64
      %vm3108 = vcmp.lt.s32.totalorder %v3092, 64
      %vm3109 = vcmp.lt.s32.totalorder %v3093, 64
      %vm3110 = vcmp.lt.s32.totalorder %v3094, 64
      %vm3111 = vcmp.lt.s32.totalorder %v3095, 64
      %vm3112 = vmand %vm3096, %vm3104
      %vm3113 = vmand %vm3097, %vm3105
      %vm3114 = vmand %vm3098, %vm3106
      %vm3115 = vmand %vm3099, %vm3107
      %vm3116 = vmand %vm3100, %vm3108
      %vm3117 = vmand %vm3101, %vm3109
      %vm3118 = vmand %vm3102, %vm3110
      %vm3119 = vmand %vm3103, %vm3111
      %v3120 = vsel %vm3112, 1.0, 0.0
      %v3121 = vsel %vm3113, 1.0, 0.0
      %v3122 = vsel %vm3114, 1.0, 0.0
      %v3123 = vsel %vm3115, 1.0, 0.0
      %v3124 = vsel %vm3116, 1.0, 0.0
      %v3125 = vsel %vm3117, 1.0, 0.0
      %v3126 = vsel %vm3118, 1.0, 0.0
      %v3127 = vsel %vm3119, 1.0, 0.0
      %v3128 = vmul.f32 %v1431, %v3120
      %v3129 = vmul.f32 %v1430, %v3121
      %v3130 = vmul.f32 %v1429, %v3122
      %v3131 = vmul.f32 %v1428, %v3123
      %v3132 = vmul.f32 %v1427, %v3124
      %v3133 = vmul.f32 %v1426, %v3125
      %v3134 = vmul.f32 %v1433, %v3126
      %v3135 = vmul.f32 %v1432, %v3127
      %v3136 = vld [vmem:[%s866 + $0x1a] sm:$0x1]
      %v3137 = vlaneseq
      %v3138 = vshrl.u32 %v3137, 7
      %v3139 = vsub.s32 0, %v3138
      %v3140 = vrot.slane %v3136, %v3139
      %v3141 = vmul.f32 %v3128, %v3140
      %v3142 = vmul.f32 %v3129, %v3140
      %v3143 = vmul.f32 %v3130, %v3140
      %v3144 = vmul.f32 %v3131, %v3140
      %v3145 = vmul.f32 %v3132, %v3140
      %v3146 = vmul.f32 %v3133, %v3140
      %v3147 = vmul.f32 %v3134, %v3140
      %v3148 = vmul.f32 %v3135, %v3140
      %v3149 = vadd.f32 %v3080, %v3141
      %v3150 = vadd.f32 %v3081, %v3142
      %v3151 = vadd.f32 %v3082, %v3143
      %v3152 = vadd.f32 %v3083, %v3144
      %v3153 = vadd.f32 %v3084, %v3145
      %v3154 = vadd.f32 %v3085, %v3146
      %v3155 = vadd.f32 %v3086, %v3147
      %v3156 = vadd.f32 %v3087, %v3148
      %v3157 = vadd.s32 %v1224, 12
      %v3158 = vadd.s32 %v1225, 12
      %v3159 = vadd.s32 %v1226, 12
      %v3160 = vadd.s32 %v1227, 12
      %v3161 = vadd.s32 %v1228, 12
      %v3162 = vadd.s32 %v1229, 12
      %v3163 = vadd.s32 %v1230, 12
      %v3164 = vadd.s32 %v1231, 12
      %vm3165 = vcmp.ge.s32.totalorder %v3157, 0
      %vm3166 = vcmp.ge.s32.totalorder %v3158, 0
      %vm3167 = vcmp.ge.s32.totalorder %v3159, 0
      %vm3168 = vcmp.ge.s32.totalorder %v3160, 0
      %vm3169 = vcmp.ge.s32.totalorder %v3161, 0
      %vm3170 = vcmp.ge.s32.totalorder %v3162, 0
      %vm3171 = vcmp.ge.s32.totalorder %v3163, 0
      %vm3172 = vcmp.ge.s32.totalorder %v3164, 0
      %vm3173 = vcmp.lt.s32.totalorder %v3157, 64
      %vm3174 = vcmp.lt.s32.totalorder %v3158, 64
      %vm3175 = vcmp.lt.s32.totalorder %v3159, 64
      %vm3176 = vcmp.lt.s32.totalorder %v3160, 64
      %vm3177 = vcmp.lt.s32.totalorder %v3161, 64
      %vm3178 = vcmp.lt.s32.totalorder %v3162, 64
      %vm3179 = vcmp.lt.s32.totalorder %v3163, 64
      %vm3180 = vcmp.lt.s32.totalorder %v3164, 64
      %vm3181 = vmand %vm3165, %vm3173
      %vm3182 = vmand %vm3166, %vm3174
      %vm3183 = vmand %vm3167, %vm3175
      %vm3184 = vmand %vm3168, %vm3176
      %vm3185 = vmand %vm3169, %vm3177
      %vm3186 = vmand %vm3170, %vm3178
      %vm3187 = vmand %vm3171, %vm3179
      %vm3188 = vmand %vm3172, %vm3180
      %v3189 = vsel %vm3181, 1.0, 0.0
      %v3190 = vsel %vm3182, 1.0, 0.0
      %v3191 = vsel %vm3183, 1.0, 0.0
      %v3192 = vsel %vm3184, 1.0, 0.0
      %v3193 = vsel %vm3185, 1.0, 0.0
      %v3194 = vsel %vm3186, 1.0, 0.0
      %v3195 = vsel %vm3187, 1.0, 0.0
      %v3196 = vsel %vm3188, 1.0, 0.0
      %v3197 = vmul.f32 %v1517, %v3189
      %v3198 = vmul.f32 %v1516, %v3190
      %v3199 = vmul.f32 %v1515, %v3191
      %v3200 = vmul.f32 %v1514, %v3192
      %v3201 = vmul.f32 %v1513, %v3193
      %v3202 = vmul.f32 %v1512, %v3194
      %v3203 = vmul.f32 %v1519, %v3195
      %v3204 = vmul.f32 %v1518, %v3196
      %v3205 = vld [vmem:[%s866 + $0x1b] sm:$0x1]
      %v3206 = vlaneseq
      %v3207 = vshrl.u32 %v3206, 7
      %v3208 = vsub.s32 0, %v3207
      %v3209 = vrot.slane %v3205, %v3208
      %v3210 = vmul.f32 %v3197, %v3209
      %v3211 = vmul.f32 %v3198, %v3209
      %v3212 = vmul.f32 %v3199, %v3209
      %v3213 = vmul.f32 %v3200, %v3209
      %v3214 = vmul.f32 %v3201, %v3209
      %v3215 = vmul.f32 %v3202, %v3209
      %v3216 = vmul.f32 %v3203, %v3209
      %v3217 = vmul.f32 %v3204, %v3209
      %v3218 = vadd.f32 %v3149, %v3210
      %v3219 = vadd.f32 %v3150, %v3211
      %v3220 = vadd.f32 %v3151, %v3212
      %v3221 = vadd.f32 %v3152, %v3213
      %v3222 = vadd.f32 %v3153, %v3214
      %v3223 = vadd.f32 %v3154, %v3215
      %v3224 = vadd.f32 %v3155, %v3216
      %v3225 = vadd.f32 %v3156, %v3217
      %v3226 = vadd.s32 %v1224, 13
      %v3227 = vadd.s32 %v1225, 13
      %v3228 = vadd.s32 %v1226, 13
      %v3229 = vadd.s32 %v1227, 13
      %v3230 = vadd.s32 %v1228, 13
      %v3231 = vadd.s32 %v1229, 13
      %v3232 = vadd.s32 %v1230, 13
      %v3233 = vadd.s32 %v1231, 13
      %vm3234 = vcmp.ge.s32.totalorder %v3226, 0
      %vm3235 = vcmp.ge.s32.totalorder %v3227, 0
      %vm3236 = vcmp.ge.s32.totalorder %v3228, 0
      %vm3237 = vcmp.ge.s32.totalorder %v3229, 0
      %vm3238 = vcmp.ge.s32.totalorder %v3230, 0
      %vm3239 = vcmp.ge.s32.totalorder %v3231, 0
      %vm3240 = vcmp.ge.s32.totalorder %v3232, 0
      %vm3241 = vcmp.ge.s32.totalorder %v3233, 0
      %vm3242 = vcmp.lt.s32.totalorder %v3226, 64
      %vm3243 = vcmp.lt.s32.totalorder %v3227, 64
      %vm3244 = vcmp.lt.s32.totalorder %v3228, 64
      %vm3245 = vcmp.lt.s32.totalorder %v3229, 64
      %vm3246 = vcmp.lt.s32.totalorder %v3230, 64
      %vm3247 = vcmp.lt.s32.totalorder %v3231, 64
      %vm3248 = vcmp.lt.s32.totalorder %v3232, 64
      %vm3249 = vcmp.lt.s32.totalorder %v3233, 64
      %vm3250 = vmand %vm3234, %vm3242
      %vm3251 = vmand %vm3235, %vm3243
      %vm3252 = vmand %vm3236, %vm3244
      %vm3253 = vmand %vm3237, %vm3245
      %vm3254 = vmand %vm3238, %vm3246
      %vm3255 = vmand %vm3239, %vm3247
      %vm3256 = vmand %vm3240, %vm3248
      %vm3257 = vmand %vm3241, %vm3249
      %v3258 = vsel %vm3250, 1.0, 0.0
      %v3259 = vsel %vm3251, 1.0, 0.0
      %v3260 = vsel %vm3252, 1.0, 0.0
      %v3261 = vsel %vm3253, 1.0, 0.0
      %v3262 = vsel %vm3254, 1.0, 0.0
      %v3263 = vsel %vm3255, 1.0, 0.0
      %v3264 = vsel %vm3256, 1.0, 0.0
      %v3265 = vsel %vm3257, 1.0, 0.0
      %v3266 = vmul.f32 %v1603, %v3258
      %v3267 = vmul.f32 %v1602, %v3259
      %v3268 = vmul.f32 %v1601, %v3260
      %v3269 = vmul.f32 %v1600, %v3261
      %v3270 = vmul.f32 %v1599, %v3262
      %v3271 = vmul.f32 %v1598, %v3263
      %v3272 = vmul.f32 %v1605, %v3264
      %v3273 = vmul.f32 %v1604, %v3265
      %v3274 = vld [vmem:[%s866 + $0x1c] sm:$0x1]
      %v3275 = vlaneseq
      %v3276 = vshrl.u32 %v3275, 7
      %v3277 = vsub.s32 0, %v3276
      %v3278 = vrot.slane %v3274, %v3277
      %v3279 = vmul.f32 %v3266, %v3278
      %v3280 = vmul.f32 %v3267, %v3278
      %v3281 = vmul.f32 %v3268, %v3278
      %v3282 = vmul.f32 %v3269, %v3278
      %v3283 = vmul.f32 %v3270, %v3278
      %v3284 = vmul.f32 %v3271, %v3278
      %v3285 = vmul.f32 %v3272, %v3278
      %v3286 = vmul.f32 %v3273, %v3278
      %v3287 = vadd.f32 %v3218, %v3279
      %v3288 = vadd.f32 %v3219, %v3280
      %v3289 = vadd.f32 %v3220, %v3281
      %v3290 = vadd.f32 %v3221, %v3282
      %v3291 = vadd.f32 %v3222, %v3283
      %v3292 = vadd.f32 %v3223, %v3284
      %v3293 = vadd.f32 %v3224, %v3285
      %v3294 = vadd.f32 %v3225, %v3286
      %v3295 = vadd.s32 %v1224, 14
      %v3296 = vadd.s32 %v1225, 14
      %v3297 = vadd.s32 %v1226, 14
      %v3298 = vadd.s32 %v1227, 14
      %v3299 = vadd.s32 %v1228, 14
      %v3300 = vadd.s32 %v1229, 14
      %v3301 = vadd.s32 %v1230, 14
      %v3302 = vadd.s32 %v1231, 14
      %vm3303 = vcmp.ge.s32.totalorder %v3295, 0
      %vm3304 = vcmp.ge.s32.totalorder %v3296, 0
      %vm3305 = vcmp.ge.s32.totalorder %v3297, 0
      %vm3306 = vcmp.ge.s32.totalorder %v3298, 0
      %vm3307 = vcmp.ge.s32.totalorder %v3299, 0
      %vm3308 = vcmp.ge.s32.totalorder %v3300, 0
      %vm3309 = vcmp.ge.s32.totalorder %v3301, 0
      %vm3310 = vcmp.ge.s32.totalorder %v3302, 0
      %vm3311 = vcmp.lt.s32.totalorder %v3295, 64
      %vm3312 = vcmp.lt.s32.totalorder %v3296, 64
      %vm3313 = vcmp.lt.s32.totalorder %v3297, 64
      %vm3314 = vcmp.lt.s32.totalorder %v3298, 64
      %vm3315 = vcmp.lt.s32.totalorder %v3299, 64
      %vm3316 = vcmp.lt.s32.totalorder %v3300, 64
      %vm3317 = vcmp.lt.s32.totalorder %v3301, 64
      %vm3318 = vcmp.lt.s32.totalorder %v3302, 64
      %vm3319 = vmand %vm3303, %vm3311
      %vm3320 = vmand %vm3304, %vm3312
      %vm3321 = vmand %vm3305, %vm3313
      %vm3322 = vmand %vm3306, %vm3314
      %vm3323 = vmand %vm3307, %vm3315
      %vm3324 = vmand %vm3308, %vm3316
      %vm3325 = vmand %vm3309, %vm3317
      %vm3326 = vmand %vm3310, %vm3318
      %v3327 = vsel %vm3319, 1.0, 0.0
      %v3328 = vsel %vm3320, 1.0, 0.0
      %v3329 = vsel %vm3321, 1.0, 0.0
      %v3330 = vsel %vm3322, 1.0, 0.0
      %v3331 = vsel %vm3323, 1.0, 0.0
      %v3332 = vsel %vm3324, 1.0, 0.0
      %v3333 = vsel %vm3325, 1.0, 0.0
      %v3334 = vsel %vm3326, 1.0, 0.0
      %v3335 = vmul.f32 %v1689, %v3327
      %v3336 = vmul.f32 %v1688, %v3328
      %v3337 = vmul.f32 %v1687, %v3329
      %v3338 = vmul.f32 %v1686, %v3330
      %v3339 = vmul.f32 %v1685, %v3331
      %v3340 = vmul.f32 %v1684, %v3332
      %v3341 = vmul.f32 %v1691, %v3333
      %v3342 = vmul.f32 %v1690, %v3334
      %v3343 = vld [vmem:[%s866 + $0x1d] sm:$0x1]
      %v3344 = vlaneseq
      %v3345 = vshrl.u32 %v3344, 7
      %v3346 = vsub.s32 0, %v3345
      %v3347 = vrot.slane %v3343, %v3346
      %v3348 = vmul.f32 %v3335, %v3347
      %v3349 = vmul.f32 %v3336, %v3347
      %v3350 = vmul.f32 %v3337, %v3347
      %v3351 = vmul.f32 %v3338, %v3347
      %v3352 = vmul.f32 %v3339, %v3347
      %v3353 = vmul.f32 %v3340, %v3347
      %v3354 = vmul.f32 %v3341, %v3347
      %v3355 = vmul.f32 %v3342, %v3347
      %v3356 = vadd.f32 %v3287, %v3348
      %v3357 = vadd.f32 %v3288, %v3349
      %v3358 = vadd.f32 %v3289, %v3350
      %v3359 = vadd.f32 %v3290, %v3351
      %v3360 = vadd.f32 %v3291, %v3352
      %v3361 = vadd.f32 %v3292, %v3353
      %v3362 = vadd.f32 %v3293, %v3354
      %v3363 = vadd.f32 %v3294, %v3355
      %v3364 = vadd.s32 %v1224, 15
      %v3365 = vadd.s32 %v1225, 15
      %v3366 = vadd.s32 %v1226, 15
      %v3367 = vadd.s32 %v1227, 15
      %v3368 = vadd.s32 %v1228, 15
      %v3369 = vadd.s32 %v1229, 15
      %v3370 = vadd.s32 %v1230, 15
      %v3371 = vadd.s32 %v1231, 15
      %vm3372 = vcmp.ge.s32.totalorder %v3364, 0
      %vm3373 = vcmp.ge.s32.totalorder %v3365, 0
      %vm3374 = vcmp.ge.s32.totalorder %v3366, 0
      %vm3375 = vcmp.ge.s32.totalorder %v3367, 0
      %vm3376 = vcmp.ge.s32.totalorder %v3368, 0
      %vm3377 = vcmp.ge.s32.totalorder %v3369, 0
      %vm3378 = vcmp.ge.s32.totalorder %v3370, 0
      %vm3379 = vcmp.ge.s32.totalorder %v3371, 0
      %vm3380 = vcmp.lt.s32.totalorder %v3364, 64
      %vm3381 = vcmp.lt.s32.totalorder %v3365, 64
      %vm3382 = vcmp.lt.s32.totalorder %v3366, 64
      %vm3383 = vcmp.lt.s32.totalorder %v3367, 64
      %vm3384 = vcmp.lt.s32.totalorder %v3368, 64
      %vm3385 = vcmp.lt.s32.totalorder %v3369, 64
      %vm3386 = vcmp.lt.s32.totalorder %v3370, 64
      %vm3387 = vcmp.lt.s32.totalorder %v3371, 64
      %vm3388 = vmand %vm3372, %vm3380
      %vm3389 = vmand %vm3373, %vm3381
      %vm3390 = vmand %vm3374, %vm3382
      %vm3391 = vmand %vm3375, %vm3383
      %vm3392 = vmand %vm3376, %vm3384
      %vm3393 = vmand %vm3377, %vm3385
      %vm3394 = vmand %vm3378, %vm3386
      %vm3395 = vmand %vm3379, %vm3387
      %v3396 = vsel %vm3388, 1.0, 0.0
      %v3397 = vsel %vm3389, 1.0, 0.0
      %v3398 = vsel %vm3390, 1.0, 0.0
      %v3399 = vsel %vm3391, 1.0, 0.0
      %v3400 = vsel %vm3392, 1.0, 0.0
      %v3401 = vsel %vm3393, 1.0, 0.0
      %v3402 = vsel %vm3394, 1.0, 0.0
      %v3403 = vsel %vm3395, 1.0, 0.0
      %v3404 = vmul.f32 %v1775, %v3396
      %v3405 = vmul.f32 %v1774, %v3397
      %v3406 = vmul.f32 %v1773, %v3398
      %v3407 = vmul.f32 %v1772, %v3399
      %v3408 = vmul.f32 %v1771, %v3400
      %v3409 = vmul.f32 %v1770, %v3401
      %v3410 = vmul.f32 %v1777, %v3402
      %v3411 = vmul.f32 %v1776, %v3403
      %v3412 = vld [vmem:[%s866 + $0x1e] sm:$0x1]
      %v3413 = vlaneseq
      %v3414 = vshrl.u32 %v3413, 7
      %v3415 = vsub.s32 0, %v3414
      %v3416 = vrot.slane %v3412, %v3415
      %v3417 = vmul.f32 %v3404, %v3416
      %v3418 = vmul.f32 %v3405, %v3416
      %v3419 = vmul.f32 %v3406, %v3416
      %v3420 = vmul.f32 %v3407, %v3416
      %v3421 = vmul.f32 %v3408, %v3416
      %v3422 = vmul.f32 %v3409, %v3416
      %v3423 = vmul.f32 %v3410, %v3416
      %v3424 = vmul.f32 %v3411, %v3416
      %v3425 = vadd.f32 %v3356, %v3417
      %v3426 = vadd.f32 %v3357, %v3418
      %v3427 = vadd.f32 %v3358, %v3419
      %v3428 = vadd.f32 %v3359, %v3420
      %v3429 = vadd.f32 %v3360, %v3421
      %v3430 = vadd.f32 %v3361, %v3422
      %v3431 = vadd.f32 %v3362, %v3423
      %v3432 = vadd.f32 %v3363, %v3424
      %v3433 = vld [vmem:[%s869] sm:$0x1]
      %v3435 = vlaneseq
      %v3436 = vshrl.u32 %v3435, 7
      %v3437 = vsub.s32 0, %v3436
      %v3438 = vrot.slane %v3433, %v3437
      %v3440 = vadd.f32 %v3425, %v3438
      %v3441 = vadd.f32 %v3426, %v3438
      %v3442 = vadd.f32 %v3427, %v3438
      %v3443 = vadd.f32 %v3428, %v3438
      %v3444 = vadd.f32 %v3429, %v3438
      %v3445 = vadd.f32 %v3430, %v3438
      %v3446 = vadd.f32 %v3431, %v3438
      %v3447 = vadd.f32 %v3432, %v3438
      %v3448 = vpack.c.bf16 %v3441, %v3440
      %v3449 = vpack.c.bf16 %v3443, %v3442
      %v3450 = vpack.c.bf16 %v3445, %v3444
      %v3451 = vpack.c.bf16 %v3447, %v3446
      %v3452 = vld [vmem:[%s874] sm:$0xf]
      %v3453 = vld [vmem:[%s874 + $0x4] sm:$0xf]
      %v3454 = vld [vmem:[%s874 + $0x8] sm:$0xf]
      %v3455 = vld [vmem:[%s874 + $0xc] sm:$0xf]
      %v3456 = vld [vmem:[%s874 + $0x10] sm:$0xf]
      %v3457 = vld [vmem:[%s874 + $0x14] sm:$0xf]
      %v3458 = vld [vmem:[%s874 + $0x18] sm:$0xf]
      %v3459 = vld [vmem:[%s874 + $0x1c] sm:$0xf]
      %v3460 = vld [vmem:[%s874 + $0x20] sm:$0xf]
      %v3461 = vld [vmem:[%s874 + $0x24] sm:$0xf]
      %v3462 = vld [vmem:[%s874 + $0x28] sm:$0xf]
      %v3463 = vld [vmem:[%s874 + $0x2c] sm:$0xf]
      %v3464 = vld [vmem:[%s874 + $0x30] sm:$0xf]
      %v3465 = vld [vmem:[%s874 + $0x34] sm:$0xf]
      %v3466 = vld [vmem:[%s874 + $0x38] sm:$0xf]
      %v3467 = vld [vmem:[%s874 + $0x3c] sm:$0xf]
      %v3468 = vld [vmem:[%s877] sm:$0x1]
      %v3470 = vlaneseq
      %v3471 = vshrl.u32 %v3470, 7
      %v3472 = vsub.s32 0, %v3471
      %v3473 = vrot.slane %v3468, %v3472
      %v3491 = vunpack.c.l.b16 %v3452
      %v3492 = vunpack.c.l.b16 %v3453
      %v3493 = vunpack.c.l.b16 %v3454
      %v3494 = vunpack.c.l.b16 %v3455
      %v3495 = vunpack.c.l.b16 %v3456
      %v3496 = vunpack.c.l.b16 %v3457
      %v3497 = vunpack.c.l.b16 %v3458
      %v3498 = vunpack.c.l.b16 %v3459
      %v3499 = vunpack.c.l.b16 %v3460
      %v3500 = vunpack.c.l.b16 %v3461
      %v3501 = vunpack.c.l.b16 %v3462
      %v3502 = vunpack.c.l.b16 %v3463
      %v3503 = vunpack.c.l.b16 %v3464
      %v3504 = vunpack.c.l.b16 %v3465
      %v3505 = vunpack.c.l.b16 %v3466
      %v3506 = vunpack.c.l.b16 %v3467
      %v3507 = vpack.c.b16 %v3492, %v3491
      %v3508 = vpack.c.b16 %v3494, %v3493
      %v3509 = vpack.c.b16 %v3496, %v3495
      %v3510 = vpack.c.b16 %v3498, %v3497
      %v3511 = vpack.c.b16 %v3500, %v3499
      %v3512 = vpack.c.b16 %v3502, %v3501
      %v3513 = vpack.c.b16 %v3504, %v3503
      %v3514 = vpack.c.b16 %v3506, %v3505
      %3523 = vmatprep.subr.bf16.mxu0 0
      %3524 = vmatpush1.bf16.msra.mxu0 %v3507
      %3525 = vmatprep.subr.bf16.mxu0 0
      %3526 = vmatpush1.bf16.msra.mxu0 %v3508
      %3527 = vmatprep.subr.bf16.mxu0 0
      %3528 = vmatpush1.bf16.msra.mxu0 %v3509
      %3529 = vmatprep.subr.bf16.mxu0 0
      %3530 = vmatpush1.bf16.msra.mxu0 %v3510
      %3531 = vmatprep.subr.bf16.mxu0 0
      %3532 = vmatpush1.bf16.msra.mxu0 %v3511
      %3533 = vmatprep.subr.bf16.mxu0 0
      %3534 = vmatpush1.bf16.msra.mxu0 %v3512
      %3535 = vmatprep.subr.bf16.mxu0 0
      %3536 = vmatpush1.bf16.msra.mxu0 %v3513
      %3537 = vmatprep.subr.bf16.mxu0 0
      %3538 = vmatpush1.bf16.msra.mxu0 %v3514
      %3539 = vmatprep.subr.bf16.mxu0 0
      %3540 = vmatpush1.bf16.msra.mxu0 0
      %3541 = vmatprep.subr.bf16.mxu0 0
      %3542 = vmatpush1.bf16.msra.mxu0 0
      %3543 = vmatprep.subr.bf16.mxu0 0
      %3544 = vmatpush1.bf16.msra.mxu0 0
      %3545 = vmatprep.subr.bf16.mxu0 0
      %3546 = vmatpush1.bf16.msra.mxu0 0
      %3547 = vmatprep.subr.bf16.mxu0 0
      %3548 = vmatpush1.bf16.msra.mxu0 0
      %3549 = vmatprep.subr.bf16.mxu0 0
      %3550 = vmatpush1.bf16.msra.mxu0 0
      %3551 = vmatprep.subr.bf16.mxu0 0
      %3552 = vmatpush1.bf16.msra.mxu0 0
      %3553 = vmatprep.subr.bf16.mxu0 0
      %3554 = vmatpush1.bf16.msra.mxu0 0
      %3555 = vmatprep.mubr.bf16.mxu0 0
      %3556 = vmatmul.mubr.bf16.gmra.mrb[0].mxu0 %v3448
      %v3557 = vpop.f32.mrb[0].mxu0
      %v3558 = vadd.f32 %v3473, %v3557
      %v3559 = vpop.f32.mrb[0].mxu0
      %v3560 = vpop.f32.mrb[0].mxu0
      %v3561 = vadd.f32 %v3473, %v3560
      %v3562 = vpop.f32.mrb[0].mxu0
      %3563 = vmatprep.mubr.bf16.mxu0 0
      %3564 = vmatmul.mubr.bf16.gmra.mrb[0].mxu0 %v3449
      %v3565 = vpop.f32.mrb[0].mxu0
      %v3566 = vadd.f32 %v3473, %v3565
      %v3567 = vpop.f32.mrb[0].mxu0
      %v3568 = vpop.f32.mrb[0].mxu0
      %v3569 = vadd.f32 %v3473, %v3568
      %v3570 = vpop.f32.mrb[0].mxu0
      %3571 = vmatprep.mubr.bf16.mxu0 0
      %3572 = vmatmul.mubr.bf16.gmra.mrb[0].mxu0 %v3450
      %v3573 = vpop.f32.mrb[0].mxu0
      %v3574 = vadd.f32 %v3473, %v3573
      %v3575 = vpop.f32.mrb[0].mxu0
      %v3576 = vpop.f32.mrb[0].mxu0
      %v3577 = vadd.f32 %v3473, %v3576
      %v3578 = vpop.f32.mrb[0].mxu0
      %3579 = vmatprep.mubr.bf16.mxu0 0
      %3580 = vmatmul.mubr.bf16.gmra.mrb[0].mxu0 %v3451
      %v3581 = vpop.f32.mrb[0].mxu0
      %v3582 = vadd.f32 %v3473, %v3581
      %v3583 = vpop.f32.mrb[0].mxu0
      %v3584 = vpop.f32.mrb[0].mxu0
      %v3585 = vadd.f32 %v3473, %v3584
      %v3586 = vpop.f32.mrb[0].mxu0
      %3587 = vdwg.mxu0
      %v3588 = vld [vmem:[%s882] sm:$0xf]
      %v3589 = vld [vmem:[%s882 + $0x4] sm:$0xf]
      %v3590 = vld [vmem:[%s882 + $0x8] sm:$0xf]
      %v3591 = vld [vmem:[%s882 + $0xc] sm:$0xf]
      %v3592 = vld [vmem:[%s882 + $0x10] sm:$0xf]
      %v3593 = vld [vmem:[%s882 + $0x14] sm:$0xf]
      %v3594 = vld [vmem:[%s882 + $0x18] sm:$0xf]
      %v3595 = vld [vmem:[%s882 + $0x1c] sm:$0xf]
      %v3596 = vld [vmem:[%s882 + $0x20] sm:$0xf]
      %v3597 = vld [vmem:[%s882 + $0x24] sm:$0xf]
      %v3598 = vld [vmem:[%s882 + $0x28] sm:$0xf]
      %v3599 = vld [vmem:[%s882 + $0x2c] sm:$0xf]
      %v3600 = vld [vmem:[%s882 + $0x30] sm:$0xf]
      %v3601 = vld [vmem:[%s882 + $0x34] sm:$0xf]
      %v3602 = vld [vmem:[%s882 + $0x38] sm:$0xf]
      %v3603 = vld [vmem:[%s882 + $0x3c] sm:$0xf]
      %v3604 = vld [vmem:[%s885] sm:$0x1]
      %v3606 = vlaneseq
      %v3607 = vshrl.u32 %v3606, 7
      %v3608 = vsub.s32 0, %v3607
      %v3609 = vrot.slane %v3604, %v3608
      %v3627 = vunpack.c.l.b16 %v3588
      %v3628 = vunpack.c.l.b16 %v3589
      %v3629 = vunpack.c.l.b16 %v3590
      %v3630 = vunpack.c.l.b16 %v3591
      %v3631 = vunpack.c.l.b16 %v3592
      %v3632 = vunpack.c.l.b16 %v3593
      %v3633 = vunpack.c.l.b16 %v3594
      %v3634 = vunpack.c.l.b16 %v3595
      %v3635 = vunpack.c.l.b16 %v3596
      %v3636 = vunpack.c.l.b16 %v3597
      %v3637 = vunpack.c.l.b16 %v3598
      %v3638 = vunpack.c.l.b16 %v3599
      %v3639 = vunpack.c.l.b16 %v3600
      %v3640 = vunpack.c.l.b16 %v3601
      %v3641 = vunpack.c.l.b16 %v3602
      %v3642 = vunpack.c.l.b16 %v3603
      %v3643 = vpack.c.b16 %v3628, %v3627
      %v3644 = vpack.c.b16 %v3630, %v3629
      %v3645 = vpack.c.b16 %v3632, %v3631
      %v3646 = vpack.c.b16 %v3634, %v3633
      %v3647 = vpack.c.b16 %v3636, %v3635
      %v3648 = vpack.c.b16 %v3638, %v3637
      %v3649 = vpack.c.b16 %v3640, %v3639
      %v3650 = vpack.c.b16 %v3642, %v3641
      %3659 = vmatprep.subr.bf16.mxu0 0
      %3660 = vmatpush1.bf16.msra.mxu0 %v3643
      %3661 = vmatprep.subr.bf16.mxu0 0
      %3662 = vmatpush1.bf16.msra.mxu0 %v3644
      %3663 = vmatprep.subr.bf16.mxu0 0
      %3664 = vmatpush1.bf16.msra.mxu0 %v3645
      %3665 = vmatprep.subr.bf16.mxu0 0
      %3666 = vmatpush1.bf16.msra.mxu0 %v3646
      %3667 = vmatprep.subr.bf16.mxu0 0
      %3668 = vmatpush1.bf16.msra.mxu0 %v3647
      %3669 = vmatprep.subr.bf16.mxu0 0
      %3670 = vmatpush1.bf16.msra.mxu0 %v3648
      %3671 = vmatprep.subr.bf16.mxu0 0
      %3672 = vmatpush1.bf16.msra.mxu0 %v3649
      %3673 = vmatprep.subr.bf16.mxu0 0
      %3674 = vmatpush1.bf16.msra.mxu0 %v3650
      %3675 = vmatprep.subr.bf16.mxu0 0
      %3676 = vmatpush1.bf16.msra.mxu0 0
      %3677 = vmatprep.subr.bf16.mxu0 0
      %3678 = vmatpush1.bf16.msra.mxu0 0
      %3679 = vmatprep.subr.bf16.mxu0 0
      %3680 = vmatpush1.bf16.msra.mxu0 0
      %3681 = vmatprep.subr.bf16.mxu0 0
      %3682 = vmatpush1.bf16.msra.mxu0 0
      %3683 = vmatprep.subr.bf16.mxu0 0
      %3684 = vmatpush1.bf16.msra.mxu0 0
      %3685 = vmatprep.subr.bf16.mxu0 0
      %3686 = vmatpush1.bf16.msra.mxu0 0
      %3687 = vmatprep.subr.bf16.mxu0 0
      %3688 = vmatpush1.bf16.msra.mxu0 0
      %3689 = vmatprep.subr.bf16.mxu0 0
      %3690 = vmatpush1.bf16.msra.mxu0 0
      %3691 = vmatprep.mubr.bf16.mxu0 0
      %3692 = vmatmul.mubr.bf16.gmra.mrb[0].mxu0 %v3448
      %v3693 = vpop.f32.mrb[0].mxu0
      %v3694 = vadd.f32 %v3609, %v3693
      %v3695 = vpop.f32.mrb[0].mxu0
      %v3696 = vpop.f32.mrb[0].mxu0
      %v3697 = vadd.f32 %v3609, %v3696
      %v3698 = vpop.f32.mrb[0].mxu0
      %3699 = vmatprep.mubr.bf16.mxu0 0
      %3700 = vmatmul.mubr.bf16.gmra.mrb[0].mxu0 %v3449
      %v3701 = vpop.f32.mrb[0].mxu0
      %v3702 = vadd.f32 %v3609, %v3701
      %v3703 = vpop.f32.mrb[0].mxu0
      %v3704 = vpop.f32.mrb[0].mxu0
      %v3705 = vadd.f32 %v3609, %v3704
      %v3706 = vpop.f32.mrb[0].mxu0
      %3707 = vmatprep.mubr.bf16.mxu0 0
      %3708 = vmatmul.mubr.bf16.gmra.mrb[0].mxu0 %v3450
      %v3709 = vpop.f32.mrb[0].mxu0
      %v3710 = vadd.f32 %v3609, %v3709
      %v3711 = vpop.f32.mrb[0].mxu0
      %v3712 = vpop.f32.mrb[0].mxu0
      %v3713 = vadd.f32 %v3609, %v3712
      %v3714 = vpop.f32.mrb[0].mxu0
      %3715 = vmatprep.mubr.bf16.mxu0 0
      %3716 = vmatmul.mubr.bf16.gmra.mrb[0].mxu0 %v3451
      %v3717 = vpop.f32.mrb[0].mxu0
      %v3718 = vadd.f32 %v3609, %v3717
      %v3719 = vpop.f32.mrb[0].mxu0
      %v3720 = vpop.f32.mrb[0].mxu0
      %v3721 = vadd.f32 %v3609, %v3720
      %v3722 = vpop.f32.mrb[0].mxu0
      %3723 = vdwg.mxu0
      %v3724 = vxor.u32 %v3694, 2147483648
      %v3725 = vxor.u32 %v3697, 2147483648
      %v3726 = vxor.u32 %v3702, 2147483648
      %v3727 = vxor.u32 %v3705, 2147483648
      %v3728 = vxor.u32 %v3710, 2147483648
      %v3729 = vxor.u32 %v3713, 2147483648
      %v3730 = vxor.u32 %v3718, 2147483648
      %v3731 = vxor.u32 %v3721, 2147483648
      %v3732 = vmul.f32 %v3724, 1.442695
      %v3733 = vpow.pop %v3732
      %v3734 = vmul.f32 %v3725, 1.442695
      %v3735 = vpow.pop %v3734
      %v3736 = vmul.f32 %v3726, 1.442695
      %v3737 = vpow.pop %v3736
      %v3738 = vmul.f32 %v3727, 1.442695
      %v3739 = vpow.pop %v3738
      %v3740 = vmul.f32 %v3728, 1.442695
      %v3741 = vpow.pop %v3740
      %v3742 = vmul.f32 %v3729, 1.442695
      %v3743 = vpow.pop %v3742
      %v3744 = vmul.f32 %v3730, 1.442695
      %v3745 = vpow.pop %v3744
      %v3746 = vmul.f32 %v3731, 1.442695
      %v3747 = vpow.pop %v3746
      %v3748 = vadd.f32 %v3733, 1.0
      %v3749 = vadd.f32 %v3735, 1.0
      %v3750 = vadd.f32 %v3737, 1.0
      %v3751 = vadd.f32 %v3739, 1.0
      %v3752 = vadd.f32 %v3741, 1.0
      %v3753 = vadd.f32 %v3743, 1.0
      %v3754 = vadd.f32 %v3745, 1.0
      %v3755 = vadd.f32 %v3747, 1.0
      %v3756 = vrcp.pop %v3748
      %v3757 = vmul.f32 1.0, %v3756
      %v3758 = vrcp.pop %v3749
      %v3759 = vmul.f32 1.0, %v3758
      %v3760 = vrcp.pop %v3750
      %v3761 = vmul.f32 1.0, %v3760
      %v3762 = vrcp.pop %v3751
      %v3763 = vmul.f32 1.0, %v3762
      %v3764 = vrcp.pop %v3752
      %v3765 = vmul.f32 1.0, %v3764
      %v3766 = vrcp.pop %v3753
      %v3767 = vmul.f32 1.0, %v3766
      %v3768 = vrcp.pop %v3754
      %v3769 = vmul.f32 1.0, %v3768
      %v3770 = vrcp.pop %v3755
      %v3771 = vmul.f32 1.0, %v3770
      %v3772 = vmul.f32 %v3694, %v3757
      %v3773 = vmul.f32 %v3697, %v3759
      %v3774 = vmul.f32 %v3702, %v3761
      %v3775 = vmul.f32 %v3705, %v3763
      %v3776 = vmul.f32 %v3710, %v3765
      %v3777 = vmul.f32 %v3713, %v3767
      %v3778 = vmul.f32 %v3718, %v3769
      %v3779 = vmul.f32 %v3721, %v3771
      %v3780 = vmul.f32 %v3558, %v3772
      %v3781 = vmul.f32 %v3561, %v3773
      %v3782 = vmul.f32 %v3566, %v3774
      %v3783 = vmul.f32 %v3569, %v3775
      %v3784 = vmul.f32 %v3574, %v3776
      %v3785 = vmul.f32 %v3577, %v3777
      %v3786 = vmul.f32 %v3582, %v3778
      %v3787 = vmul.f32 %v3585, %v3779
      %v3788 = vpack.c.bf16 %v3781, %v3780
      %v3789 = vpack.c.bf16 %v3783, %v3782
      %v3790 = vpack.c.bf16 %v3785, %v3784
      %v3791 = vpack.c.bf16 %v3787, %v3786
      %v3792 = vld [vmem:[%s890] sm:$0xf]
      %v3793 = vld [vmem:[%s890 + $0x4] sm:$0xf]
      %v3794 = vld [vmem:[%s890 + $0x8] sm:$0xf]
      %v3795 = vld [vmem:[%s890 + $0xc] sm:$0xf]
      %v3796 = vld [vmem:[%s890 + $0x10] sm:$0xf]
      %v3797 = vld [vmem:[%s890 + $0x14] sm:$0xf]
      %v3798 = vld [vmem:[%s890 + $0x18] sm:$0xf]
      %v3799 = vld [vmem:[%s890 + $0x1c] sm:$0xf]
      %v3800 = vld [vmem:[%s890 + $0x20] sm:$0xf]
      %v3801 = vld [vmem:[%s890 + $0x24] sm:$0xf]
      %v3802 = vld [vmem:[%s890 + $0x28] sm:$0xf]
      %v3803 = vld [vmem:[%s890 + $0x2c] sm:$0xf]
      %v3804 = vld [vmem:[%s890 + $0x30] sm:$0xf]
      %v3805 = vld [vmem:[%s890 + $0x34] sm:$0xf]
      %v3806 = vld [vmem:[%s890 + $0x38] sm:$0xf]
      %v3807 = vld [vmem:[%s890 + $0x3c] sm:$0xf]
      %v3808 = vld [vmem:[%s893] sm:$0x1]
      %v3810 = vlaneseq
      %v3811 = vshrl.u32 %v3810, 7
      %v3812 = vsub.s32 0, %v3811
      %v3813 = vrot.slane %v3808, %v3812
      %v3831 = vunpack.c.l.b16 %v3792
      %v3832 = vunpack.c.l.b16 %v3793
      %v3833 = vunpack.c.l.b16 %v3794
      %v3834 = vunpack.c.l.b16 %v3795
      %v3835 = vunpack.c.l.b16 %v3796
      %v3836 = vunpack.c.l.b16 %v3797
      %v3837 = vunpack.c.l.b16 %v3798
      %v3838 = vunpack.c.l.b16 %v3799
      %v3839 = vunpack.c.l.b16 %v3800
      %v3840 = vunpack.c.l.b16 %v3801
      %v3841 = vunpack.c.l.b16 %v3802
      %v3842 = vunpack.c.l.b16 %v3803
      %v3843 = vunpack.c.l.b16 %v3804
      %v3844 = vunpack.c.l.b16 %v3805
      %v3845 = vunpack.c.l.b16 %v3806
      %v3846 = vunpack.c.l.b16 %v3807
      %v3847 = vpack.c.b16 %v3832, %v3831
      %v3848 = vpack.c.b16 %v3834, %v3833
      %v3849 = vpack.c.b16 %v3836, %v3835
      %v3850 = vpack.c.b16 %v3838, %v3837
      %v3851 = vpack.c.b16 %v3840, %v3839
      %v3852 = vpack.c.b16 %v3842, %v3841
      %v3853 = vpack.c.b16 %v3844, %v3843
      %v3854 = vpack.c.b16 %v3846, %v3845
      %3863 = vmatprep.subr.bf16.mxu0 0
      %3864 = vmatpush1.bf16.msra.mxu0 %v3847
      %3865 = vmatprep.subr.bf16.mxu0 0
      %3866 = vmatpush1.bf16.msra.mxu0 %v3848
      %3867 = vmatprep.subr.bf16.mxu0 0
      %3868 = vmatpush1.bf16.msra.mxu0 %v3849
      %3869 = vmatprep.subr.bf16.mxu0 0
      %3870 = vmatpush1.bf16.msra.mxu0 %v3850
      %3871 = vmatprep.subr.bf16.mxu0 0
      %3872 = vmatpush1.bf16.msra.mxu0 %v3851
      %3873 = vmatprep.subr.bf16.mxu0 0
      %3874 = vmatpush1.bf16.msra.mxu0 %v3852
      %3875 = vmatprep.subr.bf16.mxu0 0
      %3876 = vmatpush1.bf16.msra.mxu0 %v3853
      %3877 = vmatprep.subr.bf16.mxu0 0
      %3878 = vmatpush1.bf16.msra.mxu0 %v3854
      %3879 = vmatprep.subr.bf16.mxu0 0
      %3880 = vmatpush1.bf16.msra.mxu0 0
      %3881 = vmatprep.subr.bf16.mxu0 0
      %3882 = vmatpush1.bf16.msra.mxu0 0
      %3883 = vmatprep.subr.bf16.mxu0 0
      %3884 = vmatpush1.bf16.msra.mxu0 0
      %3885 = vmatprep.subr.bf16.mxu0 0
      %3886 = vmatpush1.bf16.msra.mxu0 0
      %3887 = vmatprep.subr.bf16.mxu0 0
      %3888 = vmatpush1.bf16.msra.mxu0 0
      %3889 = vmatprep.subr.bf16.mxu0 0
      %3890 = vmatpush1.bf16.msra.mxu0 0
      %3891 = vmatprep.subr.bf16.mxu0 0
      %3892 = vmatpush1.bf16.msra.mxu0 0
      %3893 = vmatprep.subr.bf16.mxu0 0
      %3894 = vmatpush1.bf16.msra.mxu0 0
      %3895 = vmatprep.mubr.bf16.mxu0 0
      %3896 = vmatmul.mubr.bf16.gmra.mrb[0].mxu0 %v3788
      %v3897 = vpop.f32.mrb[0].mxu0
      %v3898 = vadd.f32 %v3813, %v3897
      %v3899 = vpop.f32.mrb[0].mxu0
      %v3900 = vpop.f32.mrb[0].mxu0
      %v3901 = vadd.f32 %v3813, %v3900
      %v3902 = vpop.f32.mrb[0].mxu0
      %3903 = vmatprep.mubr.bf16.mxu0 0
      %3904 = vmatmul.mubr.bf16.gmra.mrb[0].mxu0 %v3789
      %v3905 = vpop.f32.mrb[0].mxu0
      %v3906 = vadd.f32 %v3813, %v3905
      %v3907 = vpop.f32.mrb[0].mxu0
      %v3908 = vpop.f32.mrb[0].mxu0
      %v3909 = vadd.f32 %v3813, %v3908
      %v3910 = vpop.f32.mrb[0].mxu0
      %3911 = vmatprep.mubr.bf16.mxu0 0
      %3912 = vmatmul.mubr.bf16.gmra.mrb[0].mxu0 %v3790
      %v3913 = vpop.f32.mrb[0].mxu0
      %v3914 = vadd.f32 %v3813, %v3913
      %v3915 = vpop.f32.mrb[0].mxu0
      %v3916 = vpop.f32.mrb[0].mxu0
      %v3917 = vadd.f32 %v3813, %v3916
      %v3918 = vpop.f32.mrb[0].mxu0
      %3919 = vmatprep.mubr.bf16.mxu0 0
      %3920 = vmatmul.mubr.bf16.gmra.mrb[0].mxu0 %v3791
      %v3921 = vpop.f32.mrb[0].mxu0
      %v3922 = vadd.f32 %v3813, %v3921
      %v3923 = vpop.f32.mrb[0].mxu0
      %v3924 = vpop.f32.mrb[0].mxu0
      %v3925 = vadd.f32 %v3813, %v3924
      %v3926 = vpop.f32.mrb[0].mxu0
      %3927 = vdwg.mxu0
      %v3928 = vld [vmem:[%s898] sm:$0xf]
      %v3929 = vld [vmem:[%s898 + $0x4] sm:$0xf]
      %v3930 = vld [vmem:[%s898 + $0x8] sm:$0xf]
      %v3931 = vld [vmem:[%s898 + $0xc] sm:$0xf]
      %v3932 = vld [vmem:[%s898 + $0x10] sm:$0xf]
      %v3933 = vld [vmem:[%s898 + $0x14] sm:$0xf]
      %v3934 = vld [vmem:[%s898 + $0x18] sm:$0xf]
      %v3935 = vld [vmem:[%s898 + $0x1c] sm:$0xf]
      %v3936 = vld [vmem:[%s898 + $0x20] sm:$0xf]
      %v3937 = vld [vmem:[%s898 + $0x24] sm:$0xf]
      %v3938 = vld [vmem:[%s898 + $0x28] sm:$0xf]
      %v3939 = vld [vmem:[%s898 + $0x2c] sm:$0xf]
      %v3940 = vld [vmem:[%s898 + $0x30] sm:$0xf]
      %v3941 = vld [vmem:[%s898 + $0x34] sm:$0xf]
      %v3942 = vld [vmem:[%s898 + $0x38] sm:$0xf]
      %v3943 = vld [vmem:[%s898 + $0x3c] sm:$0xf]
      %v3944 = vld [vmem:[%s901] sm:$0x1]
      %v3946 = vlaneseq
      %v3947 = vshrl.u32 %v3946, 7
      %v3948 = vsub.s32 0, %v3947
      %v3949 = vrot.slane %v3944, %v3948
      %v3967 = vunpack.c.l.b16 %v3928
      %v3968 = vunpack.c.l.b16 %v3929
      %v3969 = vunpack.c.l.b16 %v3930
      %v3970 = vunpack.c.l.b16 %v3931
      %v3971 = vunpack.c.l.b16 %v3932
      %v3972 = vunpack.c.l.b16 %v3933
      %v3973 = vunpack.c.l.b16 %v3934
      %v3974 = vunpack.c.l.b16 %v3935
      %v3975 = vunpack.c.l.b16 %v3936
      %v3976 = vunpack.c.l.b16 %v3937
      %v3977 = vunpack.c.l.b16 %v3938
      %v3978 = vunpack.c.l.b16 %v3939
      %v3979 = vunpack.c.l.b16 %v3940
      %v3980 = vunpack.c.l.b16 %v3941
      %v3981 = vunpack.c.l.b16 %v3942
      %v3982 = vunpack.c.l.b16 %v3943
      %v3983 = vpack.c.b16 %v3968, %v3967
      %v3984 = vpack.c.b16 %v3970, %v3969
      %v3985 = vpack.c.b16 %v3972, %v3971
      %v3986 = vpack.c.b16 %v3974, %v3973
      %v3987 = vpack.c.b16 %v3976, %v3975
      %v3988 = vpack.c.b16 %v3978, %v3977
      %v3989 = vpack.c.b16 %v3980, %v3979
      %v3990 = vpack.c.b16 %v3982, %v3981
      %3999 = vmatprep.subr.bf16.mxu0 0
      %4000 = vmatpush1.bf16.msra.mxu0 %v3983
      %4001 = vmatprep.subr.bf16.mxu0 0
      %4002 = vmatpush1.bf16.msra.mxu0 %v3984
      %4003 = vmatprep.subr.bf16.mxu0 0
      %4004 = vmatpush1.bf16.msra.mxu0 %v3985
      %4005 = vmatprep.subr.bf16.mxu0 0
      %4006 = vmatpush1.bf16.msra.mxu0 %v3986
      %4007 = vmatprep.subr.bf16.mxu0 0
      %4008 = vmatpush1.bf16.msra.mxu0 %v3987
      %4009 = vmatprep.subr.bf16.mxu0 0
      %4010 = vmatpush1.bf16.msra.mxu0 %v3988
      %4011 = vmatprep.subr.bf16.mxu0 0
      %4012 = vmatpush1.bf16.msra.mxu0 %v3989
      %4013 = vmatprep.subr.bf16.mxu0 0
      %4014 = vmatpush1.bf16.msra.mxu0 %v3990
      %4015 = vmatprep.subr.bf16.mxu0 0
      %4016 = vmatpush1.bf16.msra.mxu0 0
      %4017 = vmatprep.subr.bf16.mxu0 0
      %4018 = vmatpush1.bf16.msra.mxu0 0
      %4019 = vmatprep.subr.bf16.mxu0 0
      %4020 = vmatpush1.bf16.msra.mxu0 0
      %4021 = vmatprep.subr.bf16.mxu0 0
      %4022 = vmatpush1.bf16.msra.mxu0 0
      %4023 = vmatprep.subr.bf16.mxu0 0
      %4024 = vmatpush1.bf16.msra.mxu0 0
      %4025 = vmatprep.subr.bf16.mxu0 0
      %4026 = vmatpush1.bf16.msra.mxu0 0
      %4027 = vmatprep.subr.bf16.mxu0 0
      %4028 = vmatpush1.bf16.msra.mxu0 0
      %4029 = vmatprep.subr.bf16.mxu0 0
      %4030 = vmatpush1.bf16.msra.mxu0 0
      %4031 = vmatprep.mubr.bf16.mxu0 0
      %4032 = vmatmul.mubr.bf16.gmra.mrb[0].mxu0 %v3788
      %v4033 = vpop.f32.mrb[0].mxu0
      %v4034 = vadd.f32 %v3949, %v4033
      %v4035 = vpop.f32.mrb[0].mxu0
      %v4036 = vpop.f32.mrb[0].mxu0
      %v4037 = vadd.f32 %v3949, %v4036
      %v4038 = vpop.f32.mrb[0].mxu0
      %4039 = vmatprep.mubr.bf16.mxu0 0
      %4040 = vmatmul.mubr.bf16.gmra.mrb[0].mxu0 %v3789
      %v4041 = vpop.f32.mrb[0].mxu0
      %v4042 = vadd.f32 %v3949, %v4041
      %v4043 = vpop.f32.mrb[0].mxu0
      %v4044 = vpop.f32.mrb[0].mxu0
      %v4045 = vadd.f32 %v3949, %v4044
      %v4046 = vpop.f32.mrb[0].mxu0
      %4047 = vmatprep.mubr.bf16.mxu0 0
      %4048 = vmatmul.mubr.bf16.gmra.mrb[0].mxu0 %v3790
      %v4049 = vpop.f32.mrb[0].mxu0
      %v4050 = vadd.f32 %v3949, %v4049
      %v4051 = vpop.f32.mrb[0].mxu0
      %v4052 = vpop.f32.mrb[0].mxu0
      %v4053 = vadd.f32 %v3949, %v4052
      %v4054 = vpop.f32.mrb[0].mxu0
      %4055 = vmatprep.mubr.bf16.mxu0 0
      %4056 = vmatmul.mubr.bf16.gmra.mrb[0].mxu0 %v3791
      %v4057 = vpop.f32.mrb[0].mxu0
      %v4058 = vadd.f32 %v3949, %v4057
      %v4059 = vpop.f32.mrb[0].mxu0
      %v4060 = vpop.f32.mrb[0].mxu0
      %v4061 = vadd.f32 %v3949, %v4060
      %v4062 = vpop.f32.mrb[0].mxu0
      %4063 = vdwg.mxu0
      %v4064 = vxor.u32 %v4034, 2147483648
      %v4065 = vxor.u32 %v4037, 2147483648
      %v4066 = vxor.u32 %v4042, 2147483648
      %v4067 = vxor.u32 %v4045, 2147483648
      %v4068 = vxor.u32 %v4050, 2147483648
      %v4069 = vxor.u32 %v4053, 2147483648
      %v4070 = vxor.u32 %v4058, 2147483648
      %v4071 = vxor.u32 %v4061, 2147483648
      %v4072 = vmul.f32 %v4064, 1.442695
      %v4073 = vpow.pop %v4072
      %v4074 = vmul.f32 %v4065, 1.442695
      %v4075 = vpow.pop %v4074
      %v4076 = vmul.f32 %v4066, 1.442695
      %v4077 = vpow.pop %v4076
      %v4078 = vmul.f32 %v4067, 1.442695
      %v4079 = vpow.pop %v4078
      %v4080 = vmul.f32 %v4068, 1.442695
      %v4081 = vpow.pop %v4080
      %v4082 = vmul.f32 %v4069, 1.442695
      %v4083 = vpow.pop %v4082
      %v4084 = vmul.f32 %v4070, 1.442695
      %v4085 = vpow.pop %v4084
      %v4086 = vmul.f32 %v4071, 1.442695
      %v4087 = vpow.pop %v4086
      %v4088 = vadd.f32 %v4073, 1.0
      %v4089 = vadd.f32 %v4075, 1.0
      %v4090 = vadd.f32 %v4077, 1.0
      %v4091 = vadd.f32 %v4079, 1.0
      %v4092 = vadd.f32 %v4081, 1.0
      %v4093 = vadd.f32 %v4083, 1.0
      %v4094 = vadd.f32 %v4085, 1.0
      %v4095 = vadd.f32 %v4087, 1.0
      %v4096 = vrcp.pop %v4088
      %v4097 = vmul.f32 1.0, %v4096
      %v4098 = vrcp.pop %v4089
      %v4099 = vmul.f32 1.0, %v4098
      %v4100 = vrcp.pop %v4090
      %v4101 = vmul.f32 1.0, %v4100
      %v4102 = vrcp.pop %v4091
      %v4103 = vmul.f32 1.0, %v4102
      %v4104 = vrcp.pop %v4092
      %v4105 = vmul.f32 1.0, %v4104
      %v4106 = vrcp.pop %v4093
      %v4107 = vmul.f32 1.0, %v4106
      %v4108 = vrcp.pop %v4094
      %v4109 = vmul.f32 1.0, %v4108
      %v4110 = vrcp.pop %v4095
      %v4111 = vmul.f32 1.0, %v4110
      %v4112 = vmul.f32 %v4034, %v4097
      %v4113 = vmul.f32 %v4037, %v4099
      %v4114 = vmul.f32 %v4042, %v4101
      %v4115 = vmul.f32 %v4045, %v4103
      %v4116 = vmul.f32 %v4050, %v4105
      %v4117 = vmul.f32 %v4053, %v4107
      %v4118 = vmul.f32 %v4058, %v4109
      %v4119 = vmul.f32 %v4061, %v4111
      %v4120 = vmul.f32 %v3898, %v4112
      %v4121 = vmul.f32 %v3901, %v4113
      %v4122 = vmul.f32 %v3906, %v4114
      %v4123 = vmul.f32 %v3909, %v4115
      %v4124 = vmul.f32 %v3914, %v4116
      %v4125 = vmul.f32 %v3917, %v4117
      %v4126 = vmul.f32 %v3922, %v4118
      %v4127 = vmul.f32 %v3925, %v4119
      %v4128 = vpack.c.bf16 %v4121, %v4120
      %v4129 = vpack.c.bf16 %v4123, %v4122
      %v4130 = vpack.c.bf16 %v4125, %v4124
      %v4131 = vpack.c.bf16 %v4127, %v4126
      %v4132 = vld [vmem:[%s906] sm:$0xf]
      %v4133 = vld [vmem:[%s906 + $0x4] sm:$0xf]
      %v4134 = vld [vmem:[%s906 + $0x8] sm:$0xf]
      %v4135 = vld [vmem:[%s906 + $0xc] sm:$0xf]
      %v4136 = vld [vmem:[%s906 + $0x10] sm:$0xf]
      %v4137 = vld [vmem:[%s906 + $0x14] sm:$0xf]
      %v4138 = vld [vmem:[%s906 + $0x18] sm:$0xf]
      %v4139 = vld [vmem:[%s906 + $0x1c] sm:$0xf]
      %v4140 = vld [vmem:[%s906 + $0x20] sm:$0xf]
      %v4141 = vld [vmem:[%s906 + $0x24] sm:$0xf]
      %v4142 = vld [vmem:[%s906 + $0x28] sm:$0xf]
      %v4143 = vld [vmem:[%s906 + $0x2c] sm:$0xf]
      %v4144 = vld [vmem:[%s906 + $0x30] sm:$0xf]
      %v4145 = vld [vmem:[%s906 + $0x34] sm:$0xf]
      %v4146 = vld [vmem:[%s906 + $0x38] sm:$0xf]
      %v4147 = vld [vmem:[%s906 + $0x3c] sm:$0xf]
      %v4148 = vld [vmem:[%s909] sm:$0x1]
      %v4150 = vlaneseq
      %v4151 = vshrl.u32 %v4150, 7
      %v4152 = vsub.s32 0, %v4151
      %v4153 = vrot.slane %v4148, %v4152
      %v4171 = vunpack.c.l.b16 %v4132
      %v4172 = vunpack.c.l.b16 %v4133
      %v4173 = vunpack.c.l.b16 %v4134
      %v4174 = vunpack.c.l.b16 %v4135
      %v4175 = vunpack.c.l.b16 %v4136
      %v4176 = vunpack.c.l.b16 %v4137
      %v4177 = vunpack.c.l.b16 %v4138
      %v4178 = vunpack.c.l.b16 %v4139
      %v4179 = vunpack.c.l.b16 %v4140
      %v4180 = vunpack.c.l.b16 %v4141
      %v4181 = vunpack.c.l.b16 %v4142
      %v4182 = vunpack.c.l.b16 %v4143
      %v4183 = vunpack.c.l.b16 %v4144
      %v4184 = vunpack.c.l.b16 %v4145
      %v4185 = vunpack.c.l.b16 %v4146
      %v4186 = vunpack.c.l.b16 %v4147
      %v4187 = vpack.c.b16 %v4172, %v4171
      %v4188 = vpack.c.b16 %v4174, %v4173
      %v4189 = vpack.c.b16 %v4176, %v4175
      %v4190 = vpack.c.b16 %v4178, %v4177
      %v4191 = vpack.c.b16 %v4180, %v4179
      %v4192 = vpack.c.b16 %v4182, %v4181
      %v4193 = vpack.c.b16 %v4184, %v4183
      %v4194 = vpack.c.b16 %v4186, %v4185
      %4203 = vmatprep.subr.bf16.mxu0 0
      %4204 = vmatpush1.bf16.msra.mxu0 %v4187
      %4205 = vmatprep.subr.bf16.mxu0 0
      %4206 = vmatpush1.bf16.msra.mxu0 %v4188
      %4207 = vmatprep.subr.bf16.mxu0 0
      %4208 = vmatpush1.bf16.msra.mxu0 %v4189
      %4209 = vmatprep.subr.bf16.mxu0 0
      %4210 = vmatpush1.bf16.msra.mxu0 %v4190
      %4211 = vmatprep.subr.bf16.mxu0 0
      %4212 = vmatpush1.bf16.msra.mxu0 %v4191
      %4213 = vmatprep.subr.bf16.mxu0 0
      %4214 = vmatpush1.bf16.msra.mxu0 %v4192
      %4215 = vmatprep.subr.bf16.mxu0 0
      %4216 = vmatpush1.bf16.msra.mxu0 %v4193
      %4217 = vmatprep.subr.bf16.mxu0 0
      %4218 = vmatpush1.bf16.msra.mxu0 %v4194
      %4219 = vmatprep.subr.bf16.mxu0 0
      %4220 = vmatpush1.bf16.msra.mxu0 0
      %4221 = vmatprep.subr.bf16.mxu0 0
      %4222 = vmatpush1.bf16.msra.mxu0 0
      %4223 = vmatprep.subr.bf16.mxu0 0
      %4224 = vmatpush1.bf16.msra.mxu0 0
      %4225 = vmatprep.subr.bf16.mxu0 0
      %4226 = vmatpush1.bf16.msra.mxu0 0
      %4227 = vmatprep.subr.bf16.mxu0 0
      %4228 = vmatpush1.bf16.msra.mxu0 0
      %4229 = vmatprep.subr.bf16.mxu0 0
      %4230 = vmatpush1.bf16.msra.mxu0 0
      %4231 = vmatprep.subr.bf16.mxu0 0
      %4232 = vmatpush1.bf16.msra.mxu0 0
      %4233 = vmatprep.subr.bf16.mxu0 0
      %4234 = vmatpush1.bf16.msra.mxu0 0
      %4235 = vmatprep.mubr.bf16.mxu0 0
      %4236 = vmatmul.mubr.bf16.gmra.mrb[0].mxu0 %v4128
      %v4237 = vpop.f32.mrb[0].mxu0
      %v4238 = vadd.f32 %v4153, %v4237
      %v4239 = vpop.f32.mrb[0].mxu0
      %v4240 = vpop.f32.mrb[0].mxu0
      %v4241 = vadd.f32 %v4153, %v4240
      %v4242 = vpop.f32.mrb[0].mxu0
      %4243 = vmatprep.mubr.bf16.mxu0 0
      %4244 = vmatmul.mubr.bf16.gmra.mrb[0].mxu0 %v4129
      %v4245 = vpop.f32.mrb[0].mxu0
      %v4246 = vadd.f32 %v4153, %v4245
      %v4247 = vpop.f32.mrb[0].mxu0
      %v4248 = vpop.f32.mrb[0].mxu0
      %v4249 = vadd.f32 %v4153, %v4248
      %v4250 = vpop.f32.mrb[0].mxu0
      %4251 = vmatprep.mubr.bf16.mxu0 0
      %4252 = vmatmul.mubr.bf16.gmra.mrb[0].mxu0 %v4130
      %v4253 = vpop.f32.mrb[0].mxu0
      %v4254 = vadd.f32 %v4153, %v4253
      %v4255 = vpop.f32.mrb[0].mxu0
      %v4256 = vpop.f32.mrb[0].mxu0
      %v4257 = vadd.f32 %v4153, %v4256
      %v4258 = vpop.f32.mrb[0].mxu0
      %4259 = vmatprep.mubr.bf16.mxu0 0
      %4260 = vmatmul.mubr.bf16.gmra.mrb[0].mxu0 %v4131
      %v4261 = vpop.f32.mrb[0].mxu0
      %v4262 = vadd.f32 %v4153, %v4261
      %v4263 = vpop.f32.mrb[0].mxu0
      %v4264 = vpop.f32.mrb[0].mxu0
      %v4265 = vadd.f32 %v4153, %v4264
      %v4266 = vpop.f32.mrb[0].mxu0
      %4267 = vdwg.mxu0
      %v4268 = vadd.f32 %v1096, %v4238
      %v4269 = vadd.f32 %v1097, %v4241
      %v4270 = vadd.f32 %v1098, %v4246
      %v4271 = vadd.f32 %v1099, %v4249
      %v4272 = vadd.f32 %v1100, %v4254
      %v4273 = vadd.f32 %v1101, %v4257
      %v4274 = vadd.f32 %v1102, %v4262
      %v4275 = vadd.f32 %v1103, %v4265
      %4276 = vst [vmem:[#allocation2] sm:$0xff] %v4268
      %4277 = vst [vmem:[#allocation2 + $0x8] sm:$0xff] %v4269
      %4278 = vst [vmem:[#allocation2 + $0x10] sm:$0xff] %v4270
      %4279 = vst [vmem:[#allocation2 + $0x18] sm:$0xff] %v4271
      %4280 = vst [vmem:[#allocation2 + $0x20] sm:$0xff] %v4272
      %4281 = vst [vmem:[#allocation2 + $0x28] sm:$0xff] %v4273
      %4282 = vst [vmem:[#allocation2 + $0x30] sm:$0xff] %v4274
      %4283 = vst [vmem:[#allocation2 + $0x38] sm:$0xff] %v4275
      %p4284 = scmp.eq.s32.totalorder %s37, 2
      // Predicated region
      $region109: #{lynxnet2_forward.1} parent=103 // pred_check
        %p4285 = pneg %p4284
      $region110: #{lynxnet2_forward.1} parent=103 // pred_check_branch
        %4287 = sbr.rel (%p4285) target = $region112
      $region111: #{lynxnet2_forward.1} parent=103 // pred_region
        %v4288 = vld [vmem:[#allocation2] sm:$0xff]
        %v4289 = vld [vmem:[#allocation2 + $0x8] sm:$0xff]
        %v4290 = vld [vmem:[#allocation2 + $0x10] sm:$0xff]
        %v4291 = vld [vmem:[#allocation2 + $0x18] sm:$0xff]
        %v4292 = vld [vmem:[#allocation2 + $0x20] sm:$0xff]
        %v4293 = vld [vmem:[#allocation2 + $0x28] sm:$0xff]
        %v4294 = vld [vmem:[#allocation2 + $0x30] sm:$0xff]
        %v4295 = vld [vmem:[#allocation2 + $0x38] sm:$0xff]
        %v4296 = vld [vmem:[%s17] sm:$0x1]
        %v4297 = vld [vmem:[%s18] sm:$0x1]
        %4298 = vadd.xlane.f32.xlu0 %v4288
        %v4299 = vpop.xlane.xlu0 %4298
        %4300 = vadd.xlane.f32.xlu0 %v4289
        %v4301 = vpop.xlane.xlu0 %4300
        %4302 = vadd.xlane.f32.xlu0 %v4290
        %v4303 = vpop.xlane.xlu0 %4302
        %4304 = vadd.xlane.f32.xlu0 %v4291
        %v4305 = vpop.xlane.xlu0 %4304
        %4306 = vadd.xlane.f32.xlu0 %v4292
        %v4307 = vpop.xlane.xlu0 %4306
        %4308 = vadd.xlane.f32.xlu0 %v4293
        %v4309 = vpop.xlane.xlu0 %4308
        %4310 = vadd.xlane.f32.xlu0 %v4294
        %v4311 = vpop.xlane.xlu0 %4310
        %4312 = vadd.xlane.f32.xlu0 %v4295
        %v4313 = vpop.xlane.xlu0 %4312
        %v4314 = vmul.f32 %v4299, %v1122
        %v4315 = vmul.f32 %v4301, %v1122
        %v4316 = vmul.f32 %v4303, %v1122
        %v4317 = vmul.f32 %v4305, %v1122
        %v4318 = vmul.f32 %v4307, %v1122
        %v4319 = vmul.f32 %v4309, %v1122
        %v4320 = vmul.f32 %v4311, %v1122
        %v4321 = vmul.f32 %v4313, %v1122
        %v4322 = vsub.f32 %v4288, %v4314
        %v4323 = vsub.f32 %v4289, %v4315
        %v4324 = vsub.f32 %v4290, %v4316
        %v4325 = vsub.f32 %v4291, %v4317
        %v4326 = vsub.f32 %v4292, %v4318
        %v4327 = vsub.f32 %v4293, %v4319
        %v4328 = vsub.f32 %v4294, %v4320
        %v4329 = vsub.f32 %v4295, %v4321
        %v4330 = vmul.f32 %v4322, %v4322
        %v4331 = vmul.f32 %v4323, %v4323
        %v4332 = vmul.f32 %v4324, %v4324
        %v4333 = vmul.f32 %v4325, %v4325
        %v4334 = vmul.f32 %v4326, %v4326
        %v4335 = vmul.f32 %v4327, %v4327
        %v4336 = vmul.f32 %v4328, %v4328
        %v4337 = vmul.f32 %v4329, %v4329
        %4338 = vadd.xlane.f32.xlu0 %v4330
        %v4339 = vpop.xlane.xlu0 %4338
        %4340 = vadd.xlane.f32.xlu0 %v4331
        %v4341 = vpop.xlane.xlu0 %4340
        %4342 = vadd.xlane.f32.xlu0 %v4332
        %v4343 = vpop.xlane.xlu0 %4342
        %4344 = vadd.xlane.f32.xlu0 %v4333
        %v4345 = vpop.xlane.xlu0 %4344
        %4346 = vadd.xlane.f32.xlu0 %v4334
        %v4347 = vpop.xlane.xlu0 %4346
        %4348 = vadd.xlane.f32.xlu0 %v4335
        %v4349 = vpop.xlane.xlu0 %4348
        %4350 = vadd.xlane.f32.xlu0 %v4336
        %v4351 = vpop.xlane.xlu0 %4350
        %4352 = vadd.xlane.f32.xlu0 %v4337
        %v4353 = vpop.xlane.xlu0 %4352
        %v4354 = vmul.f32 %v4339, %v1122
        %v4355 = vmul.f32 %v4341, %v1122
        %v4356 = vmul.f32 %v4343, %v1122
        %v4357 = vmul.f32 %v4345, %v1122
        %v4358 = vmul.f32 %v4347, %v1122
        %v4359 = vmul.f32 %v4349, %v1122
        %v4360 = vmul.f32 %v4351, %v1122
        %v4361 = vmul.f32 %v4353, %v1122
        %v4362 = vadd.f32 %v4354, 1e-05
        %v4363 = vadd.f32 %v4355, 1e-05
        %v4364 = vadd.f32 %v4356, 1e-05
        %v4365 = vadd.f32 %v4357, 1e-05
        %v4366 = vadd.f32 %v4358, 1e-05
        %v4367 = vadd.f32 %v4359, 1e-05
        %v4368 = vadd.f32 %v4360, 1e-05
        %v4369 = vadd.f32 %v4361, 1e-05
        %v4370 = vrsqrt.pop %v4362
        %v4371 = vrsqrt.pop %v4363
        %v4372 = vrsqrt.pop %v4364
        %v4373 = vrsqrt.pop %v4365
        %v4374 = vrsqrt.pop %v4366
        %v4375 = vrsqrt.pop %v4367
        %v4376 = vrsqrt.pop %v4368
        %v4377 = vrsqrt.pop %v4369
        %v4378 = vmul.f32 %v4322, %v4370
        %v4379 = vmul.f32 %v4323, %v4371
        %v4380 = vmul.f32 %v4324, %v4372
        %v4381 = vmul.f32 %v4325, %v4373
        %v4382 = vmul.f32 %v4326, %v4374
        %v4383 = vmul.f32 %v4327, %v4375
        %v4384 = vmul.f32 %v4328, %v4376
        %v4385 = vmul.f32 %v4329, %v4377
        %v4387 = vlaneseq
        %v4388 = vshrl.u32 %v4387, 7
        %v4389 = vsub.s32 0, %v4388
        %v4390 = vrot.slane %v4296, %v4389
        %v4392 = vmul.f32 %v4378, %v4390
        %v4393 = vmul.f32 %v4379, %v4390
        %v4394 = vmul.f32 %v4380, %v4390
        %v4395 = vmul.f32 %v4381, %v4390
        %v4396 = vmul.f32 %v4382, %v4390
        %v4397 = vmul.f32 %v4383, %v4390
        %v4398 = vmul.f32 %v4384, %v4390
        %v4399 = vmul.f32 %v4385, %v4390
        %v4401 = vlaneseq
        %v4402 = vshrl.u32 %v4401, 7
        %v4403 = vsub.s32 0, %v4402
        %v4404 = vrot.slane %v4297, %v4403
        %v4406 = vadd.f32 %v4392, %v4404
        %v4407 = vadd.f32 %v4393, %v4404
        %v4408 = vadd.f32 %v4394, %v4404
        %v4409 = vadd.f32 %v4395, %v4404
        %v4410 = vadd.f32 %v4396, %v4404
        %v4411 = vadd.f32 %v4397, %v4404
        %v4412 = vadd.f32 %v4398, %v4404
        %v4413 = vadd.f32 %v4399, %v4404
        %v4414 = vpack.c.bf16 %v4407, %v4406
        %v4415 = vpack.c.bf16 %v4409, %v4408
        %v4416 = vpack.c.bf16 %v4411, %v4410
        %v4417 = vpack.c.bf16 %v4413, %v4412
        %v4418 = vld [vmem:[%s19] sm:$0xf]
        %v4419 = vld [vmem:[%s19 + $0x4] sm:$0xf]
        %v4420 = vld [vmem:[%s19 + $0x8] sm:$0xf]
        %v4421 = vld [vmem:[%s19 + $0xc] sm:$0xf]
        %v4422 = vld [vmem:[%s19 + $0x10] sm:$0xf]
        %v4423 = vld [vmem:[%s19 + $0x14] sm:$0xf]
        %v4424 = vld [vmem:[%s19 + $0x18] sm:$0xf]
        %v4425 = vld [vmem:[%s19 + $0x1c] sm:$0xf]
        %v4426 = vld [vmem:[%s19 + $0x20] sm:$0xf]
        %v4427 = vld [vmem:[%s19 + $0x24] sm:$0xf]
        %v4428 = vld [vmem:[%s19 + $0x28] sm:$0xf]
        %v4429 = vld [vmem:[%s19 + $0x2c] sm:$0xf]
        %v4430 = vld [vmem:[%s19 + $0x30] sm:$0xf]
        %v4431 = vld [vmem:[%s19 + $0x34] sm:$0xf]
        %v4432 = vld [vmem:[%s19 + $0x38] sm:$0xf]
        %v4433 = vld [vmem:[%s19 + $0x3c] sm:$0xf]
        %v4434 = vld [vmem:[%s20] sm:$0x1]
        %v4436 = vlaneseq
        %v4437 = vshrl.u32 %v4436, 7
        %v4438 = vsub.s32 0, %v4437
        %v4439 = vrot.slane %v4434, %v4438
        %v4457 = vunpack.c.l.b16 %v4418
        %v4458 = vunpack.c.l.b16 %v4419
        %v4459 = vunpack.c.l.b16 %v4420
        %v4460 = vunpack.c.l.b16 %v4421
        %v4461 = vunpack.c.l.b16 %v4422
        %v4462 = vunpack.c.l.b16 %v4423
        %v4463 = vunpack.c.l.b16 %v4424
        %v4464 = vunpack.c.l.b16 %v4425
        %v4465 = vunpack.c.l.b16 %v4426
        %v4466 = vunpack.c.l.b16 %v4427
        %v4467 = vunpack.c.l.b16 %v4428
        %v4468 = vunpack.c.l.b16 %v4429
        %v4469 = vunpack.c.l.b16 %v4430
        %v4470 = vunpack.c.l.b16 %v4431
        %v4471 = vunpack.c.l.b16 %v4432
        %v4472 = vunpack.c.l.b16 %v4433
        %v4473 = vpack.c.b16 %v4458, %v4457
        %v4474 = vpack.c.b16 %v4460, %v4459
        %v4475 = vpack.c.b16 %v4462, %v4461
        %v4476 = vpack.c.b16 %v4464, %v4463
        %v4477 = vpack.c.b16 %v4466, %v4465
        %v4478 = vpack.c.b16 %v4468, %v4467
        %v4479 = vpack.c.b16 %v4470, %v4469
        %v4480 = vpack.c.b16 %v4472, %v4471
        %4489 = vmatprep.subr.bf16.mxu0 0
        %4490 = vmatpush1.bf16.msra.mxu0 %v4473
        %4491 = vmatprep.subr.bf16.mxu0 0
        %4492 = vmatpush1.bf16.msra.mxu0 %v4474
        %4493 = vmatprep.subr.bf16.mxu0 0
        %4494 = vmatpush1.bf16.msra.mxu0 %v4475
        %4495 = vmatprep.subr.bf16.mxu0 0
        %4496 = vmatpush1.bf16.msra.mxu0 %v4476
        %4497 = vmatprep.subr.bf16.mxu0 0
        %4498 = vmatpush1.bf16.msra.mxu0 %v4477
        %4499 = vmatprep.subr.bf16.mxu0 0
        %4500 = vmatpush1.bf16.msra.mxu0 %v4478
        %4501 = vmatprep.subr.bf16.mxu0 0
        %4502 = vmatpush1.bf16.msra.mxu0 %v4479
        %4503 = vmatprep.subr.bf16.mxu0 0
        %4504 = vmatpush1.bf16.msra.mxu0 %v4480
        %4505 = vmatprep.subr.bf16.mxu0 0
        %4506 = vmatpush1.bf16.msra.mxu0 0
        %4507 = vmatprep.subr.bf16.mxu0 0
        %4508 = vmatpush1.bf16.msra.mxu0 0
        %4509 = vmatprep.subr.bf16.mxu0 0
        %4510 = vmatpush1.bf16.msra.mxu0 0
        %4511 = vmatprep.subr.bf16.mxu0 0
        %4512 = vmatpush1.bf16.msra.mxu0 0
        %4513 = vmatprep.subr.bf16.mxu0 0
        %4514 = vmatpush1.bf16.msra.mxu0 0
        %4515 = vmatprep.subr.bf16.mxu0 0
        %4516 = vmatpush1.bf16.msra.mxu0 0
        %4517 = vmatprep.subr.bf16.mxu0 0
        %4518 = vmatpush1.bf16.msra.mxu0 0
        %4519 = vmatprep.subr.bf16.mxu0 0
        %4520 = vmatpush1.bf16.msra.mxu0 0
        %4521 = vmatprep.mubr.bf16.mxu0 0
        %4522 = vmatmul.mubr.bf16.gmra.mrb[0].mxu0 %v4414
        %v4523 = vpop.f32.mrb[0].mxu0
        %v4524 = vadd.f32 %v4439, %v4523
        %v4525 = vpop.f32.mrb[0].mxu0
        %v4526 = vpop.f32.mrb[0].mxu0
        %v4527 = vadd.f32 %v4439, %v4526
        %v4528 = vpop.f32.mrb[0].mxu0
        %4529 = vmatprep.mubr.bf16.mxu0 0
        %4530 = vmatmul.mubr.bf16.gmra.mrb[0].mxu0 %v4415
        %v4531 = vpop.f32.mrb[0].mxu0
        %v4532 = vadd.f32 %v4439, %v4531
        %v4533 = vpop.f32.mrb[0].mxu0
        %v4534 = vpop.f32.mrb[0].mxu0
        %v4535 = vadd.f32 %v4439, %v4534
        %v4536 = vpop.f32.mrb[0].mxu0
        %4537 = vmatprep.mubr.bf16.mxu0 0
        %4538 = vmatmul.mubr.bf16.gmra.mrb[0].mxu0 %v4416
        %v4539 = vpop.f32.mrb[0].mxu0
        %v4540 = vadd.f32 %v4439, %v4539
        %v4541 = vpop.f32.mrb[0].mxu0
        %v4542 = vpop.f32.mrb[0].mxu0
        %v4543 = vadd.f32 %v4439, %v4542
        %v4544 = vpop.f32.mrb[0].mxu0
        %4545 = vmatprep.mubr.bf16.mxu0 0
        %4546 = vmatmul.mubr.bf16.gmra.mrb[0].mxu0 %v4417
        %v4547 = vpop.f32.mrb[0].mxu0
        %v4548 = vadd.f32 %v4439, %v4547
        %v4549 = vpop.f32.mrb[0].mxu0
        %v4550 = vpop.f32.mrb[0].mxu0
        %v4551 = vadd.f32 %v4439, %v4550
        %v4552 = vpop.f32.mrb[0].mxu0
        %4553 = vdwg.mxu0
        %4554 = vst [vmem:[%s914] sm:$0xff] %v4524
        %4555 = vst [vmem:[%s914 + $0x8] sm:$0xff] %v4527
        %4556 = vst [vmem:[%s914 + $0x10] sm:$0xff] %v4532
        %4557 = vst [vmem:[%s914 + $0x18] sm:$0xff] %v4535
        %4558 = vst [vmem:[%s914 + $0x20] sm:$0xff] %v4540
        %4559 = vst [vmem:[%s914 + $0x28] sm:$0xff] %v4543
        %4560 = vst [vmem:[%s914 + $0x30] sm:$0xff] %v4548
        %4561 = vst [vmem:[%s914 + $0x38] sm:$0xff] %v4551
      $region112: #{lynxnet2_forward.1} parent=103 // pred_fallthru
        _
      %p4562 = scmp.lt.s32.totalorder %s36, 1
      %s4563 = scalar_select %p4562, %s36, 1
      %s4564 = smul.addr %s4563, 8
      %s4565 = smul.addr %s4564, 8
      %s4566 = scalar_lea.vmem %s21, %s4565
      // Predicated region
      $region113: #{lynxnet2_forward.1} parent=103 // pred_check
        %p4567 = pneg %p583
      $region114: #{lynxnet2_forward.1} parent=103 // pred_check_branch
        %4569 = sbr.rel (%p4567) target = $region116
      $region115: #{lynxnet2_forward.1} parent=103 // pred_region
        _
      $region116: #{lynxnet2_forward.1} parent=103 // pred_fallthru
        _
    $region104: #{lynxnet2_forward.1} parent=5 // pred_fallthru
      _
    %p4570 = scmp.le.s32.totalorder 2, %s27
    // Predicated region
    $region117: #{lynxnet2_forward.1} parent=5 // pred_check
      %p4571 = pneg %p4570
    $region118: #{lynxnet2_forward.1} parent=5 // pred_check_branch
      %4573 = sbr.rel (%p4571) target = $region120
    $region119: #{lynxnet2_forward.1} parent=5 // pred_region
      %s4574 = ssub.s32 %s27, 2
      // Predicated region
      $region121: #{lynxnet2_forward.1} parent=119 // pred_check
        %p4575 = pneg %p589
      $region122: #{lynxnet2_forward.1} parent=119 // pred_check_branch
        %4577 = sbr.rel (%p4575) target = $region124
      $region123: #{lynxnet2_forward.1} parent=119 // pred_region
        %p4578 = scmp.lt.s32.totalorder %s38, 1
        %s4579 = scalar_select %p4578, %s38, 1
        %s4580 = smul.addr %s4579, 8
        %s4581 = smul.addr %s4580, 8
        %s4582 = scalar_lea.vmem %s21, %s4581
      $region124: #{lynxnet2_forward.1} parent=119 // pred_fallthru
        _
    $region120: #{lynxnet2_forward.1} parent=5 // pred_fallthru
      _
  $region6: #{lynxnet2_forward.1} parent=0 // loop_footer
    %s31 = sadd.s32 1, %s27
  $region7: #{lynxnet2_forward.1} parent=0 // loop_footer_branch
    %26 = sbr.rel target = $region3
  $region8: #{lynxnet2_forward.1} parent=0 // loop_exit
    _

</llo_original>
